<compile_context>
chip_gen: v7x
topology: tpu7x:2x2x1
jax: 0.10.0
libtpu: 0.0.40
codegen_flags: <defaults>
</compile_context>

<pallas_src>
import numpy as np

import jax
import jax.numpy as jnp
from jax.experimental import pallas as pl
from jax.experimental.pallas import tpu as pltpu


# ----------------------------------------------------------------------------
# Fused path (small H, W): DFT -> conv1 -> ReLU -> conv2 -> IDFT in one kernel.
# ----------------------------------------------------------------------------
def _fused_fft_conv_kernel(xf_ref, frt_ref, fit_ref, w1r_ref, w1i_ref,
                           w2r_ref, w2i_ref, grt_ref, git_ref, o_ref):
    # xf_ref : (C, H*W)      spatial-domain input, one batch element
    # frt/fit: (H*W, H*Wf)   real/imag forward rfft2 matrices
    # w1r/w1i: (2*hid, C)    conv1 weights split into real/imag column blocks
    # w2r/w2i: (C, 2*hid)    conv2 weights split into real/imag row blocks
    # grt/git: (H*Wf, H*W)   irfft2 matrices (norm + Hermitian weights folded in)
    # o_ref  : (C, H*W)
    hi = jax.lax.Precision.HIGHEST
    xf = xf_ref[...]

    # Forward 2-D real DFT (exact-FFT replacement -> keep 3-pass precision here;
    # K = H*W so single-pass bf16 error would be the dominant error source).
    yr = jnp.dot(xf, frt_ref[...], preferred_element_type=jnp.float32, precision=hi)
    yi = jnp.dot(xf, fit_ref[...], preferred_element_type=jnp.float32, precision=hi)

    # conv1 (1x1, bias=False) on [real ; imag] channels, then ReLU.
    # DEFAULT precision: K = C is tiny, per review.
    h = jnp.dot(w1r_ref[...], yr, preferred_element_type=jnp.float32)
    h = h + jnp.dot(w1i_ref[...], yi, preferred_element_type=jnp.float32)
    h = jnp.maximum(h, 0.0)

    # conv2 (1x1) -> real/imag frequency maps.
    o_r = jnp.dot(w2r_ref[...], h, preferred_element_type=jnp.float32)
    o_i = jnp.dot(w2i_ref[...], h, preferred_element_type=jnp.float32)

    # Inverse 2-D real DFT back to the spatial domain.
    out = jnp.dot(o_r, grt_ref[...], preferred_element_type=jnp.float32, precision=hi)
    out = out + jnp.dot(o_i, git_ref[...], preferred_element_type=jnp.float32, precision=hi)
    o_ref[...] = out.astype(o_ref.dtype)


def _dft_matrices(H, W):
    """Real matrices implementing rfft2 / irfft2 with norm='backward'.

    Forward : Yr = x_flat @ frt, Yi = x_flat @ fit        (x_flat: (.., H*W))
    Inverse : x  = Or @ grt + Oi @ git                    (O*:     (.., H*Wf))
    The irfft2 Hermitian doubling weights and the 1/(H*W) normalization are
    folded into grt/git; sin terms vanish at bins 0 and W/2, matching irfft's
    treatment of those bins.
    """
    Wf = W // 2 + 1
    m = np.arange(H)[:, None, None, None]
    n = np.arange(W)[None, :, None, None]
    h = np.arange(H)[None, None, :, None]
    wf = np.arange(Wf)[None, None, None, :]
    ang = 2.0 * np.pi * (h * m / H + wf * n / W)          # (H, W, H, Wf)
    cos_a = np.cos(ang).reshape(H * W, H * Wf)
    sin_a = np.sin(ang).reshape(H * W, H * Wf)

    frt = cos_a
    fit = -sin_a

    k = np.full((Wf,), 2.0)
    k[0] = 1.0
    if W % 2 == 0:
        k[W // 2] = 1.0
    scale = np.broadcast_to(k / (H * W), (H, Wf)).reshape(H * Wf)
    grt = (cos_a * scale[None, :]).T
    git = (-sin_a * scale[None, :]).T

    as_f32 = lambda a: jnp.asarray(a, dtype=jnp.float32)
    return as_f32(frt), as_f32(fit), as_f32(grt), as_f32(git)


def _fused_forward(x, w1, w2):
    b, dim, H, W = x.shape
    Wf = W // 2 + 1
    hw, hwf = H * W, H * Wf
    chid2 = w1.shape[0]

    frt, fit, grt, git = _dft_matrices(H, W)

    # Split the 1x1-conv weights once in the wrapper: no concatenate / chunk
    # anywhere, neither in HBM nor in the kernel.
    w1r, w1i = w1[:, :dim], w1[:, dim:]
    w2r, w2i = w2[:dim, :], w2[dim:, :]

    xf = x.reshape(b, dim, hw).astype(jnp.float32)        # free (contiguous) reshape

    const = lambda i: (0, 0)
    out = pl.pallas_call(
        _fused_fft_conv_kernel,
        out_shape=jax.ShapeDtypeStruct((b, dim, hw), jnp.float32),
        grid=(b,),
        in_specs=[
            pl.BlockSpec((None, dim, hw), lambda i: (i, 0, 0)),
            pl.BlockSpec((hw, hwf), const),      # frt  (VMEM-resident, constant map)
            pl.BlockSpec((hw, hwf), const),      # fit
            pl.BlockSpec((chid2, dim), const),   # w1r
            pl.BlockSpec((chid2, dim), const),   # w1i
            pl.BlockSpec((dim, chid2), const),   # w2r
            pl.BlockSpec((dim, chid2), const),   # w2i
            pl.BlockSpec((hwf, hw), const),      # grt
            pl.BlockSpec((hwf, hw), const),      # git
        ],
        out_specs=pl.BlockSpec((None, dim, hw), lambda i: (i, 0, 0)),
        compiler_params=pltpu.CompilerParams(
            dimension_semantics=("parallel",),           # batch across TCs on v7x
            vmem_limit_bytes=32 * 1024 * 1024,
        ),
    )(xf, frt, fit, w1r, w1i, w2r, w2i, grt, git)

    return out.reshape(b, dim, H, W)


# ----------------------------------------------------------------------------
# Fallback path (large H, W): XLA FFT + fused channel-mix Pallas kernel.
# ----------------------------------------------------------------------------
def _channel_mix_kernel(yr_ref, yi_ref, w1r_ref, w1i_ref, w2r_ref, w2i_ref,
                        or_ref, oi_ref):
    # yr/yi : (C, TM)  real/imag frequency channels, one lane-dense spatial tile
    yr = yr_ref[...]
    yi = yi_ref[...]
    h = jnp.dot(w1r_ref[...], yr, preferred_element_type=jnp.float32)
    h = h + jnp.dot(w1i_ref[...], yi, preferred_element_type=jnp.float32)
    h = jnp.maximum(h, 0.0)
    or_ref[...] = jnp.dot(w2r_ref[...], h, preferred_element_type=jnp.float32)
    oi_ref[...] = jnp.dot(w2i_ref[...], h, preferred_element_type=jnp.float32)


def _fft_channel_mix_forward(x, w1, w2, *, tm_max=8192):
    b, dim, H, W = x.shape
    chid2 = w1.shape[0]

    # TODO(synk): rfft2/irfft2 have no Pallas primitive for large H, W; use XLA FFT.
    y = jnp.fft.rfft2(x, norm="backward")                 # (b, dim, H, Wf) complex
    wf = y.shape[-1]
    m = H * wf
    yr = jnp.real(y).reshape(b, dim, m).astype(jnp.float32)
    yi = jnp.imag(y).reshape(b, dim, m).astype(jnp.float32)

    # Big lane-dense tiles: mem-bound kernel, so maximize tile width (review).
    tm = min(tm_max, pl.cdiv(m, 128) * 128)
    m_tiles = pl.cdiv(m, tm)
    m_pad = m_tiles * tm
    if m_pad != m:
        pad = ((0, 0), (0, 0), (0, m_pad - m))
        yr = jnp.pad(yr, pad)
        yi = jnp.pad(yi, pad)

    w1r, w1i = w1[:, :dim], w1[:, dim:]
    w2r, w2i = w2[:dim, :], w2[dim:, :]

    tile = pl.BlockSpec((None, dim, tm), lambda j, i: (i, 0, j))
    const = lambda j, i: (0, 0)
    out_r, out_i = pl.pallas_call(
        _channel_mix_kernel,
        out_shape=(jax.ShapeDtypeStruct((b, dim, m_pad), jnp.float32),
                   jax.ShapeDtypeStruct((b, dim, m_pad), jnp.float32)),
        grid=(m_tiles, b),                                # large axis first (v7x megacore)
        in_specs=[
            tile, tile,
            pl.BlockSpec((chid2, dim), const),
            pl.BlockSpec((chid2, dim), const),
            pl.BlockSpec((dim, chid2), const),
            pl.BlockSpec((dim, chid2), const),
        ],
        out_specs=(tile, tile),
        compiler_params=pltpu.CompilerParams(
            dimension_semantics=("parallel", "parallel"),
            vmem_limit_bytes=32 * 1024 * 1024,
        ),
    )(yr, yi, w1r, w1i, w2r, w2i)

    out_r = out_r[:, :, :m].reshape(b, dim, H, wf)
    out_i = out_i[:, :, :m].reshape(b, dim, H, wf)
    return jnp.fft.irfft2(out_r + 1j * out_i, s=(H, W), norm="backward")


# ----------------------------------------------------------------------------
# Dispatcher + reference
# ----------------------------------------------------------------------------
def fft_bench_complex_conv_forward(x, w1, w2, *, fuse_dft_threshold_bytes=8 << 20,
                                   tm_max=8192):
    """Forward pass of fft_bench_complex_conv.

    x : (b, dim, H, W) float32
    w1: (2*hid_dim, 2*dim) float32   (1x1 conv weights, bias=False)
    w2: (2*dim, 2*hid_dim) float32
    """
    _, _, H, W = x.shape
    Wf = W // 2 + 1
    dft_bytes = 4 * (H * W) * (H * Wf) * 4        # 4 f32 DFT matrices in VMEM
    if dft_bytes <= fuse_dft_threshold_bytes:
        return _fused_forward(x, w1, w2)
    return _fft_channel_mix_forward(x, w1, w2, tm_max=tm_max)


def _reference(x, w1, w2):
    """Pure-JAX reference mirroring the PyTorch forward exactly."""
    dim = x.shape[1]
    H, W = x.shape[-2:]
    y = jnp.fft.rfft2(x, norm="backward")
    ycat = jnp.concatenate([jnp.real(y), jnp.imag(y)], axis=1)
    h = jnp.einsum("oi,bihw->bohw", w1, ycat, precision=jax.lax.Precision.HIGHEST)
    h = jnp.maximum(h, 0.0)
    o = jnp.einsum("oi,bihw->bohw", w2, h, precision=jax.lax.Precision.HIGHEST)
    yr, yi = o[:, :dim], o[:, dim:]
    return jnp.fft.irfft2(yr + 1j * yi, s=(H, W), norm="backward")


if __name__ == "__main__":
    # dim=4, dw=1 -> hid_dim=4; conv channels are 2*dim = 8 (real||imag stacking).
    b, dim, H, W = 2, 4, 16, 16
    chid = dim  # dw = 1

    key = jax.random.PRNGKey(0)
    kx, k1, k2 = jax.random.split(key, 3)
    x = jax.random.normal(kx, (b, dim, H, W), dtype=jnp.float32)
    w1 = jax.random.normal(k1, (2 * chid, 2 * dim), dtype=jnp.float32) * 0.1
    w2 = jax.random.normal(k2, (2 * dim, 2 * chid), dtype=jnp.float32) * 0.1

    ref = _reference(x, w1, w2)

    # Fused DFT->conv->ReLU->conv->IDFT kernel (small H, W path).
    out = jax.block_until_ready(fft_bench_complex_conv_forward(x, w1, w2))
    assert out.shape == (b, dim, H, W)
    # DEFAULT-precision (single-pass bf16) channel mixes -> looser tolerance.
    assert jnp.allclose(out, ref, atol=2e-2, rtol=2e-2), "fused path mismatch"

    # Also exercise the large-spatial fallback (XLA FFT + channel-mix kernel).
    out_fb = jax.block_until_ready(
        fft_bench_complex_conv_forward(x, w1, w2, fuse_dft_threshold_bytes=0))
    assert jnp.allclose(out_fb, ref, atol=2e-2, rtol=2e-2), "fallback path mismatch"

    print("KERNEL_OK")
</pallas_src>

<mosaic_0001>
module attributes {stable_mosaic.version = 11 : i64} {
  func.func @_fused_fft_conv_kernel(%arg0: i32, %arg1: memref<1x4x256xf32, #tpu.memory_space<vmem>>, %arg2: memref<256x144xf32, #tpu.memory_space<vmem>>, %arg3: memref<256x144xf32, #tpu.memory_space<vmem>>, %arg4: memref<8x4xf32, #tpu.memory_space<vmem>>, %arg5: memref<8x4xf32, #tpu.memory_space<vmem>>, %arg6: memref<4x8xf32, #tpu.memory_space<vmem>>, %arg7: memref<4x8xf32, #tpu.memory_space<vmem>>, %arg8: memref<144x256xf32, #tpu.memory_space<vmem>>, %arg9: memref<144x256xf32, #tpu.memory_space<vmem>>, %arg10: memref<1x4x256xf32, #tpu.memory_space<vmem>>) attributes {dimension_semantics = [#tpu.dimension_semantics<parallel>], iteration_bounds = array<i64: 2>, scalar_prefetch = 0 : i64, scratch_operands = 0 : i64, tpu.core_type = #tpu.core_type<tc>, window_params = [{transform_indices = @transform_0, window_bounds = array<i64: 1, 4, 256>}, {pipeline_mode = #tpu.pipeline_mode<synchronous>, transform_indices = @transform_1, window_bounds = array<i64: 256, 144>}, {pipeline_mode = #tpu.pipeline_mode<synchronous>, transform_indices = @transform_2, window_bounds = array<i64: 256, 144>}, {pipeline_mode = #tpu.pipeline_mode<synchronous>, transform_indices = @transform_3, window_bounds = array<i64: 8, 4>}, {pipeline_mode = #tpu.pipeline_mode<synchronous>, transform_indices = @transform_4, window_bounds = array<i64: 8, 4>}, {pipeline_mode = #tpu.pipeline_mode<synchronous>, transform_indices = @transform_5, window_bounds = array<i64: 4, 8>}, {pipeline_mode = #tpu.pipeline_mode<synchronous>, transform_indices = @transform_6, window_bounds = array<i64: 4, 8>}, {pipeline_mode = #tpu.pipeline_mode<synchronous>, transform_indices = @transform_7, window_bounds = array<i64: 144, 256>}, {pipeline_mode = #tpu.pipeline_mode<synchronous>, transform_indices = @transform_8, window_bounds = array<i64: 144, 256>}, {transform_indices = @transform_9, window_bounds = array<i64: 1, 4, 256>}]} {
    %c0 = arith.constant 0 : index
    %c0_0 = arith.constant 0 : index
    %c0_1 = arith.constant 0 : index
    %0 = vector.load %arg1[%c0, %c0_0, %c0_1] : memref<1x4x256xf32, #tpu.memory_space<vmem>>, vector<1x4x256xf32>
    %1 = vector.shape_cast %0 : vector<1x4x256xf32> to vector<4x256xf32>
    %c0_2 = arith.constant 0 : index
    %c0_3 = arith.constant 0 : index
    %2 = vector.load %arg2[%c0_2, %c0_3] : memref<256x144xf32, #tpu.memory_space<vmem>>, vector<256x144xf32>
    %cst = arith.constant dense<0.000000e+00> : vector<4x144xf32>
    %3 = tpu.matmul %1, %2, %cst {dimension_numbers = #tpu.dot_dimension_numbers<[1], [0], [0], [1], [0, 0, 1, 1], [], []>, precision = #tpu.contract_precision<fp32>} : vector<4x256xf32>, vector<256x144xf32>, vector<4x144xf32> -> vector<4x144xf32>
    %c0_4 = arith.constant 0 : index
    %c0_5 = arith.constant 0 : index
    %4 = vector.load %arg3[%c0_4, %c0_5] : memref<256x144xf32, #tpu.memory_space<vmem>>, vector<256x144xf32>
    %cst_6 = arith.constant dense<0.000000e+00> : vector<4x144xf32>
    %5 = tpu.matmul %1, %4, %cst_6 {dimension_numbers = #tpu.dot_dimension_numbers<[1], [0], [0], [1], [0, 0, 1, 1], [], []>, precision = #tpu.contract_precision<fp32>} : vector<4x256xf32>, vector<256x144xf32>, vector<4x144xf32> -> vector<4x144xf32>
    %c0_7 = arith.constant 0 : index
    %c0_8 = arith.constant 0 : index
    %6 = vector.load %arg4[%c0_7, %c0_8] : memref<8x4xf32, #tpu.memory_space<vmem>>, vector<8x4xf32>
    %cst_9 = arith.constant dense<0.000000e+00> : vector<8x144xf32>
    %7 = tpu.matmul %6, %3, %cst_9 {dimension_numbers = #tpu.dot_dimension_numbers<[1], [0], [0], [1], [0, 0, 1, 1], [], []>} : vector<8x4xf32>, vector<4x144xf32>, vector<8x144xf32> -> vector<8x144xf32>
    %c0_10 = arith.constant 0 : index
    %c0_11 = arith.constant 0 : index
    %8 = vector.load %arg5[%c0_10, %c0_11] : memref<8x4xf32, #tpu.memory_space<vmem>>, vector<8x4xf32>
    %cst_12 = arith.constant dense<0.000000e+00> : vector<8x144xf32>
    %9 = tpu.matmul %8, %5, %cst_12 {dimension_numbers = #tpu.dot_dimension_numbers<[1], [0], [0], [1], [0, 0, 1, 1], [], []>} : vector<8x4xf32>, vector<4x144xf32>, vector<8x144xf32> -> vector<8x144xf32>
    %10 = arith.addf %7, %9 : vector<8x144xf32>
    %cst_13 = arith.constant 0.000000e+00 : f32
    %11 = vector.broadcast %cst_13 : f32 to vector<8x144xf32>
    %12 = arith.maximumf %10, %11 : vector<8x144xf32>
    %c0_14 = arith.constant 0 : index
    %c0_15 = arith.constant 0 : index
    %13 = vector.load %arg6[%c0_14, %c0_15] : memref<4x8xf32, #tpu.memory_space<vmem>>, vector<4x8xf32>
    %cst_16 = arith.constant dense<0.000000e+00> : vector<4x144xf32>
    %14 = tpu.matmul %13, %12, %cst_16 {dimension_numbers = #tpu.dot_dimension_numbers<[1], [0], [0], [1], [0, 0, 1, 1], [], []>} : vector<4x8xf32>, vector<8x144xf32>, vector<4x144xf32> -> vector<4x144xf32>
    %c0_17 = arith.constant 0 : index
    %c0_18 = arith.constant 0 : index
    %15 = vector.load %arg7[%c0_17, %c0_18] : memref<4x8xf32, #tpu.memory_space<vmem>>, vector<4x8xf32>
    %cst_19 = arith.constant dense<0.000000e+00> : vector<4x144xf32>
    %16 = tpu.matmul %15, %12, %cst_19 {dimension_numbers = #tpu.dot_dimension_numbers<[1], [0], [0], [1], [0, 0, 1, 1], [], []>} : vector<4x8xf32>, vector<8x144xf32>, vector<4x144xf32> -> vector<4x144xf32>
    %c0_20 = arith.constant 0 : index
    %c0_21 = arith.constant 0 : index
    %17 = vector.load %arg8[%c0_20, %c0_21] : memref<144x256xf32, #tpu.memory_space<vmem>>, vector<144x256xf32>
    %cst_22 = arith.constant dense<0.000000e+00> : vector<4x256xf32>
    %18 = tpu.matmul %14, %17, %cst_22 {dimension_numbers = #tpu.dot_dimension_numbers<[1], [0], [0], [1], [0, 0, 1, 1], [], []>, precision = #tpu.contract_precision<fp32>} : vector<4x144xf32>, vector<144x256xf32>, vector<4x256xf32> -> vector<4x256xf32>
    %c0_23 = arith.constant 0 : index
    %c0_24 = arith.constant 0 : index
    %19 = vector.load %arg9[%c0_23, %c0_24] : memref<144x256xf32, #tpu.memory_space<vmem>>, vector<144x256xf32>
    %cst_25 = arith.constant dense<0.000000e+00> : vector<4x256xf32>
    %20 = tpu.matmul %16, %19, %cst_25 {dimension_numbers = #tpu.dot_dimension_numbers<[1], [0], [0], [1], [0, 0, 1, 1], [], []>, precision = #tpu.contract_precision<fp32>} : vector<4x144xf32>, vector<144x256xf32>, vector<4x256xf32> -> vector<4x256xf32>
    %21 = arith.addf %18, %20 : vector<4x256xf32>
    %c0_26 = arith.constant 0 : index
    %c0_27 = arith.constant 0 : index
    %c0_28 = arith.constant 0 : index
    %22 = vector.load %arg10[%c0_26, %c0_27, %c0_28] : memref<1x4x256xf32, #tpu.memory_space<vmem>>, vector<1x4x256xf32>
    %23 = vector.shape_cast %22 : vector<1x4x256xf32> to vector<4x256xf32>
    %24 = vector.shape_cast %21 : vector<4x256xf32> to vector<1x4x256xf32>
    tpu.vector_store %arg10[%c0_26, %c0_27, %c0_28], %24 {strides = array<i32>} : memref<1x4x256xf32, #tpu.memory_space<vmem>>, vector<1x4x256xf32>,
    return
  }
  func.func @transform_0(%arg0: i32) -> (i32, i32, i32) {
    %c0_i32 = arith.constant 0 : i32
    %c0_i32_0 = arith.constant 0 : i32
    %c0_i32_1 = arith.constant 0 : i32
    return %arg0, %c0_i32, %c0_i32_0 : i32, i32, i32
  }
  func.func @transform_1(%arg0: i32) -> (i32, i32) {
    %c0_i32 = arith.constant 0 : i32
    %c0_i32_0 = arith.constant 0 : i32
    %c0_i32_1 = arith.constant 0 : i32
    return %c0_i32, %c0_i32_0 : i32, i32
  }
  func.func @transform_2(%arg0: i32) -> (i32, i32) {
    %c0_i32 = arith.constant 0 : i32
    %c0_i32_0 = arith.constant 0 : i32
    %c0_i32_1 = arith.constant 0 : i32
    return %c0_i32, %c0_i32_0 : i32, i32
  }
  func.func @transform_3(%arg0: i32) -> (i32, i32) {
    %c0_i32 = arith.constant 0 : i32
    %c0_i32_0 = arith.constant 0 : i32
    %c0_i32_1 = arith.constant 0 : i32
    return %c0_i32, %c0_i32_0 : i32, i32
  }
  func.func @transform_4(%arg0: i32) -> (i32, i32) {
    %c0_i32 = arith.constant 0 : i32
    %c0_i32_0 = arith.constant 0 : i32
    %c0_i32_1 = arith.constant 0 : i32
    return %c0_i32, %c0_i32_0 : i32, i32
  }
  func.func @transform_5(%arg0: i32) -> (i32, i32) {
    %c0_i32 = arith.constant 0 : i32
    %c0_i32_0 = arith.constant 0 : i32
    %c0_i32_1 = arith.constant 0 : i32
    return %c0_i32, %c0_i32_0 : i32, i32
  }
  func.func @transform_6(%arg0: i32) -> (i32, i32) {
    %c0_i32 = arith.constant 0 : i32
    %c0_i32_0 = arith.constant 0 : i32
    %c0_i32_1 = arith.constant 0 : i32
    return %c0_i32, %c0_i32_0 : i32, i32
  }
  func.func @transform_7(%arg0: i32) -> (i32, i32) {
    %c0_i32 = arith.constant 0 : i32
    %c0_i32_0 = arith.constant 0 : i32
    %c0_i32_1 = arith.constant 0 : i32
    return %c0_i32, %c0_i32_0 : i32, i32
  }
  func.func @transform_8(%arg0: i32) -> (i32, i32) {
    %c0_i32 = arith.constant 0 : i32
    %c0_i32_0 = arith.constant 0 : i32
    %c0_i32_1 = arith.constant 0 : i32
    return %c0_i32, %c0_i32_0 : i32, i32
  }
  func.func @transform_9(%arg0: i32) -> (i32, i32, i32) {
    %c0_i32 = arith.constant 0 : i32
    %c0_i32_0 = arith.constant 0 : i32
    %c0_i32_1 = arith.constant 0 : i32
    return %arg0, %c0_i32, %c0_i32_0 : i32, i32, i32
  }
}

</mosaic_0001>

<llo_original>
// kernel: tpu_custom_call.1
$region0: #{tpu_custom_call.1}
  #allocation0 [shape = 'u32[]', space=smem, size = 0x4, offset = 0x4, fixed_abs, tag = 'smem constant byte address 0x4 - core index']
  #allocation1 [shape = 'u32[144,128]{1,0:T(1,128)}', space=vmem, size = 0x12000, scoped, tag = 'internal scratch']
  %s0 = inlined_call_operand.vmem [shape: f32[2,4,256], index: 0, kind: input, shape index: {}]
  %s1 = inlined_call_operand.vmem [shape: f32[256,144], index: 1, kind: input, shape index: {}]
  %s2 = inlined_call_operand.vmem [shape: f32[256,144], index: 2, kind: input, shape index: {}]
  %s3 = inlined_call_operand.vmem [shape: f32[8,4], index: 3, kind: input, shape index: {}]
  %s4 = inlined_call_operand.vmem [shape: f32[8,4], index: 4, kind: input, shape index: {}]
  %s5 = inlined_call_operand.vmem [shape: f32[4,8], index: 5, kind: input, shape index: {}]
  %s6 = inlined_call_operand.vmem [shape: f32[4,8], index: 6, kind: input, shape index: {}]
  %s7 = inlined_call_operand.vmem [shape: f32[144,256], index: 7, kind: input, shape index: {}]
  %s8 = inlined_call_operand.vmem [shape: f32[144,256], index: 8, kind: input, shape index: {}]
  %s9 = inlined_call_operand.hbm [shape: f32[2,4,256], index: 9, kind: output, shape index: {}]
  %s10 = sld [smem:[#allocation0]]
  $region69: #{tpu_custom_call.1} parent=0
    _
  %s12 = ssub.s32 1, %s10
  %s13 = scalar_select 0, %s12, %s10
  $region1: #{tpu_custom_call.1} parent=0
    #allocation2 [shape = 'u8[8192]{0}', space=vmem, size = 0x2000, scoped, tag = 'output window, operand 0']
    #allocation3 [shape = 's32[2]{0}', space=sflag, size = 0x8, scoped, tag = 'scoped memory for tpu_custom_call.1']
    %14 = vsyncpa [#allocation3], 0
    %s15 = scalar_lea.sflag [#allocation3], 1
    %16 = vsyncpa %s15, 0
    loop: start=0, step=1, limit=4
    $region2: #{tpu_custom_call.1} parent=1 // loop_pre_header
      _
    $region3: #{tpu_custom_call.1} parent=1 // loop_header
      %s18 = sphi 0, %s22
      %p19 = scmp.ge.s32.totalorder %s18, 4
      %s28 = sphi 0, %s30
      %s31 = sphi 0, %s28
      %s32 = sphi 0, %s31
      %s48 = sphi 0, %s32
      %s52 = sphi 0, %s52
      %s54 = sphi 0, %s52
      %s55 = sphi 0, %s54
      %s69 = sphi 0, %s55
      %s73 = sphi 0, %s73
      %s75 = sphi 0, %s73
      %s76 = sphi 0, %s75
      %s90 = sphi 0, %s76
      %s94 = sphi 0, %s94
      %s96 = sphi 0, %s94
      %s97 = sphi 0, %s96
      %s111 = sphi 0, %s97
      %s115 = sphi 0, %s115
      %s117 = sphi 0, %s115
      %s118 = sphi 0, %s117
      %s132 = sphi 0, %s118
      %s136 = sphi 0, %s136
      %s138 = sphi 0, %s136
      %s139 = sphi 0, %s138
      %s153 = sphi 0, %s139
      %s157 = sphi 0, %s157
      %s159 = sphi 0, %s157
      %s160 = sphi 0, %s159
      %s174 = sphi 0, %s160
      %s178 = sphi 0, %s178
      %s180 = sphi 0, %s178
      %s181 = sphi 0, %s180
      %s195 = sphi 0, %s181
      %s199 = sphi 0, %s199
      %s201 = sphi 0, %s199
      %s202 = sphi 0, %s201
      %s216 = sphi 0, %s202
      %s222 = sphi 0, %s224
      %s225 = sphi 0, %s222
      %s226 = sphi 0, %s225
      %s242 = sphi 0, %s226
    $region4: #{tpu_custom_call.1} parent=1 // loop_header_branch
      %21 = sbr.rel (%p19) target = $region8
    $region5: #{tpu_custom_call.1} parent=1 // loop_body
      %s23 = ssub.s32 %s18, 1
      %s24 = ssub.s32 %s18, 2
      %s25 = sadd.s32 %s18, 1
      %s26 = ssub.s32 %s18, %s25
      %p27 = scmp.eq.s32.totalorder %s26, 0
      %s29 = sadd.s32 %s28, 1
      %s30 = scalar_select %p27, %s28, %s29
      %p33 = pneg %p27
      %p34 = scmp.eq.s32.totalorder %s18, 1
      %p35 = por %p33, %p34
      %p36 = scmp.ne.s32.totalorder %s28, %s31
      %p37 = scmp.eq.s32.totalorder %s18, 0
      %p38 = por %p36, %p37
      %p39 = scmp.ne.s32.totalorder %s28, %s31
      %p40 = scmp.eq.s32.totalorder %s23, 1
      %p41 = por %p39, %p40
      %p42 = scmp.ne.s32.totalorder %s31, %s32
      %p43 = scmp.eq.s32.totalorder %s23, 0
      %p44 = por %p42, %p43
      %p45 = scmp.ne.s32.totalorder %s31, %s32
      %p46 = scmp.eq.s32.totalorder %s24, 1
      %p47 = por %p45, %p46
      %p49 = scmp.ne.s32.totalorder %s32, %s48
      %p50 = scmp.eq.s32.totalorder %s24, 0
      %p51 = por %p49, %p50
      %s53 = sadd.s32 %s52, 1
      %p56 = scmp.eq.s32.totalorder %s18, 1
      %p57 = scmp.ne.s32.totalorder %s52, %s54
      %p58 = scmp.eq.s32.totalorder %s18, 0
      %p59 = por %p57, %p58
      %p60 = scmp.ne.s32.totalorder %s52, %s54
      %p61 = scmp.eq.s32.totalorder %s23, 1
      %p62 = por %p60, %p61
      %p63 = scmp.ne.s32.totalorder %s54, %s55
      %p64 = scmp.eq.s32.totalorder %s23, 0
      %p65 = por %p63, %p64
      %p66 = scmp.ne.s32.totalorder %s54, %s55
      %p67 = scmp.eq.s32.totalorder %s24, 1
      %p68 = por %p66, %p67
      %p70 = scmp.ne.s32.totalorder %s55, %s69
      %p71 = scmp.eq.s32.totalorder %s24, 0
      %p72 = por %p70, %p71
      %s74 = sadd.s32 %s73, 1
      %p77 = scmp.eq.s32.totalorder %s18, 1
      %p78 = scmp.ne.s32.totalorder %s73, %s75
      %p79 = scmp.eq.s32.totalorder %s18, 0
      %p80 = por %p78, %p79
      %p81 = scmp.ne.s32.totalorder %s73, %s75
      %p82 = scmp.eq.s32.totalorder %s23, 1
      %p83 = por %p81, %p82
      %p84 = scmp.ne.s32.totalorder %s75, %s76
      %p85 = scmp.eq.s32.totalorder %s23, 0
      %p86 = por %p84, %p85
      %p87 = scmp.ne.s32.totalorder %s75, %s76
      %p88 = scmp.eq.s32.totalorder %s24, 1
      %p89 = por %p87, %p88
      %p91 = scmp.ne.s32.totalorder %s76, %s90
      %p92 = scmp.eq.s32.totalorder %s24, 0
      %p93 = por %p91, %p92
      %s95 = sadd.s32 %s94, 1
      %p98 = scmp.eq.s32.totalorder %s18, 1
      %p99 = scmp.ne.s32.totalorder %s94, %s96
      %p100 = scmp.eq.s32.totalorder %s18, 0
      %p101 = por %p99, %p100
      %p102 = scmp.ne.s32.totalorder %s94, %s96
      %p103 = scmp.eq.s32.totalorder %s23, 1
      %p104 = por %p102, %p103
      %p105 = scmp.ne.s32.totalorder %s96, %s97
      %p106 = scmp.eq.s32.totalorder %s23, 0
      %p107 = por %p105, %p106
      %p108 = scmp.ne.s32.totalorder %s96, %s97
      %p109 = scmp.eq.s32.totalorder %s24, 1
      %p110 = por %p108, %p109
      %p112 = scmp.ne.s32.totalorder %s97, %s111
      %p113 = scmp.eq.s32.totalorder %s24, 0
      %p114 = por %p112, %p113
      %s116 = sadd.s32 %s115, 1
      %p119 = scmp.eq.s32.totalorder %s18, 1
      %p120 = scmp.ne.s32.totalorder %s115, %s117
      %p121 = scmp.eq.s32.totalorder %s18, 0
      %p122 = por %p120, %p121
      %p123 = scmp.ne.s32.totalorder %s115, %s117
      %p124 = scmp.eq.s32.totalorder %s23, 1
      %p125 = por %p123, %p124
      %p126 = scmp.ne.s32.totalorder %s117, %s118
      %p127 = scmp.eq.s32.totalorder %s23, 0
      %p128 = por %p126, %p127
      %p129 = scmp.ne.s32.totalorder %s117, %s118
      %p130 = scmp.eq.s32.totalorder %s24, 1
      %p131 = por %p129, %p130
      %p133 = scmp.ne.s32.totalorder %s118, %s132
      %p134 = scmp.eq.s32.totalorder %s24, 0
      %p135 = por %p133, %p134
      %s137 = sadd.s32 %s136, 1
      %p140 = scmp.eq.s32.totalorder %s18, 1
      %p141 = scmp.ne.s32.totalorder %s136, %s138
      %p142 = scmp.eq.s32.totalorder %s18, 0
      %p143 = por %p141, %p142
      %p144 = scmp.ne.s32.totalorder %s136, %s138
      %p145 = scmp.eq.s32.totalorder %s23, 1
      %p146 = por %p144, %p145
      %p147 = scmp.ne.s32.totalorder %s138, %s139
      %p148 = scmp.eq.s32.totalorder %s23, 0
      %p149 = por %p147, %p148
      %p150 = scmp.ne.s32.totalorder %s138, %s139
      %p151 = scmp.eq.s32.totalorder %s24, 1
      %p152 = por %p150, %p151
      %p154 = scmp.ne.s32.totalorder %s139, %s153
      %p155 = scmp.eq.s32.totalorder %s24, 0
      %p156 = por %p154, %p155
      %s158 = sadd.s32 %s157, 1
      %p161 = scmp.eq.s32.totalorder %s18, 1
      %p162 = scmp.ne.s32.totalorder %s157, %s159
      %p163 = scmp.eq.s32.totalorder %s18, 0
      %p164 = por %p162, %p163
      %p165 = scmp.ne.s32.totalorder %s157, %s159
      %p166 = scmp.eq.s32.totalorder %s23, 1
      %p167 = por %p165, %p166
      %p168 = scmp.ne.s32.totalorder %s159, %s160
      %p169 = scmp.eq.s32.totalorder %s23, 0
      %p170 = por %p168, %p169
      %p171 = scmp.ne.s32.totalorder %s159, %s160
      %p172 = scmp.eq.s32.totalorder %s24, 1
      %p173 = por %p171, %p172
      %p175 = scmp.ne.s32.totalorder %s160, %s174
      %p176 = scmp.eq.s32.totalorder %s24, 0
      %p177 = por %p175, %p176
      %s179 = sadd.s32 %s178, 1
      %p182 = scmp.eq.s32.totalorder %s18, 1
      %p183 = scmp.ne.s32.totalorder %s178, %s180
      %p184 = scmp.eq.s32.totalorder %s18, 0
      %p185 = por %p183, %p184
      %p186 = scmp.ne.s32.totalorder %s178, %s180
      %p187 = scmp.eq.s32.totalorder %s23, 1
      %p188 = por %p186, %p187
      %p189 = scmp.ne.s32.totalorder %s180, %s181
      %p190 = scmp.eq.s32.totalorder %s23, 0
      %p191 = por %p189, %p190
      %p192 = scmp.ne.s32.totalorder %s180, %s181
      %p193 = scmp.eq.s32.totalorder %s24, 1
      %p194 = por %p192, %p193
      %p196 = scmp.ne.s32.totalorder %s181, %s195
      %p197 = scmp.eq.s32.totalorder %s24, 0
      %p198 = por %p196, %p197
      %s200 = sadd.s32 %s199, 1
      %p203 = scmp.eq.s32.totalorder %s18, 1
      %p204 = scmp.ne.s32.totalorder %s199, %s201
      %p205 = scmp.eq.s32.totalorder %s18, 0
      %p206 = por %p204, %p205
      %p207 = scmp.ne.s32.totalorder %s199, %s201
      %p208 = scmp.eq.s32.totalorder %s23, 1
      %p209 = por %p207, %p208
      %p210 = scmp.ne.s32.totalorder %s201, %s202
      %p211 = scmp.eq.s32.totalorder %s23, 0
      %p212 = por %p210, %p211
      %p213 = scmp.ne.s32.totalorder %s201, %s202
      %p214 = scmp.eq.s32.totalorder %s24, 1
      %p215 = por %p213, %p214
      %p217 = scmp.ne.s32.totalorder %s202, %s216
      %p218 = scmp.eq.s32.totalorder %s24, 0
      %p219 = por %p217, %p218
      %s220 = ssub.s32 %s18, %s25
      %p221 = scmp.eq.s32.totalorder %s220, 0
      %s223 = sadd.s32 %s222, 1
      %s224 = scalar_select %p221, %s222, %s223
      %p227 = pneg %p221
      %p228 = scmp.eq.s32.totalorder %s18, 1
      %p229 = por %p227, %p228
      %p230 = scmp.ne.s32.totalorder %s222, %s225
      %p231 = scmp.eq.s32.totalorder %s18, 0
      %p232 = por %p230, %p231
      %p233 = scmp.ne.s32.totalorder %s222, %s225
      %p234 = scmp.eq.s32.totalorder %s23, 1
      %p235 = por %p233, %p234
      %p236 = scmp.ne.s32.totalorder %s225, %s226
      %p237 = scmp.eq.s32.totalorder %s23, 0
      %p238 = por %p236, %p237
      %p239 = scmp.ne.s32.totalorder %s225, %s226
      %p240 = scmp.eq.s32.totalorder %s24, 1
      %p241 = por %p239, %p240
      %p243 = scmp.ne.s32.totalorder %s226, %s242
      %p244 = scmp.eq.s32.totalorder %s24, 0
      %p245 = por %p243, %p244
      %p246 = scmp.le.s32.totalorder 1, %s18
      %p247 = scmp.lt.s32.totalorder %s18, 3
      %p248 = pnand %p246, %p247
      %p249 = pneg %p248
      // Predicated region
      $region9: #{tpu_custom_call.1} parent=5 // pred_check
        _
      $region10: #{tpu_custom_call.1} parent=5 // pred_check_branch
        %251 = sbr.rel (%p248) target = $region12
      $region11: #{tpu_custom_call.1} parent=5 // pred_region
        %s252 = ssub.s32 %s18, 1
        // Predicated region
        $region13: #{tpu_custom_call.1} parent=11 // pred_check
          %p253 = pneg %p65
        $region14: #{tpu_custom_call.1} parent=11 // pred_check_branch
          %255 = sbr.rel (%p253) target = $region16
        $region15: #{tpu_custom_call.1} parent=11 // pred_region
          _
        $region16: #{tpu_custom_call.1} parent=11 // pred_fallthru
          _
        // Predicated region
        $region17: #{tpu_custom_call.1} parent=11 // pred_check
          %p256 = pneg %p86
        $region18: #{tpu_custom_call.1} parent=11 // pred_check_branch
          %258 = sbr.rel (%p256) target = $region20
        $region19: #{tpu_custom_call.1} parent=11 // pred_region
          _
        $region20: #{tpu_custom_call.1} parent=11 // pred_fallthru
          _
        // Predicated region
        $region21: #{tpu_custom_call.1} parent=11 // pred_check
          %p259 = pneg %p107
        $region22: #{tpu_custom_call.1} parent=11 // pred_check_branch
          %261 = sbr.rel (%p259) target = $region24
        $region23: #{tpu_custom_call.1} parent=11 // pred_region
          _
        $region24: #{tpu_custom_call.1} parent=11 // pred_fallthru
          _
        // Predicated region
        $region25: #{tpu_custom_call.1} parent=11 // pred_check
          %p262 = pneg %p128
        $region26: #{tpu_custom_call.1} parent=11 // pred_check_branch
          %264 = sbr.rel (%p262) target = $region28
        $region27: #{tpu_custom_call.1} parent=11 // pred_region
          _
        $region28: #{tpu_custom_call.1} parent=11 // pred_fallthru
          _
        // Predicated region
        $region29: #{tpu_custom_call.1} parent=11 // pred_check
          %p265 = pneg %p149
        $region30: #{tpu_custom_call.1} parent=11 // pred_check_branch
          %267 = sbr.rel (%p265) target = $region32
        $region31: #{tpu_custom_call.1} parent=11 // pred_region
          _
        $region32: #{tpu_custom_call.1} parent=11 // pred_fallthru
          _
        // Predicated region
        $region33: #{tpu_custom_call.1} parent=11 // pred_check
          %p268 = pneg %p170
        $region34: #{tpu_custom_call.1} parent=11 // pred_check_branch
          %270 = sbr.rel (%p268) target = $region36
        $region35: #{tpu_custom_call.1} parent=11 // pred_region
          _
        $region36: #{tpu_custom_call.1} parent=11 // pred_fallthru
          _
        // Predicated region
        $region37: #{tpu_custom_call.1} parent=11 // pred_check
          %p271 = pneg %p191
        $region38: #{tpu_custom_call.1} parent=11 // pred_check_branch
          %273 = sbr.rel (%p271) target = $region40
        $region39: #{tpu_custom_call.1} parent=11 // pred_region
          _
        $region40: #{tpu_custom_call.1} parent=11 // pred_fallthru
          _
        // Predicated region
        $region41: #{tpu_custom_call.1} parent=11 // pred_check
          %p274 = pneg %p212
        $region42: #{tpu_custom_call.1} parent=11 // pred_check_branch
          %276 = sbr.rel (%p274) target = $region44
        $region43: #{tpu_custom_call.1} parent=11 // pred_region
          _
        $region44: #{tpu_custom_call.1} parent=11 // pred_fallthru
          _
      $region12: #{tpu_custom_call.1} parent=5 // pred_fallthru
        _
      %p277 = scmp.lt.s32.totalorder %s18, 2
      // Predicated region
      $region45: #{tpu_custom_call.1} parent=5 // pred_check
        %p278 = pneg %p277
      $region46: #{tpu_custom_call.1} parent=5 // pred_check_branch
        %280 = sbr.rel (%p278) target = $region48
      $region47: #{tpu_custom_call.1} parent=5 // pred_region
        // Predicated region
        $region49: #{tpu_custom_call.1} parent=47 // pred_check
          %p281 = pneg %p38
        $region50: #{tpu_custom_call.1} parent=47 // pred_check_branch
          %283 = sbr.rel (%p281) target = $region52
        $region51: #{tpu_custom_call.1} parent=47 // pred_region
          %p284 = scmp.lt.s32.totalorder %s18, 1
          %s285 = scalar_select %p284, %s18, 1
          %s286 = smul.addr %s285, 2
          %s287 = smul.addr %s286, 4
          %s288 = scalar_lea.vmem %s0, %s287
        $region52: #{tpu_custom_call.1} parent=47 // pred_fallthru
          _
      $region48: #{tpu_custom_call.1} parent=5 // pred_fallthru
        _
      %p289 = scmp.le.s32.totalorder 1, %s18
      %p290 = scmp.lt.s32.totalorder %s18, 3
      %p291 = pnand %p289, %p290
      %p292 = pneg %p291
      // Predicated region
      $region53: #{tpu_custom_call.1} parent=5 // pred_check
        _
      $region54: #{tpu_custom_call.1} parent=5 // pred_check_branch
        %294 = sbr.rel (%p291) target = $region56
      $region55: #{tpu_custom_call.1} parent=5 // pred_region
        %s295 = ssub.s32 %s18, 1
        %p296 = scmp.lt.s32.totalorder %s23, 1
        %s297 = scalar_select %p296, %s23, 1
        %s298 = smul.addr %s297, 2
        %s299 = smul.addr %s298, 4
        %s300 = scalar_lea.vmem %s0, %s299
        %p301 = pneg %p44
        %p302 = pneg %p41
        %p303 = pneg %p65
        %p304 = pneg %p62
        %p305 = pneg %p86
        %p306 = pneg %p83
        %p307 = pneg %p107
        %p308 = pneg %p104
        %p309 = pneg %p128
        %p310 = pneg %p125
        %p311 = pneg %p149
        %p312 = pneg %p146
        %p313 = pneg %p170
        %p314 = pneg %p167
        %p315 = pneg %p191
        %p316 = pneg %p188
        %p317 = pneg %p212
        %p318 = pneg %p209
        %p319 = pneg %p238
        %p320 = pneg %p235
        %s321 = sand.u32 %s225, 1
        %s322 = scalar_lea.sflag [#allocation3], %s321
        %s323 = sand.u32 %s225, 1
        %s324 = smul.addr %s323, 8
        %s325 = scalar_lea.vmem [#allocation2], %s324
        %p326 = scmp.lt.s32.totalorder %s23, 1
        %s327 = scalar_select %p326, %s23, 1
        %s328 = smul.addr %s327, 2
        %s329 = smul.addr %s328, 4
        %s330 = scalar_lea.vmem %s0, %s329
        %v331 = vld [vmem:[%s330] sm:$0xff]
        %v332 = vld [vmem:[%s1] sm:$0xff]
        %v333 = vld [vmem:[%s1 + $0x8] sm:$0xff]
        %v334 = vld [vmem:[%s1 + $0x10] sm:$0xff]
        %v335 = vld [vmem:[%s1 + $0x18] sm:$0xff]
        %v336 = vld [vmem:[%s1 + $0x20] sm:$0xff]
        %v337 = vld [vmem:[%s1 + $0x28] sm:$0xff]
        %v338 = vld [vmem:[%s1 + $0x30] sm:$0xff]
        %v339 = vld [vmem:[%s1 + $0x38] sm:$0xff]
        %v340 = vld [vmem:[%s1 + $0x40] sm:$0xff]
        %v341 = vld [vmem:[%s1 + $0x48] sm:$0xff]
        %v342 = vld [vmem:[%s1 + $0x50] sm:$0xff]
        %v343 = vld [vmem:[%s1 + $0x58] sm:$0xff]
        %v344 = vld [vmem:[%s1 + $0x60] sm:$0xff]
        %v345 = vld [vmem:[%s1 + $0x68] sm:$0xff]
        %v346 = vld [vmem:[%s1 + $0x70] sm:$0xff]
        %v347 = vld [vmem:[%s1 + $0x78] sm:$0xff]
        %v348 = vld [vmem:[%s1 + $0x80] sm:$0xff]
        %v349 = vld [vmem:[%s1 + $0x88] sm:$0xff]
        %v350 = vld [vmem:[%s1 + $0x90] sm:$0xff]
        %v351 = vld [vmem:[%s1 + $0x98] sm:$0xff]
        %v352 = vld [vmem:[%s1 + $0xa0] sm:$0xff]
        %v353 = vld [vmem:[%s1 + $0xa8] sm:$0xff]
        %v354 = vld [vmem:[%s1 + $0xb0] sm:$0xff]
        %v355 = vld [vmem:[%s1 + $0xb8] sm:$0xff]
        %v356 = vld [vmem:[%s1 + $0xc0] sm:$0xff]
        %v357 = vld [vmem:[%s1 + $0xc8] sm:$0xff]
        %v358 = vld [vmem:[%s1 + $0xd0] sm:$0xff]
        %v359 = vld [vmem:[%s1 + $0xd8] sm:$0xff]
        %v360 = vld [vmem:[%s1 + $0xe0] sm:$0xff]
        %v361 = vld [vmem:[%s1 + $0xe8] sm:$0xff]
        %v362 = vld [vmem:[%s1 + $0xf0] sm:$0xff]
        %v363 = vld [vmem:[%s1 + $0xf8] sm:$0xff]
        %v364 = vld [vmem:[%s1 + $0x100] sm:$0xff]
        %v365 = vld [vmem:[%s1 + $0x108] sm:$0xff]
        %v366 = vld [vmem:[%s1 + $0x110] sm:$0xff]
        %v367 = vld [vmem:[%s1 + $0x118] sm:$0xff]
        %v368 = vld [vmem:[%s1 + $0x120] sm:$0xff]
        %v369 = vld [vmem:[%s1 + $0x128] sm:$0xff]
        %v370 = vld [vmem:[%s1 + $0x130] sm:$0xff]
        %v371 = vld [vmem:[%s1 + $0x138] sm:$0xff]
        %v372 = vld [vmem:[%s1 + $0x140] sm:$0xff]
        %v373 = vld [vmem:[%s1 + $0x148] sm:$0xff]
        %v374 = vld [vmem:[%s1 + $0x150] sm:$0xff]
        %v375 = vld [vmem:[%s1 + $0x158] sm:$0xff]
        %v376 = vld [vmem:[%s1 + $0x160] sm:$0xff]
        %v377 = vld [vmem:[%s1 + $0x168] sm:$0xff]
        %v378 = vld [vmem:[%s1 + $0x170] sm:$0xff]
        %v379 = vld [vmem:[%s1 + $0x178] sm:$0xff]
        %v380 = vld [vmem:[%s1 + $0x180] sm:$0xff]
        %v381 = vld [vmem:[%s1 + $0x188] sm:$0xff]
        %v382 = vld [vmem:[%s1 + $0x190] sm:$0xff]
        %v383 = vld [vmem:[%s1 + $0x198] sm:$0xff]
        %v384 = vld [vmem:[%s1 + $0x1a0] sm:$0xff]
        %v385 = vld [vmem:[%s1 + $0x1a8] sm:$0xff]
        %v386 = vld [vmem:[%s1 + $0x1b0] sm:$0xff]
        %v387 = vld [vmem:[%s1 + $0x1b8] sm:$0xff]
        %v388 = vld [vmem:[%s1 + $0x1c0] sm:$0xff]
        %v389 = vld [vmem:[%s1 + $0x1c8] sm:$0xff]
        %v390 = vld [vmem:[%s1 + $0x1d0] sm:$0xff]
        %v391 = vld [vmem:[%s1 + $0x1d8] sm:$0xff]
        %v392 = vld [vmem:[%s1 + $0x1e0] sm:$0xff]
        %v393 = vld [vmem:[%s1 + $0x1e8] sm:$0xff]
        %v394 = vld [vmem:[%s1 + $0x1f0] sm:$0xff]
        %v395 = vld [vmem:[%s1 + $0x1f8] sm:$0xff]
        %v397 = vcombine.high %v331, %v331
        %v399 = vand.u32 %v333, 4294901760
        %400 = vmatprep.subr.mxu0 %v399
        %v401 = vand.u32 %v332, 4294901760
        %402 = vmatpush1.msra.mxu0 %v401
        %v403 = vand.u32 %v335, 4294901760
        %404 = vmatprep.subr.mxu0 %v403
        %v405 = vand.u32 %v334, 4294901760
        %406 = vmatpush1.msra.mxu0 %v405
        %v407 = vand.u32 %v337, 4294901760
        %408 = vmatprep.subr.mxu0 %v407
        %v409 = vand.u32 %v336, 4294901760
        %410 = vmatpush1.msra.mxu0 %v409
        %v411 = vand.u32 %v339, 4294901760
        %412 = vmatprep.subr.mxu0 %v411
        %v413 = vand.u32 %v338, 4294901760
        %414 = vmatpush1.msra.mxu0 %v413
        %v415 = vand.u32 %v341, 4294901760
        %416 = vmatprep.subr.mxu0 %v415
        %v417 = vand.u32 %v340, 4294901760
        %418 = vmatpush1.msra.mxu0 %v417
        %v419 = vand.u32 %v343, 4294901760
        %420 = vmatprep.subr.mxu0 %v419
        %v421 = vand.u32 %v342, 4294901760
        %422 = vmatpush1.msra.mxu0 %v421
        %v423 = vand.u32 %v345, 4294901760
        %424 = vmatprep.subr.mxu0 %v423
        %v425 = vand.u32 %v344, 4294901760
        %426 = vmatpush1.msra.mxu0 %v425
        %v427 = vand.u32 %v347, 4294901760
        %428 = vmatprep.subr.mxu0 %v427
        %v429 = vand.u32 %v346, 4294901760
        %430 = vmatpush1.msra.mxu0 %v429
        %v431 = vand.u32 %v349, 4294901760
        %432 = vmatprep.subr.mxu0 %v431
        %v433 = vand.u32 %v348, 4294901760
        %434 = vmatpush1.msra.mxu0 %v433
        %v435 = vand.u32 %v351, 4294901760
        %436 = vmatprep.subr.mxu0 %v435
        %v437 = vand.u32 %v350, 4294901760
        %438 = vmatpush1.msra.mxu0 %v437
        %v439 = vand.u32 %v353, 4294901760
        %440 = vmatprep.subr.mxu0 %v439
        %v441 = vand.u32 %v352, 4294901760
        %442 = vmatpush1.msra.mxu0 %v441
        %v443 = vand.u32 %v355, 4294901760
        %444 = vmatprep.subr.mxu0 %v443
        %v445 = vand.u32 %v354, 4294901760
        %446 = vmatpush1.msra.mxu0 %v445
        %v447 = vand.u32 %v357, 4294901760
        %448 = vmatprep.subr.mxu0 %v447
        %v449 = vand.u32 %v356, 4294901760
        %450 = vmatpush1.msra.mxu0 %v449
        %v451 = vand.u32 %v359, 4294901760
        %452 = vmatprep.subr.mxu0 %v451
        %v453 = vand.u32 %v358, 4294901760
        %454 = vmatpush1.msra.mxu0 %v453
        %v455 = vand.u32 %v361, 4294901760
        %456 = vmatprep.subr.mxu0 %v455
        %v457 = vand.u32 %v360, 4294901760
        %458 = vmatpush1.msra.mxu0 %v457
        %v459 = vand.u32 %v363, 4294901760
        %460 = vmatprep.subr.mxu0 %v459
        %v461 = vand.u32 %v362, 4294901760
        %462 = vmatpush1.msra.mxu0 %v461
        %v463 = vand.u32 %v365, 4294901760
        %464 = vmatprep.subr.mxu0 %v463
        %v465 = vand.u32 %v364, 4294901760
        %466 = vmatpush1.msra.mxu0 %v465
        %v467 = vand.u32 %v367, 4294901760
        %468 = vmatprep.subr.mxu0 %v467
        %v469 = vand.u32 %v366, 4294901760
        %470 = vmatpush1.msra.mxu0 %v469
        %v471 = vand.u32 %v369, 4294901760
        %472 = vmatprep.subr.mxu0 %v471
        %v473 = vand.u32 %v368, 4294901760
        %474 = vmatpush1.msra.mxu0 %v473
        %v475 = vand.u32 %v371, 4294901760
        %476 = vmatprep.subr.mxu0 %v475
        %v477 = vand.u32 %v370, 4294901760
        %478 = vmatpush1.msra.mxu0 %v477
        %v479 = vand.u32 %v373, 4294901760
        %480 = vmatprep.subr.mxu0 %v479
        %v481 = vand.u32 %v372, 4294901760
        %482 = vmatpush1.msra.mxu0 %v481
        %v483 = vand.u32 %v375, 4294901760
        %484 = vmatprep.subr.mxu0 %v483
        %v485 = vand.u32 %v374, 4294901760
        %486 = vmatpush1.msra.mxu0 %v485
        %v487 = vand.u32 %v377, 4294901760
        %488 = vmatprep.subr.mxu0 %v487
        %v489 = vand.u32 %v376, 4294901760
        %490 = vmatpush1.msra.mxu0 %v489
        %v491 = vand.u32 %v379, 4294901760
        %492 = vmatprep.subr.mxu0 %v491
        %v493 = vand.u32 %v378, 4294901760
        %494 = vmatpush1.msra.mxu0 %v493
        %v495 = vand.u32 %v381, 4294901760
        %496 = vmatprep.subr.mxu0 %v495
        %v497 = vand.u32 %v380, 4294901760
        %498 = vmatpush1.msra.mxu0 %v497
        %v499 = vand.u32 %v383, 4294901760
        %500 = vmatprep.subr.mxu0 %v499
        %v501 = vand.u32 %v382, 4294901760
        %502 = vmatpush1.msra.mxu0 %v501
        %v503 = vand.u32 %v385, 4294901760
        %504 = vmatprep.subr.mxu0 %v503
        %v505 = vand.u32 %v384, 4294901760
        %506 = vmatpush1.msra.mxu0 %v505
        %v507 = vand.u32 %v387, 4294901760
        %508 = vmatprep.subr.mxu0 %v507
        %v509 = vand.u32 %v386, 4294901760
        %510 = vmatpush1.msra.mxu0 %v509
        %v511 = vand.u32 %v389, 4294901760
        %512 = vmatprep.subr.mxu0 %v511
        %v513 = vand.u32 %v388, 4294901760
        %514 = vmatpush1.msra.mxu0 %v513
        %v515 = vand.u32 %v391, 4294901760
        %516 = vmatprep.subr.mxu0 %v515
        %v517 = vand.u32 %v390, 4294901760
        %518 = vmatpush1.msra.mxu0 %v517
        %v519 = vand.u32 %v393, 4294901760
        %520 = vmatprep.subr.mxu0 %v519
        %v521 = vand.u32 %v392, 4294901760
        %522 = vmatpush1.msra.mxu0 %v521
        %v523 = vand.u32 %v395, 4294901760
        %524 = vmatprep.subr.mxu0 %v523
        %v525 = vand.u32 %v394, 4294901760
        %526 = vmatpush1.msra.mxu0 %v525
        %v527 = vand.u32 %v397, 4294901760
        %v528 = vsub.f32 %v397, %v527
        %v529 = vand.u32 %v528, 4294901760
        %v530 = vsub.f32 %v528, %v529
        %v531 = vand.u32 %v530, 4294901760
        %532 = vmatprep.mubr.f32.mxu0 %v531
        %v533 = vand.u32 %v331, 4294901760
        %v534 = vsub.f32 %v331, %v533
        %v535 = vand.u32 %v534, 4294901760
        %v536 = vsub.f32 %v534, %v535
        %v537 = vand.u32 %v536, 4294901760
        %538 = vmatmul.mubr.f32.gmra.mrb[0].mxu0 %v537
        %v539 = vpop.f32.mrb[0].mxu0
        %v540 = vadd.f32 0.0, %v539
        %v541 = vpop.f32.mrb[0].mxu0
        %v542 = vadd.f32 0.0, %v541
        %543 = vdwg.mxu0
        %v544 = vand.u32 %v333, 4294901760
        %v545 = vsub.f32 %v333, %v544
        %v546 = vand.u32 %v545, 4294901760
        %v547 = vsub.f32 %v545, %v546
        %v548 = vand.u32 %v547, 4294901760
        %549 = vmatprep.subr.mxu0 %v548
        %v550 = vand.u32 %v332, 4294901760
        %v551 = vsub.f32 %v332, %v550
        %v552 = vand.u32 %v551, 4294901760
        %v553 = vsub.f32 %v551, %v552
        %v554 = vand.u32 %v553, 4294901760
        %555 = vmatpush1.msra.mxu0 %v554
        %v556 = vand.u32 %v335, 4294901760
        %v557 = vsub.f32 %v335, %v556
        %v558 = vand.u32 %v557, 4294901760
        %v559 = vsub.f32 %v557, %v558
        %v560 = vand.u32 %v559, 4294901760
        %561 = vmatprep.subr.mxu0 %v560
        %v562 = vand.u32 %v334, 4294901760
        %v563 = vsub.f32 %v334, %v562
        %v564 = vand.u32 %v563, 4294901760
        %v565 = vsub.f32 %v563, %v564
        %v566 = vand.u32 %v565, 4294901760
        %567 = vmatpush1.msra.mxu0 %v566
        %v568 = vand.u32 %v337, 4294901760
        %v569 = vsub.f32 %v337, %v568
        %v570 = vand.u32 %v569, 4294901760
        %v571 = vsub.f32 %v569, %v570
        %v572 = vand.u32 %v571, 4294901760
        %573 = vmatprep.subr.mxu0 %v572
        %v574 = vand.u32 %v336, 4294901760
        %v575 = vsub.f32 %v336, %v574
        %v576 = vand.u32 %v575, 4294901760
        %v577 = vsub.f32 %v575, %v576
        %v578 = vand.u32 %v577, 4294901760
        %579 = vmatpush1.msra.mxu0 %v578
        %v580 = vand.u32 %v339, 4294901760
        %v581 = vsub.f32 %v339, %v580
        %v582 = vand.u32 %v581, 4294901760
        %v583 = vsub.f32 %v581, %v582
        %v584 = vand.u32 %v583, 4294901760
        %585 = vmatprep.subr.mxu0 %v584
        %v586 = vand.u32 %v338, 4294901760
        %v587 = vsub.f32 %v338, %v586
        %v588 = vand.u32 %v587, 4294901760
        %v589 = vsub.f32 %v587, %v588
        %v590 = vand.u32 %v589, 4294901760
        %591 = vmatpush1.msra.mxu0 %v590
        %v592 = vand.u32 %v341, 4294901760
        %v593 = vsub.f32 %v341, %v592
        %v594 = vand.u32 %v593, 4294901760
        %v595 = vsub.f32 %v593, %v594
        %v596 = vand.u32 %v595, 4294901760
        %597 = vmatprep.subr.mxu0 %v596
        %v598 = vand.u32 %v340, 4294901760
        %v599 = vsub.f32 %v340, %v598
        %v600 = vand.u32 %v599, 4294901760
        %v601 = vsub.f32 %v599, %v600
        %v602 = vand.u32 %v601, 4294901760
        %603 = vmatpush1.msra.mxu0 %v602
        %v604 = vand.u32 %v343, 4294901760
        %v605 = vsub.f32 %v343, %v604
        %v606 = vand.u32 %v605, 4294901760
        %v607 = vsub.f32 %v605, %v606
        %v608 = vand.u32 %v607, 4294901760
        %609 = vmatprep.subr.mxu0 %v608
        %v610 = vand.u32 %v342, 4294901760
        %v611 = vsub.f32 %v342, %v610
        %v612 = vand.u32 %v611, 4294901760
        %v613 = vsub.f32 %v611, %v612
        %v614 = vand.u32 %v613, 4294901760
        %615 = vmatpush1.msra.mxu0 %v614
        %v616 = vand.u32 %v345, 4294901760
        %v617 = vsub.f32 %v345, %v616
        %v618 = vand.u32 %v617, 4294901760
        %v619 = vsub.f32 %v617, %v618
        %v620 = vand.u32 %v619, 4294901760
        %621 = vmatprep.subr.mxu0 %v620
        %v622 = vand.u32 %v344, 4294901760
        %v623 = vsub.f32 %v344, %v622
        %v624 = vand.u32 %v623, 4294901760
        %v625 = vsub.f32 %v623, %v624
        %v626 = vand.u32 %v625, 4294901760
        %627 = vmatpush1.msra.mxu0 %v626
        %v628 = vand.u32 %v347, 4294901760
        %v629 = vsub.f32 %v347, %v628
        %v630 = vand.u32 %v629, 4294901760
        %v631 = vsub.f32 %v629, %v630
        %v632 = vand.u32 %v631, 4294901760
        %633 = vmatprep.subr.mxu0 %v632
        %v634 = vand.u32 %v346, 4294901760
        %v635 = vsub.f32 %v346, %v634
        %v636 = vand.u32 %v635, 4294901760
        %v637 = vsub.f32 %v635, %v636
        %v638 = vand.u32 %v637, 4294901760
        %639 = vmatpush1.msra.mxu0 %v638
        %v640 = vand.u32 %v349, 4294901760
        %v641 = vsub.f32 %v349, %v640
        %v642 = vand.u32 %v641, 4294901760
        %v643 = vsub.f32 %v641, %v642
        %v644 = vand.u32 %v643, 4294901760
        %645 = vmatprep.subr.mxu0 %v644
        %v646 = vand.u32 %v348, 4294901760
        %v647 = vsub.f32 %v348, %v646
        %v648 = vand.u32 %v647, 4294901760
        %v649 = vsub.f32 %v647, %v648
        %v650 = vand.u32 %v649, 4294901760
        %651 = vmatpush1.msra.mxu0 %v650
        %v652 = vand.u32 %v351, 4294901760
        %v653 = vsub.f32 %v351, %v652
        %v654 = vand.u32 %v653, 4294901760
        %v655 = vsub.f32 %v653, %v654
        %v656 = vand.u32 %v655, 4294901760
        %657 = vmatprep.subr.mxu0 %v656
        %v658 = vand.u32 %v350, 4294901760
        %v659 = vsub.f32 %v350, %v658
        %v660 = vand.u32 %v659, 4294901760
        %v661 = vsub.f32 %v659, %v660
        %v662 = vand.u32 %v661, 4294901760
        %663 = vmatpush1.msra.mxu0 %v662
        %v664 = vand.u32 %v353, 4294901760
        %v665 = vsub.f32 %v353, %v664
        %v666 = vand.u32 %v665, 4294901760
        %v667 = vsub.f32 %v665, %v666
        %v668 = vand.u32 %v667, 4294901760
        %669 = vmatprep.subr.mxu0 %v668
        %v670 = vand.u32 %v352, 4294901760
        %v671 = vsub.f32 %v352, %v670
        %v672 = vand.u32 %v671, 4294901760
        %v673 = vsub.f32 %v671, %v672
        %v674 = vand.u32 %v673, 4294901760
        %675 = vmatpush1.msra.mxu0 %v674
        %v676 = vand.u32 %v355, 4294901760
        %v677 = vsub.f32 %v355, %v676
        %v678 = vand.u32 %v677, 4294901760
        %v679 = vsub.f32 %v677, %v678
        %v680 = vand.u32 %v679, 4294901760
        %681 = vmatprep.subr.mxu0 %v680
        %v682 = vand.u32 %v354, 4294901760
        %v683 = vsub.f32 %v354, %v682
        %v684 = vand.u32 %v683, 4294901760
        %v685 = vsub.f32 %v683, %v684
        %v686 = vand.u32 %v685, 4294901760
        %687 = vmatpush1.msra.mxu0 %v686
        %v688 = vand.u32 %v357, 4294901760
        %v689 = vsub.f32 %v357, %v688
        %v690 = vand.u32 %v689, 4294901760
        %v691 = vsub.f32 %v689, %v690
        %v692 = vand.u32 %v691, 4294901760
        %693 = vmatprep.subr.mxu0 %v692
        %v694 = vand.u32 %v356, 4294901760
        %v695 = vsub.f32 %v356, %v694
        %v696 = vand.u32 %v695, 4294901760
        %v697 = vsub.f32 %v695, %v696
        %v698 = vand.u32 %v697, 4294901760
        %699 = vmatpush1.msra.mxu0 %v698
        %v700 = vand.u32 %v359, 4294901760
        %v701 = vsub.f32 %v359, %v700
        %v702 = vand.u32 %v701, 4294901760
        %v703 = vsub.f32 %v701, %v702
        %v704 = vand.u32 %v703, 4294901760
        %705 = vmatprep.subr.mxu0 %v704
        %v706 = vand.u32 %v358, 4294901760
        %v707 = vsub.f32 %v358, %v706
        %v708 = vand.u32 %v707, 4294901760
        %v709 = vsub.f32 %v707, %v708
        %v710 = vand.u32 %v709, 4294901760
        %711 = vmatpush1.msra.mxu0 %v710
        %v712 = vand.u32 %v361, 4294901760
        %v713 = vsub.f32 %v361, %v712
        %v714 = vand.u32 %v713, 4294901760
        %v715 = vsub.f32 %v713, %v714
        %v716 = vand.u32 %v715, 4294901760
        %717 = vmatprep.subr.mxu0 %v716
        %v718 = vand.u32 %v360, 4294901760
        %v719 = vsub.f32 %v360, %v718
        %v720 = vand.u32 %v719, 4294901760
        %v721 = vsub.f32 %v719, %v720
        %v722 = vand.u32 %v721, 4294901760
        %723 = vmatpush1.msra.mxu0 %v722
        %v724 = vand.u32 %v363, 4294901760
        %v725 = vsub.f32 %v363, %v724
        %v726 = vand.u32 %v725, 4294901760
        %v727 = vsub.f32 %v725, %v726
        %v728 = vand.u32 %v727, 4294901760
        %729 = vmatprep.subr.mxu0 %v728
        %v730 = vand.u32 %v362, 4294901760
        %v731 = vsub.f32 %v362, %v730
        %v732 = vand.u32 %v731, 4294901760
        %v733 = vsub.f32 %v731, %v732
        %v734 = vand.u32 %v733, 4294901760
        %735 = vmatpush1.msra.mxu0 %v734
        %v736 = vand.u32 %v365, 4294901760
        %v737 = vsub.f32 %v365, %v736
        %v738 = vand.u32 %v737, 4294901760
        %v739 = vsub.f32 %v737, %v738
        %v740 = vand.u32 %v739, 4294901760
        %741 = vmatprep.subr.mxu0 %v740
        %v742 = vand.u32 %v364, 4294901760
        %v743 = vsub.f32 %v364, %v742
        %v744 = vand.u32 %v743, 4294901760
        %v745 = vsub.f32 %v743, %v744
        %v746 = vand.u32 %v745, 4294901760
        %747 = vmatpush1.msra.mxu0 %v746
        %v748 = vand.u32 %v367, 4294901760
        %v749 = vsub.f32 %v367, %v748
        %v750 = vand.u32 %v749, 4294901760
        %v751 = vsub.f32 %v749, %v750
        %v752 = vand.u32 %v751, 4294901760
        %753 = vmatprep.subr.mxu0 %v752
        %v754 = vand.u32 %v366, 4294901760
        %v755 = vsub.f32 %v366, %v754
        %v756 = vand.u32 %v755, 4294901760
        %v757 = vsub.f32 %v755, %v756
        %v758 = vand.u32 %v757, 4294901760
        %759 = vmatpush1.msra.mxu0 %v758
        %v760 = vand.u32 %v369, 4294901760
        %v761 = vsub.f32 %v369, %v760
        %v762 = vand.u32 %v761, 4294901760
        %v763 = vsub.f32 %v761, %v762
        %v764 = vand.u32 %v763, 4294901760
        %765 = vmatprep.subr.mxu0 %v764
        %v766 = vand.u32 %v368, 4294901760
        %v767 = vsub.f32 %v368, %v766
        %v768 = vand.u32 %v767, 4294901760
        %v769 = vsub.f32 %v767, %v768
        %v770 = vand.u32 %v769, 4294901760
        %771 = vmatpush1.msra.mxu0 %v770
        %v772 = vand.u32 %v371, 4294901760
        %v773 = vsub.f32 %v371, %v772
        %v774 = vand.u32 %v773, 4294901760
        %v775 = vsub.f32 %v773, %v774
        %v776 = vand.u32 %v775, 4294901760
        %777 = vmatprep.subr.mxu0 %v776
        %v778 = vand.u32 %v370, 4294901760
        %v779 = vsub.f32 %v370, %v778
        %v780 = vand.u32 %v779, 4294901760
        %v781 = vsub.f32 %v779, %v780
        %v782 = vand.u32 %v781, 4294901760
        %783 = vmatpush1.msra.mxu0 %v782
        %v784 = vand.u32 %v373, 4294901760
        %v785 = vsub.f32 %v373, %v784
        %v786 = vand.u32 %v785, 4294901760
        %v787 = vsub.f32 %v785, %v786
        %v788 = vand.u32 %v787, 4294901760
        %789 = vmatprep.subr.mxu0 %v788
        %v790 = vand.u32 %v372, 4294901760
        %v791 = vsub.f32 %v372, %v790
        %v792 = vand.u32 %v791, 4294901760
        %v793 = vsub.f32 %v791, %v792
        %v794 = vand.u32 %v793, 4294901760
        %795 = vmatpush1.msra.mxu0 %v794
        %v796 = vand.u32 %v375, 4294901760
        %v797 = vsub.f32 %v375, %v796
        %v798 = vand.u32 %v797, 4294901760
        %v799 = vsub.f32 %v797, %v798
        %v800 = vand.u32 %v799, 4294901760
        %801 = vmatprep.subr.mxu0 %v800
        %v802 = vand.u32 %v374, 4294901760
        %v803 = vsub.f32 %v374, %v802
        %v804 = vand.u32 %v803, 4294901760
        %v805 = vsub.f32 %v803, %v804
        %v806 = vand.u32 %v805, 4294901760
        %807 = vmatpush1.msra.mxu0 %v806
        %v808 = vand.u32 %v377, 4294901760
        %v809 = vsub.f32 %v377, %v808
        %v810 = vand.u32 %v809, 4294901760
        %v811 = vsub.f32 %v809, %v810
        %v812 = vand.u32 %v811, 4294901760
        %813 = vmatprep.subr.mxu0 %v812
        %v814 = vand.u32 %v376, 4294901760
        %v815 = vsub.f32 %v376, %v814
        %v816 = vand.u32 %v815, 4294901760
        %v817 = vsub.f32 %v815, %v816
        %v818 = vand.u32 %v817, 4294901760
        %819 = vmatpush1.msra.mxu0 %v818
        %v820 = vand.u32 %v379, 4294901760
        %v821 = vsub.f32 %v379, %v820
        %v822 = vand.u32 %v821, 4294901760
        %v823 = vsub.f32 %v821, %v822
        %v824 = vand.u32 %v823, 4294901760
        %825 = vmatprep.subr.mxu0 %v824
        %v826 = vand.u32 %v378, 4294901760
        %v827 = vsub.f32 %v378, %v826
        %v828 = vand.u32 %v827, 4294901760
        %v829 = vsub.f32 %v827, %v828
        %v830 = vand.u32 %v829, 4294901760
        %831 = vmatpush1.msra.mxu0 %v830
        %v832 = vand.u32 %v381, 4294901760
        %v833 = vsub.f32 %v381, %v832
        %v834 = vand.u32 %v833, 4294901760
        %v835 = vsub.f32 %v833, %v834
        %v836 = vand.u32 %v835, 4294901760
        %837 = vmatprep.subr.mxu0 %v836
        %v838 = vand.u32 %v380, 4294901760
        %v839 = vsub.f32 %v380, %v838
        %v840 = vand.u32 %v839, 4294901760
        %v841 = vsub.f32 %v839, %v840
        %v842 = vand.u32 %v841, 4294901760
        %843 = vmatpush1.msra.mxu0 %v842
        %v844 = vand.u32 %v383, 4294901760
        %v845 = vsub.f32 %v383, %v844
        %v846 = vand.u32 %v845, 4294901760
        %v847 = vsub.f32 %v845, %v846
        %v848 = vand.u32 %v847, 4294901760
        %849 = vmatprep.subr.mxu0 %v848
        %v850 = vand.u32 %v382, 4294901760
        %v851 = vsub.f32 %v382, %v850
        %v852 = vand.u32 %v851, 4294901760
        %v853 = vsub.f32 %v851, %v852
        %v854 = vand.u32 %v853, 4294901760
        %855 = vmatpush1.msra.mxu0 %v854
        %v856 = vand.u32 %v385, 4294901760
        %v857 = vsub.f32 %v385, %v856
        %v858 = vand.u32 %v857, 4294901760
        %v859 = vsub.f32 %v857, %v858
        %v860 = vand.u32 %v859, 4294901760
        %861 = vmatprep.subr.mxu0 %v860
        %v862 = vand.u32 %v384, 4294901760
        %v863 = vsub.f32 %v384, %v862
        %v864 = vand.u32 %v863, 4294901760
        %v865 = vsub.f32 %v863, %v864
        %v866 = vand.u32 %v865, 4294901760
        %867 = vmatpush1.msra.mxu0 %v866
        %v868 = vand.u32 %v387, 4294901760
        %v869 = vsub.f32 %v387, %v868
        %v870 = vand.u32 %v869, 4294901760
        %v871 = vsub.f32 %v869, %v870
        %v872 = vand.u32 %v871, 4294901760
        %873 = vmatprep.subr.mxu0 %v872
        %v874 = vand.u32 %v386, 4294901760
        %v875 = vsub.f32 %v386, %v874
        %v876 = vand.u32 %v875, 4294901760
        %v877 = vsub.f32 %v875, %v876
        %v878 = vand.u32 %v877, 4294901760
        %879 = vmatpush1.msra.mxu0 %v878
        %v880 = vand.u32 %v389, 4294901760
        %v881 = vsub.f32 %v389, %v880
        %v882 = vand.u32 %v881, 4294901760
        %v883 = vsub.f32 %v881, %v882
        %v884 = vand.u32 %v883, 4294901760
        %885 = vmatprep.subr.mxu0 %v884
        %v886 = vand.u32 %v388, 4294901760
        %v887 = vsub.f32 %v388, %v886
        %v888 = vand.u32 %v887, 4294901760
        %v889 = vsub.f32 %v887, %v888
        %v890 = vand.u32 %v889, 4294901760
        %891 = vmatpush1.msra.mxu0 %v890
        %v892 = vand.u32 %v391, 4294901760
        %v893 = vsub.f32 %v391, %v892
        %v894 = vand.u32 %v893, 4294901760
        %v895 = vsub.f32 %v893, %v894
        %v896 = vand.u32 %v895, 4294901760
        %897 = vmatprep.subr.mxu0 %v896
        %v898 = vand.u32 %v390, 4294901760
        %v899 = vsub.f32 %v390, %v898
        %v900 = vand.u32 %v899, 4294901760
        %v901 = vsub.f32 %v899, %v900
        %v902 = vand.u32 %v901, 4294901760
        %903 = vmatpush1.msra.mxu0 %v902
        %v904 = vand.u32 %v393, 4294901760
        %v905 = vsub.f32 %v393, %v904
        %v906 = vand.u32 %v905, 4294901760
        %v907 = vsub.f32 %v905, %v906
        %v908 = vand.u32 %v907, 4294901760
        %909 = vmatprep.subr.mxu0 %v908
        %v910 = vand.u32 %v392, 4294901760
        %v911 = vsub.f32 %v392, %v910
        %v912 = vand.u32 %v911, 4294901760
        %v913 = vsub.f32 %v911, %v912
        %v914 = vand.u32 %v913, 4294901760
        %915 = vmatpush1.msra.mxu0 %v914
        %v916 = vand.u32 %v395, 4294901760
        %v917 = vsub.f32 %v395, %v916
        %v918 = vand.u32 %v917, 4294901760
        %v919 = vsub.f32 %v917, %v918
        %v920 = vand.u32 %v919, 4294901760
        %921 = vmatprep.subr.mxu0 %v920
        %v922 = vand.u32 %v394, 4294901760
        %v923 = vsub.f32 %v394, %v922
        %v924 = vand.u32 %v923, 4294901760
        %v925 = vsub.f32 %v923, %v924
        %v926 = vand.u32 %v925, 4294901760
        %927 = vmatpush1.msra.mxu0 %v926
        %v928 = vand.u32 %v397, 4294901760
        %929 = vmatprep.mubr.f32.mxu0 %v928
        %v930 = vand.u32 %v331, 4294901760
        %931 = vmatmul.mubr.f32.gmra.mrb[0].mxu0 %v930
        %v932 = vpop.f32.mrb[0].mxu0
        %v933 = vadd.f32 %v540, %v932
        %v934 = vpop.f32.mrb[0].mxu0
        %v935 = vadd.f32 %v542, %v934
        %936 = vdwg.mxu0
        %v937 = vand.u32 %v333, 4294901760
        %v938 = vsub.f32 %v333, %v937
        %939 = vmatprep.subr.mxu0 %v938
        %v940 = vand.u32 %v332, 4294901760
        %v941 = vsub.f32 %v332, %v940
        %942 = vmatpush1.msra.mxu0 %v941
        %v943 = vand.u32 %v335, 4294901760
        %v944 = vsub.f32 %v335, %v943
        %945 = vmatprep.subr.mxu0 %v944
        %v946 = vand.u32 %v334, 4294901760
        %v947 = vsub.f32 %v334, %v946
        %948 = vmatpush1.msra.mxu0 %v947
        %v949 = vand.u32 %v337, 4294901760
        %v950 = vsub.f32 %v337, %v949
        %951 = vmatprep.subr.mxu0 %v950
        %v952 = vand.u32 %v336, 4294901760
        %v953 = vsub.f32 %v336, %v952
        %954 = vmatpush1.msra.mxu0 %v953
        %v955 = vand.u32 %v339, 4294901760
        %v956 = vsub.f32 %v339, %v955
        %957 = vmatprep.subr.mxu0 %v956
        %v958 = vand.u32 %v338, 4294901760
        %v959 = vsub.f32 %v338, %v958
        %960 = vmatpush1.msra.mxu0 %v959
        %v961 = vand.u32 %v341, 4294901760
        %v962 = vsub.f32 %v341, %v961
        %963 = vmatprep.subr.mxu0 %v962
        %v964 = vand.u32 %v340, 4294901760
        %v965 = vsub.f32 %v340, %v964
        %966 = vmatpush1.msra.mxu0 %v965
        %v967 = vand.u32 %v343, 4294901760
        %v968 = vsub.f32 %v343, %v967
        %969 = vmatprep.subr.mxu0 %v968
        %v970 = vand.u32 %v342, 4294901760
        %v971 = vsub.f32 %v342, %v970
        %972 = vmatpush1.msra.mxu0 %v971
        %v973 = vand.u32 %v345, 4294901760
        %v974 = vsub.f32 %v345, %v973
        %975 = vmatprep.subr.mxu0 %v974
        %v976 = vand.u32 %v344, 4294901760
        %v977 = vsub.f32 %v344, %v976
        %978 = vmatpush1.msra.mxu0 %v977
        %v979 = vand.u32 %v347, 4294901760
        %v980 = vsub.f32 %v347, %v979
        %981 = vmatprep.subr.mxu0 %v980
        %v982 = vand.u32 %v346, 4294901760
        %v983 = vsub.f32 %v346, %v982
        %984 = vmatpush1.msra.mxu0 %v983
        %v985 = vand.u32 %v349, 4294901760
        %v986 = vsub.f32 %v349, %v985
        %987 = vmatprep.subr.mxu0 %v986
        %v988 = vand.u32 %v348, 4294901760
        %v989 = vsub.f32 %v348, %v988
        %990 = vmatpush1.msra.mxu0 %v989
        %v991 = vand.u32 %v351, 4294901760
        %v992 = vsub.f32 %v351, %v991
        %993 = vmatprep.subr.mxu0 %v992
        %v994 = vand.u32 %v350, 4294901760
        %v995 = vsub.f32 %v350, %v994
        %996 = vmatpush1.msra.mxu0 %v995
        %v997 = vand.u32 %v353, 4294901760
        %v998 = vsub.f32 %v353, %v997
        %999 = vmatprep.subr.mxu0 %v998
        %v1000 = vand.u32 %v352, 4294901760
        %v1001 = vsub.f32 %v352, %v1000
        %1002 = vmatpush1.msra.mxu0 %v1001
        %v1003 = vand.u32 %v355, 4294901760
        %v1004 = vsub.f32 %v355, %v1003
        %1005 = vmatprep.subr.mxu0 %v1004
        %v1006 = vand.u32 %v354, 4294901760
        %v1007 = vsub.f32 %v354, %v1006
        %1008 = vmatpush1.msra.mxu0 %v1007
        %v1009 = vand.u32 %v357, 4294901760
        %v1010 = vsub.f32 %v357, %v1009
        %1011 = vmatprep.subr.mxu0 %v1010
        %v1012 = vand.u32 %v356, 4294901760
        %v1013 = vsub.f32 %v356, %v1012
        %1014 = vmatpush1.msra.mxu0 %v1013
        %v1015 = vand.u32 %v359, 4294901760
        %v1016 = vsub.f32 %v359, %v1015
        %1017 = vmatprep.subr.mxu0 %v1016
        %v1018 = vand.u32 %v358, 4294901760
        %v1019 = vsub.f32 %v358, %v1018
        %1020 = vmatpush1.msra.mxu0 %v1019
        %v1021 = vand.u32 %v361, 4294901760
        %v1022 = vsub.f32 %v361, %v1021
        %1023 = vmatprep.subr.mxu0 %v1022
        %v1024 = vand.u32 %v360, 4294901760
        %v1025 = vsub.f32 %v360, %v1024
        %1026 = vmatpush1.msra.mxu0 %v1025
        %v1027 = vand.u32 %v363, 4294901760
        %v1028 = vsub.f32 %v363, %v1027
        %1029 = vmatprep.subr.mxu0 %v1028
        %v1030 = vand.u32 %v362, 4294901760
        %v1031 = vsub.f32 %v362, %v1030
        %1032 = vmatpush1.msra.mxu0 %v1031
        %v1033 = vand.u32 %v365, 4294901760
        %v1034 = vsub.f32 %v365, %v1033
        %1035 = vmatprep.subr.mxu0 %v1034
        %v1036 = vand.u32 %v364, 4294901760
        %v1037 = vsub.f32 %v364, %v1036
        %1038 = vmatpush1.msra.mxu0 %v1037
        %v1039 = vand.u32 %v367, 4294901760
        %v1040 = vsub.f32 %v367, %v1039
        %1041 = vmatprep.subr.mxu0 %v1040
        %v1042 = vand.u32 %v366, 4294901760
        %v1043 = vsub.f32 %v366, %v1042
        %1044 = vmatpush1.msra.mxu0 %v1043
        %v1045 = vand.u32 %v369, 4294901760
        %v1046 = vsub.f32 %v369, %v1045
        %1047 = vmatprep.subr.mxu0 %v1046
        %v1048 = vand.u32 %v368, 4294901760
        %v1049 = vsub.f32 %v368, %v1048
        %1050 = vmatpush1.msra.mxu0 %v1049
        %v1051 = vand.u32 %v371, 4294901760
        %v1052 = vsub.f32 %v371, %v1051
        %1053 = vmatprep.subr.mxu0 %v1052
        %v1054 = vand.u32 %v370, 4294901760
        %v1055 = vsub.f32 %v370, %v1054
        %1056 = vmatpush1.msra.mxu0 %v1055
        %v1057 = vand.u32 %v373, 4294901760
        %v1058 = vsub.f32 %v373, %v1057
        %1059 = vmatprep.subr.mxu0 %v1058
        %v1060 = vand.u32 %v372, 4294901760
        %v1061 = vsub.f32 %v372, %v1060
        %1062 = vmatpush1.msra.mxu0 %v1061
        %v1063 = vand.u32 %v375, 4294901760
        %v1064 = vsub.f32 %v375, %v1063
        %1065 = vmatprep.subr.mxu0 %v1064
        %v1066 = vand.u32 %v374, 4294901760
        %v1067 = vsub.f32 %v374, %v1066
        %1068 = vmatpush1.msra.mxu0 %v1067
        %v1069 = vand.u32 %v377, 4294901760
        %v1070 = vsub.f32 %v377, %v1069
        %1071 = vmatprep.subr.mxu0 %v1070
        %v1072 = vand.u32 %v376, 4294901760
        %v1073 = vsub.f32 %v376, %v1072
        %1074 = vmatpush1.msra.mxu0 %v1073
        %v1075 = vand.u32 %v379, 4294901760
        %v1076 = vsub.f32 %v379, %v1075
        %1077 = vmatprep.subr.mxu0 %v1076
        %v1078 = vand.u32 %v378, 4294901760
        %v1079 = vsub.f32 %v378, %v1078
        %1080 = vmatpush1.msra.mxu0 %v1079
        %v1081 = vand.u32 %v381, 4294901760
        %v1082 = vsub.f32 %v381, %v1081
        %1083 = vmatprep.subr.mxu0 %v1082
        %v1084 = vand.u32 %v380, 4294901760
        %v1085 = vsub.f32 %v380, %v1084
        %1086 = vmatpush1.msra.mxu0 %v1085
        %v1087 = vand.u32 %v383, 4294901760
        %v1088 = vsub.f32 %v383, %v1087
        %1089 = vmatprep.subr.mxu0 %v1088
        %v1090 = vand.u32 %v382, 4294901760
        %v1091 = vsub.f32 %v382, %v1090
        %1092 = vmatpush1.msra.mxu0 %v1091
        %v1093 = vand.u32 %v385, 4294901760
        %v1094 = vsub.f32 %v385, %v1093
        %1095 = vmatprep.subr.mxu0 %v1094
        %v1096 = vand.u32 %v384, 4294901760
        %v1097 = vsub.f32 %v384, %v1096
        %1098 = vmatpush1.msra.mxu0 %v1097
        %v1099 = vand.u32 %v387, 4294901760
        %v1100 = vsub.f32 %v387, %v1099
        %1101 = vmatprep.subr.mxu0 %v1100
        %v1102 = vand.u32 %v386, 4294901760
        %v1103 = vsub.f32 %v386, %v1102
        %1104 = vmatpush1.msra.mxu0 %v1103
        %v1105 = vand.u32 %v389, 4294901760
        %v1106 = vsub.f32 %v389, %v1105
        %1107 = vmatprep.subr.mxu0 %v1106
        %v1108 = vand.u32 %v388, 4294901760
        %v1109 = vsub.f32 %v388, %v1108
        %1110 = vmatpush1.msra.mxu0 %v1109
        %v1111 = vand.u32 %v391, 4294901760
        %v1112 = vsub.f32 %v391, %v1111
        %1113 = vmatprep.subr.mxu0 %v1112
        %v1114 = vand.u32 %v390, 4294901760
        %v1115 = vsub.f32 %v390, %v1114
        %1116 = vmatpush1.msra.mxu0 %v1115
        %v1117 = vand.u32 %v393, 4294901760
        %v1118 = vsub.f32 %v393, %v1117
        %1119 = vmatprep.subr.mxu0 %v1118
        %v1120 = vand.u32 %v392, 4294901760
        %v1121 = vsub.f32 %v392, %v1120
        %1122 = vmatpush1.msra.mxu0 %v1121
        %v1123 = vand.u32 %v395, 4294901760
        %v1124 = vsub.f32 %v395, %v1123
        %1125 = vmatprep.subr.mxu0 %v1124
        %v1126 = vand.u32 %v394, 4294901760
        %v1127 = vsub.f32 %v394, %v1126
        %1128 = vmatpush1.msra.mxu0 %v1127
        %v1129 = vand.u32 %v397, 4294901760
        %v1130 = vsub.f32 %v397, %v1129
        %1131 = vmatprep.mubr.f32.mxu0 %v1130
        %v1132 = vand.u32 %v331, 4294901760
        %v1133 = vsub.f32 %v331, %v1132
        %1134 = vmatmul.mubr.f32.gmra.mrb[0].mxu0 %v1133
        %v1135 = vpop.f32.mrb[0].mxu0
        %v1136 = vadd.f32 %v933, %v1135
        %v1137 = vpop.f32.mrb[0].mxu0
        %v1138 = vadd.f32 %v935, %v1137
        %1139 = vdwg.mxu0
        %v1140 = vand.u32 %v333, 4294901760
        %1141 = vmatprep.subr.mxu0 %v1140
        %v1142 = vand.u32 %v332, 4294901760
        %1143 = vmatpush1.msra.mxu0 %v1142
        %v1144 = vand.u32 %v335, 4294901760
        %1145 = vmatprep.subr.mxu0 %v1144
        %v1146 = vand.u32 %v334, 4294901760
        %1147 = vmatpush1.msra.mxu0 %v1146
        %v1148 = vand.u32 %v337, 4294901760
        %1149 = vmatprep.subr.mxu0 %v1148
        %v1150 = vand.u32 %v336, 4294901760
        %1151 = vmatpush1.msra.mxu0 %v1150
        %v1152 = vand.u32 %v339, 4294901760
        %1153 = vmatprep.subr.mxu0 %v1152
        %v1154 = vand.u32 %v338, 4294901760
        %1155 = vmatpush1.msra.mxu0 %v1154
        %v1156 = vand.u32 %v341, 4294901760
        %1157 = vmatprep.subr.mxu0 %v1156
        %v1158 = vand.u32 %v340, 4294901760
        %1159 = vmatpush1.msra.mxu0 %v1158
        %v1160 = vand.u32 %v343, 4294901760
        %1161 = vmatprep.subr.mxu0 %v1160
        %v1162 = vand.u32 %v342, 4294901760
        %1163 = vmatpush1.msra.mxu0 %v1162
        %v1164 = vand.u32 %v345, 4294901760
        %1165 = vmatprep.subr.mxu0 %v1164
        %v1166 = vand.u32 %v344, 4294901760
        %1167 = vmatpush1.msra.mxu0 %v1166
        %v1168 = vand.u32 %v347, 4294901760
        %1169 = vmatprep.subr.mxu0 %v1168
        %v1170 = vand.u32 %v346, 4294901760
        %1171 = vmatpush1.msra.mxu0 %v1170
        %v1172 = vand.u32 %v349, 4294901760
        %1173 = vmatprep.subr.mxu0 %v1172
        %v1174 = vand.u32 %v348, 4294901760
        %1175 = vmatpush1.msra.mxu0 %v1174
        %v1176 = vand.u32 %v351, 4294901760
        %1177 = vmatprep.subr.mxu0 %v1176
        %v1178 = vand.u32 %v350, 4294901760
        %1179 = vmatpush1.msra.mxu0 %v1178
        %v1180 = vand.u32 %v353, 4294901760
        %1181 = vmatprep.subr.mxu0 %v1180
        %v1182 = vand.u32 %v352, 4294901760
        %1183 = vmatpush1.msra.mxu0 %v1182
        %v1184 = vand.u32 %v355, 4294901760
        %1185 = vmatprep.subr.mxu0 %v1184
        %v1186 = vand.u32 %v354, 4294901760
        %1187 = vmatpush1.msra.mxu0 %v1186
        %v1188 = vand.u32 %v357, 4294901760
        %1189 = vmatprep.subr.mxu0 %v1188
        %v1190 = vand.u32 %v356, 4294901760
        %1191 = vmatpush1.msra.mxu0 %v1190
        %v1192 = vand.u32 %v359, 4294901760
        %1193 = vmatprep.subr.mxu0 %v1192
        %v1194 = vand.u32 %v358, 4294901760
        %1195 = vmatpush1.msra.mxu0 %v1194
        %v1196 = vand.u32 %v361, 4294901760
        %1197 = vmatprep.subr.mxu0 %v1196
        %v1198 = vand.u32 %v360, 4294901760
        %1199 = vmatpush1.msra.mxu0 %v1198
        %v1200 = vand.u32 %v363, 4294901760
        %1201 = vmatprep.subr.mxu0 %v1200
        %v1202 = vand.u32 %v362, 4294901760
        %1203 = vmatpush1.msra.mxu0 %v1202
        %v1204 = vand.u32 %v365, 4294901760
        %1205 = vmatprep.subr.mxu0 %v1204
        %v1206 = vand.u32 %v364, 4294901760
        %1207 = vmatpush1.msra.mxu0 %v1206
        %v1208 = vand.u32 %v367, 4294901760
        %1209 = vmatprep.subr.mxu0 %v1208
        %v1210 = vand.u32 %v366, 4294901760
        %1211 = vmatpush1.msra.mxu0 %v1210
        %v1212 = vand.u32 %v369, 4294901760
        %1213 = vmatprep.subr.mxu0 %v1212
        %v1214 = vand.u32 %v368, 4294901760
        %1215 = vmatpush1.msra.mxu0 %v1214
        %v1216 = vand.u32 %v371, 4294901760
        %1217 = vmatprep.subr.mxu0 %v1216
        %v1218 = vand.u32 %v370, 4294901760
        %1219 = vmatpush1.msra.mxu0 %v1218
        %v1220 = vand.u32 %v373, 4294901760
        %1221 = vmatprep.subr.mxu0 %v1220
        %v1222 = vand.u32 %v372, 4294901760
        %1223 = vmatpush1.msra.mxu0 %v1222
        %v1224 = vand.u32 %v375, 4294901760
        %1225 = vmatprep.subr.mxu0 %v1224
        %v1226 = vand.u32 %v374, 4294901760
        %1227 = vmatpush1.msra.mxu0 %v1226
        %v1228 = vand.u32 %v377, 4294901760
        %1229 = vmatprep.subr.mxu0 %v1228
        %v1230 = vand.u32 %v376, 4294901760
        %1231 = vmatpush1.msra.mxu0 %v1230
        %v1232 = vand.u32 %v379, 4294901760
        %1233 = vmatprep.subr.mxu0 %v1232
        %v1234 = vand.u32 %v378, 4294901760
        %1235 = vmatpush1.msra.mxu0 %v1234
        %v1236 = vand.u32 %v381, 4294901760
        %1237 = vmatprep.subr.mxu0 %v1236
        %v1238 = vand.u32 %v380, 4294901760
        %1239 = vmatpush1.msra.mxu0 %v1238
        %v1240 = vand.u32 %v383, 4294901760
        %1241 = vmatprep.subr.mxu0 %v1240
        %v1242 = vand.u32 %v382, 4294901760
        %1243 = vmatpush1.msra.mxu0 %v1242
        %v1244 = vand.u32 %v385, 4294901760
        %1245 = vmatprep.subr.mxu0 %v1244
        %v1246 = vand.u32 %v384, 4294901760
        %1247 = vmatpush1.msra.mxu0 %v1246
        %v1248 = vand.u32 %v387, 4294901760
        %1249 = vmatprep.subr.mxu0 %v1248
        %v1250 = vand.u32 %v386, 4294901760
        %1251 = vmatpush1.msra.mxu0 %v1250
        %v1252 = vand.u32 %v389, 4294901760
        %1253 = vmatprep.subr.mxu0 %v1252
        %v1254 = vand.u32 %v388, 4294901760
        %1255 = vmatpush1.msra.mxu0 %v1254
        %v1256 = vand.u32 %v391, 4294901760
        %1257 = vmatprep.subr.mxu0 %v1256
        %v1258 = vand.u32 %v390, 4294901760
        %1259 = vmatpush1.msra.mxu0 %v1258
        %v1260 = vand.u32 %v393, 4294901760
        %1261 = vmatprep.subr.mxu0 %v1260
        %v1262 = vand.u32 %v392, 4294901760
        %1263 = vmatpush1.msra.mxu0 %v1262
        %v1264 = vand.u32 %v395, 4294901760
        %1265 = vmatprep.subr.mxu0 %v1264
        %v1266 = vand.u32 %v394, 4294901760
        %1267 = vmatpush1.msra.mxu0 %v1266
        %v1268 = vand.u32 %v397, 4294901760
        %v1269 = vsub.f32 %v397, %v1268
        %v1270 = vand.u32 %v1269, 4294901760
        %1271 = vmatprep.mubr.f32.mxu0 %v1270
        %v1272 = vand.u32 %v331, 4294901760
        %v1273 = vsub.f32 %v331, %v1272
        %v1274 = vand.u32 %v1273, 4294901760
        %1275 = vmatmul.mubr.f32.gmra.mrb[0].mxu0 %v1274
        %v1276 = vpop.f32.mrb[0].mxu0
        %v1277 = vadd.f32 %v1136, %v1276
        %v1278 = vpop.f32.mrb[0].mxu0
        %v1279 = vadd.f32 %v1138, %v1278
        %1280 = vdwg.mxu0
        %v1281 = vand.u32 %v333, 4294901760
        %v1282 = vsub.f32 %v333, %v1281
        %v1283 = vand.u32 %v1282, 4294901760
        %1284 = vmatprep.subr.mxu0 %v1283
        %v1285 = vand.u32 %v332, 4294901760
        %v1286 = vsub.f32 %v332, %v1285
        %v1287 = vand.u32 %v1286, 4294901760
        %1288 = vmatpush1.msra.mxu0 %v1287
        %v1289 = vand.u32 %v335, 4294901760
        %v1290 = vsub.f32 %v335, %v1289
        %v1291 = vand.u32 %v1290, 4294901760
        %1292 = vmatprep.subr.mxu0 %v1291
        %v1293 = vand.u32 %v334, 4294901760
        %v1294 = vsub.f32 %v334, %v1293
        %v1295 = vand.u32 %v1294, 4294901760
        %1296 = vmatpush1.msra.mxu0 %v1295
        %v1297 = vand.u32 %v337, 4294901760
        %v1298 = vsub.f32 %v337, %v1297
        %v1299 = vand.u32 %v1298, 4294901760
        %1300 = vmatprep.subr.mxu0 %v1299
        %v1301 = vand.u32 %v336, 4294901760
        %v1302 = vsub.f32 %v336, %v1301
        %v1303 = vand.u32 %v1302, 4294901760
        %1304 = vmatpush1.msra.mxu0 %v1303
        %v1305 = vand.u32 %v339, 4294901760
        %v1306 = vsub.f32 %v339, %v1305
        %v1307 = vand.u32 %v1306, 4294901760
        %1308 = vmatprep.subr.mxu0 %v1307
        %v1309 = vand.u32 %v338, 4294901760
        %v1310 = vsub.f32 %v338, %v1309
        %v1311 = vand.u32 %v1310, 4294901760
        %1312 = vmatpush1.msra.mxu0 %v1311
        %v1313 = vand.u32 %v341, 4294901760
        %v1314 = vsub.f32 %v341, %v1313
        %v1315 = vand.u32 %v1314, 4294901760
        %1316 = vmatprep.subr.mxu0 %v1315
        %v1317 = vand.u32 %v340, 4294901760
        %v1318 = vsub.f32 %v340, %v1317
        %v1319 = vand.u32 %v1318, 4294901760
        %1320 = vmatpush1.msra.mxu0 %v1319
        %v1321 = vand.u32 %v343, 4294901760
        %v1322 = vsub.f32 %v343, %v1321
        %v1323 = vand.u32 %v1322, 4294901760
        %1324 = vmatprep.subr.mxu0 %v1323
        %v1325 = vand.u32 %v342, 4294901760
        %v1326 = vsub.f32 %v342, %v1325
        %v1327 = vand.u32 %v1326, 4294901760
        %1328 = vmatpush1.msra.mxu0 %v1327
        %v1329 = vand.u32 %v345, 4294901760
        %v1330 = vsub.f32 %v345, %v1329
        %v1331 = vand.u32 %v1330, 4294901760
        %1332 = vmatprep.subr.mxu0 %v1331
        %v1333 = vand.u32 %v344, 4294901760
        %v1334 = vsub.f32 %v344, %v1333
        %v1335 = vand.u32 %v1334, 4294901760
        %1336 = vmatpush1.msra.mxu0 %v1335
        %v1337 = vand.u32 %v347, 4294901760
        %v1338 = vsub.f32 %v347, %v1337
        %v1339 = vand.u32 %v1338, 4294901760
        %1340 = vmatprep.subr.mxu0 %v1339
        %v1341 = vand.u32 %v346, 4294901760
        %v1342 = vsub.f32 %v346, %v1341
        %v1343 = vand.u32 %v1342, 4294901760
        %1344 = vmatpush1.msra.mxu0 %v1343
        %v1345 = vand.u32 %v349, 4294901760
        %v1346 = vsub.f32 %v349, %v1345
        %v1347 = vand.u32 %v1346, 4294901760
        %1348 = vmatprep.subr.mxu0 %v1347
        %v1349 = vand.u32 %v348, 4294901760
        %v1350 = vsub.f32 %v348, %v1349
        %v1351 = vand.u32 %v1350, 4294901760
        %1352 = vmatpush1.msra.mxu0 %v1351
        %v1353 = vand.u32 %v351, 4294901760
        %v1354 = vsub.f32 %v351, %v1353
        %v1355 = vand.u32 %v1354, 4294901760
        %1356 = vmatprep.subr.mxu0 %v1355
        %v1357 = vand.u32 %v350, 4294901760
        %v1358 = vsub.f32 %v350, %v1357
        %v1359 = vand.u32 %v1358, 4294901760
        %1360 = vmatpush1.msra.mxu0 %v1359
        %v1361 = vand.u32 %v353, 4294901760
        %v1362 = vsub.f32 %v353, %v1361
        %v1363 = vand.u32 %v1362, 4294901760
        %1364 = vmatprep.subr.mxu0 %v1363
        %v1365 = vand.u32 %v352, 4294901760
        %v1366 = vsub.f32 %v352, %v1365
        %v1367 = vand.u32 %v1366, 4294901760
        %1368 = vmatpush1.msra.mxu0 %v1367
        %v1369 = vand.u32 %v355, 4294901760
        %v1370 = vsub.f32 %v355, %v1369
        %v1371 = vand.u32 %v1370, 4294901760
        %1372 = vmatprep.subr.mxu0 %v1371
        %v1373 = vand.u32 %v354, 4294901760
        %v1374 = vsub.f32 %v354, %v1373
        %v1375 = vand.u32 %v1374, 4294901760
        %1376 = vmatpush1.msra.mxu0 %v1375
        %v1377 = vand.u32 %v357, 4294901760
        %v1378 = vsub.f32 %v357, %v1377
        %v1379 = vand.u32 %v1378, 4294901760
        %1380 = vmatprep.subr.mxu0 %v1379
        %v1381 = vand.u32 %v356, 4294901760
        %v1382 = vsub.f32 %v356, %v1381
        %v1383 = vand.u32 %v1382, 4294901760
        %1384 = vmatpush1.msra.mxu0 %v1383
        %v1385 = vand.u32 %v359, 4294901760
        %v1386 = vsub.f32 %v359, %v1385
        %v1387 = vand.u32 %v1386, 4294901760
        %1388 = vmatprep.subr.mxu0 %v1387
        %v1389 = vand.u32 %v358, 4294901760
        %v1390 = vsub.f32 %v358, %v1389
        %v1391 = vand.u32 %v1390, 4294901760
        %1392 = vmatpush1.msra.mxu0 %v1391
        %v1393 = vand.u32 %v361, 4294901760
        %v1394 = vsub.f32 %v361, %v1393
        %v1395 = vand.u32 %v1394, 4294901760
        %1396 = vmatprep.subr.mxu0 %v1395
        %v1397 = vand.u32 %v360, 4294901760
        %v1398 = vsub.f32 %v360, %v1397
        %v1399 = vand.u32 %v1398, 4294901760
        %1400 = vmatpush1.msra.mxu0 %v1399
        %v1401 = vand.u32 %v363, 4294901760
        %v1402 = vsub.f32 %v363, %v1401
        %v1403 = vand.u32 %v1402, 4294901760
        %1404 = vmatprep.subr.mxu0 %v1403
        %v1405 = vand.u32 %v362, 4294901760
        %v1406 = vsub.f32 %v362, %v1405
        %v1407 = vand.u32 %v1406, 4294901760
        %1408 = vmatpush1.msra.mxu0 %v1407
        %v1409 = vand.u32 %v365, 4294901760
        %v1410 = vsub.f32 %v365, %v1409
        %v1411 = vand.u32 %v1410, 4294901760
        %1412 = vmatprep.subr.mxu0 %v1411
        %v1413 = vand.u32 %v364, 4294901760
        %v1414 = vsub.f32 %v364, %v1413
        %v1415 = vand.u32 %v1414, 4294901760
        %1416 = vmatpush1.msra.mxu0 %v1415
        %v1417 = vand.u32 %v367, 4294901760
        %v1418 = vsub.f32 %v367, %v1417
        %v1419 = vand.u32 %v1418, 4294901760
        %1420 = vmatprep.subr.mxu0 %v1419
        %v1421 = vand.u32 %v366, 4294901760
        %v1422 = vsub.f32 %v366, %v1421
        %v1423 = vand.u32 %v1422, 4294901760
        %1424 = vmatpush1.msra.mxu0 %v1423
        %v1425 = vand.u32 %v369, 4294901760
        %v1426 = vsub.f32 %v369, %v1425
        %v1427 = vand.u32 %v1426, 4294901760
        %1428 = vmatprep.subr.mxu0 %v1427
        %v1429 = vand.u32 %v368, 4294901760
        %v1430 = vsub.f32 %v368, %v1429
        %v1431 = vand.u32 %v1430, 4294901760
        %1432 = vmatpush1.msra.mxu0 %v1431
        %v1433 = vand.u32 %v371, 4294901760
        %v1434 = vsub.f32 %v371, %v1433
        %v1435 = vand.u32 %v1434, 4294901760
        %1436 = vmatprep.subr.mxu0 %v1435
        %v1437 = vand.u32 %v370, 4294901760
        %v1438 = vsub.f32 %v370, %v1437
        %v1439 = vand.u32 %v1438, 4294901760
        %1440 = vmatpush1.msra.mxu0 %v1439
        %v1441 = vand.u32 %v373, 4294901760
        %v1442 = vsub.f32 %v373, %v1441
        %v1443 = vand.u32 %v1442, 4294901760
        %1444 = vmatprep.subr.mxu0 %v1443
        %v1445 = vand.u32 %v372, 4294901760
        %v1446 = vsub.f32 %v372, %v1445
        %v1447 = vand.u32 %v1446, 4294901760
        %1448 = vmatpush1.msra.mxu0 %v1447
        %v1449 = vand.u32 %v375, 4294901760
        %v1450 = vsub.f32 %v375, %v1449
        %v1451 = vand.u32 %v1450, 4294901760
        %1452 = vmatprep.subr.mxu0 %v1451
        %v1453 = vand.u32 %v374, 4294901760
        %v1454 = vsub.f32 %v374, %v1453
        %v1455 = vand.u32 %v1454, 4294901760
        %1456 = vmatpush1.msra.mxu0 %v1455
        %v1457 = vand.u32 %v377, 4294901760
        %v1458 = vsub.f32 %v377, %v1457
        %v1459 = vand.u32 %v1458, 4294901760
        %1460 = vmatprep.subr.mxu0 %v1459
        %v1461 = vand.u32 %v376, 4294901760
        %v1462 = vsub.f32 %v376, %v1461
        %v1463 = vand.u32 %v1462, 4294901760
        %1464 = vmatpush1.msra.mxu0 %v1463
        %v1465 = vand.u32 %v379, 4294901760
        %v1466 = vsub.f32 %v379, %v1465
        %v1467 = vand.u32 %v1466, 4294901760
        %1468 = vmatprep.subr.mxu0 %v1467
        %v1469 = vand.u32 %v378, 4294901760
        %v1470 = vsub.f32 %v378, %v1469
        %v1471 = vand.u32 %v1470, 4294901760
        %1472 = vmatpush1.msra.mxu0 %v1471
        %v1473 = vand.u32 %v381, 4294901760
        %v1474 = vsub.f32 %v381, %v1473
        %v1475 = vand.u32 %v1474, 4294901760
        %1476 = vmatprep.subr.mxu0 %v1475
        %v1477 = vand.u32 %v380, 4294901760
        %v1478 = vsub.f32 %v380, %v1477
        %v1479 = vand.u32 %v1478, 4294901760
        %1480 = vmatpush1.msra.mxu0 %v1479
        %v1481 = vand.u32 %v383, 4294901760
        %v1482 = vsub.f32 %v383, %v1481
        %v1483 = vand.u32 %v1482, 4294901760
        %1484 = vmatprep.subr.mxu0 %v1483
        %v1485 = vand.u32 %v382, 4294901760
        %v1486 = vsub.f32 %v382, %v1485
        %v1487 = vand.u32 %v1486, 4294901760
        %1488 = vmatpush1.msra.mxu0 %v1487
        %v1489 = vand.u32 %v385, 4294901760
        %v1490 = vsub.f32 %v385, %v1489
        %v1491 = vand.u32 %v1490, 4294901760
        %1492 = vmatprep.subr.mxu0 %v1491
        %v1493 = vand.u32 %v384, 4294901760
        %v1494 = vsub.f32 %v384, %v1493
        %v1495 = vand.u32 %v1494, 4294901760
        %1496 = vmatpush1.msra.mxu0 %v1495
        %v1497 = vand.u32 %v387, 4294901760
        %v1498 = vsub.f32 %v387, %v1497
        %v1499 = vand.u32 %v1498, 4294901760
        %1500 = vmatprep.subr.mxu0 %v1499
        %v1501 = vand.u32 %v386, 4294901760
        %v1502 = vsub.f32 %v386, %v1501
        %v1503 = vand.u32 %v1502, 4294901760
        %1504 = vmatpush1.msra.mxu0 %v1503
        %v1505 = vand.u32 %v389, 4294901760
        %v1506 = vsub.f32 %v389, %v1505
        %v1507 = vand.u32 %v1506, 4294901760
        %1508 = vmatprep.subr.mxu0 %v1507
        %v1509 = vand.u32 %v388, 4294901760
        %v1510 = vsub.f32 %v388, %v1509
        %v1511 = vand.u32 %v1510, 4294901760
        %1512 = vmatpush1.msra.mxu0 %v1511
        %v1513 = vand.u32 %v391, 4294901760
        %v1514 = vsub.f32 %v391, %v1513
        %v1515 = vand.u32 %v1514, 4294901760
        %1516 = vmatprep.subr.mxu0 %v1515
        %v1517 = vand.u32 %v390, 4294901760
        %v1518 = vsub.f32 %v390, %v1517
        %v1519 = vand.u32 %v1518, 4294901760
        %1520 = vmatpush1.msra.mxu0 %v1519
        %v1521 = vand.u32 %v393, 4294901760
        %v1522 = vsub.f32 %v393, %v1521
        %v1523 = vand.u32 %v1522, 4294901760
        %1524 = vmatprep.subr.mxu0 %v1523
        %v1525 = vand.u32 %v392, 4294901760
        %v1526 = vsub.f32 %v392, %v1525
        %v1527 = vand.u32 %v1526, 4294901760
        %1528 = vmatpush1.msra.mxu0 %v1527
        %v1529 = vand.u32 %v395, 4294901760
        %v1530 = vsub.f32 %v395, %v1529
        %v1531 = vand.u32 %v1530, 4294901760
        %1532 = vmatprep.subr.mxu0 %v1531
        %v1533 = vand.u32 %v394, 4294901760
        %v1534 = vsub.f32 %v394, %v1533
        %v1535 = vand.u32 %v1534, 4294901760
        %1536 = vmatpush1.msra.mxu0 %v1535
        %v1537 = vand.u32 %v397, 4294901760
        %1538 = vmatprep.mubr.f32.mxu0 %v1537
        %v1539 = vand.u32 %v331, 4294901760
        %1540 = vmatmul.mubr.f32.gmra.mrb[0].mxu0 %v1539
        %v1541 = vpop.f32.mrb[0].mxu0
        %v1542 = vadd.f32 %v1277, %v1541
        %v1543 = vpop.f32.mrb[0].mxu0
        %v1544 = vadd.f32 %v1279, %v1543
        %1545 = vdwg.mxu0
        %v1546 = vand.u32 %v333, 4294901760
        %1547 = vmatprep.subr.mxu0 %v1546
        %v1548 = vand.u32 %v332, 4294901760
        %1549 = vmatpush1.msra.mxu0 %v1548
        %v1550 = vand.u32 %v335, 4294901760
        %1551 = vmatprep.subr.mxu0 %v1550
        %v1552 = vand.u32 %v334, 4294901760
        %1553 = vmatpush1.msra.mxu0 %v1552
        %v1554 = vand.u32 %v337, 4294901760
        %1555 = vmatprep.subr.mxu0 %v1554
        %v1556 = vand.u32 %v336, 4294901760
        %1557 = vmatpush1.msra.mxu0 %v1556
        %v1558 = vand.u32 %v339, 4294901760
        %1559 = vmatprep.subr.mxu0 %v1558
        %v1560 = vand.u32 %v338, 4294901760
        %1561 = vmatpush1.msra.mxu0 %v1560
        %v1562 = vand.u32 %v341, 4294901760
        %1563 = vmatprep.subr.mxu0 %v1562
        %v1564 = vand.u32 %v340, 4294901760
        %1565 = vmatpush1.msra.mxu0 %v1564
        %v1566 = vand.u32 %v343, 4294901760
        %1567 = vmatprep.subr.mxu0 %v1566
        %v1568 = vand.u32 %v342, 4294901760
        %1569 = vmatpush1.msra.mxu0 %v1568
        %v1570 = vand.u32 %v345, 4294901760
        %1571 = vmatprep.subr.mxu0 %v1570
        %v1572 = vand.u32 %v344, 4294901760
        %1573 = vmatpush1.msra.mxu0 %v1572
        %v1574 = vand.u32 %v347, 4294901760
        %1575 = vmatprep.subr.mxu0 %v1574
        %v1576 = vand.u32 %v346, 4294901760
        %1577 = vmatpush1.msra.mxu0 %v1576
        %v1578 = vand.u32 %v349, 4294901760
        %1579 = vmatprep.subr.mxu0 %v1578
        %v1580 = vand.u32 %v348, 4294901760
        %1581 = vmatpush1.msra.mxu0 %v1580
        %v1582 = vand.u32 %v351, 4294901760
        %1583 = vmatprep.subr.mxu0 %v1582
        %v1584 = vand.u32 %v350, 4294901760
        %1585 = vmatpush1.msra.mxu0 %v1584
        %v1586 = vand.u32 %v353, 4294901760
        %1587 = vmatprep.subr.mxu0 %v1586
        %v1588 = vand.u32 %v352, 4294901760
        %1589 = vmatpush1.msra.mxu0 %v1588
        %v1590 = vand.u32 %v355, 4294901760
        %1591 = vmatprep.subr.mxu0 %v1590
        %v1592 = vand.u32 %v354, 4294901760
        %1593 = vmatpush1.msra.mxu0 %v1592
        %v1594 = vand.u32 %v357, 4294901760
        %1595 = vmatprep.subr.mxu0 %v1594
        %v1596 = vand.u32 %v356, 4294901760
        %1597 = vmatpush1.msra.mxu0 %v1596
        %v1598 = vand.u32 %v359, 4294901760
        %1599 = vmatprep.subr.mxu0 %v1598
        %v1600 = vand.u32 %v358, 4294901760
        %1601 = vmatpush1.msra.mxu0 %v1600
        %v1602 = vand.u32 %v361, 4294901760
        %1603 = vmatprep.subr.mxu0 %v1602
        %v1604 = vand.u32 %v360, 4294901760
        %1605 = vmatpush1.msra.mxu0 %v1604
        %v1606 = vand.u32 %v363, 4294901760
        %1607 = vmatprep.subr.mxu0 %v1606
        %v1608 = vand.u32 %v362, 4294901760
        %1609 = vmatpush1.msra.mxu0 %v1608
        %v1610 = vand.u32 %v365, 4294901760
        %1611 = vmatprep.subr.mxu0 %v1610
        %v1612 = vand.u32 %v364, 4294901760
        %1613 = vmatpush1.msra.mxu0 %v1612
        %v1614 = vand.u32 %v367, 4294901760
        %1615 = vmatprep.subr.mxu0 %v1614
        %v1616 = vand.u32 %v366, 4294901760
        %1617 = vmatpush1.msra.mxu0 %v1616
        %v1618 = vand.u32 %v369, 4294901760
        %1619 = vmatprep.subr.mxu0 %v1618
        %v1620 = vand.u32 %v368, 4294901760
        %1621 = vmatpush1.msra.mxu0 %v1620
        %v1622 = vand.u32 %v371, 4294901760
        %1623 = vmatprep.subr.mxu0 %v1622
        %v1624 = vand.u32 %v370, 4294901760
        %1625 = vmatpush1.msra.mxu0 %v1624
        %v1626 = vand.u32 %v373, 4294901760
        %1627 = vmatprep.subr.mxu0 %v1626
        %v1628 = vand.u32 %v372, 4294901760
        %1629 = vmatpush1.msra.mxu0 %v1628
        %v1630 = vand.u32 %v375, 4294901760
        %1631 = vmatprep.subr.mxu0 %v1630
        %v1632 = vand.u32 %v374, 4294901760
        %1633 = vmatpush1.msra.mxu0 %v1632
        %v1634 = vand.u32 %v377, 4294901760
        %1635 = vmatprep.subr.mxu0 %v1634
        %v1636 = vand.u32 %v376, 4294901760
        %1637 = vmatpush1.msra.mxu0 %v1636
        %v1638 = vand.u32 %v379, 4294901760
        %1639 = vmatprep.subr.mxu0 %v1638
        %v1640 = vand.u32 %v378, 4294901760
        %1641 = vmatpush1.msra.mxu0 %v1640
        %v1642 = vand.u32 %v381, 4294901760
        %1643 = vmatprep.subr.mxu0 %v1642
        %v1644 = vand.u32 %v380, 4294901760
        %1645 = vmatpush1.msra.mxu0 %v1644
        %v1646 = vand.u32 %v383, 4294901760
        %1647 = vmatprep.subr.mxu0 %v1646
        %v1648 = vand.u32 %v382, 4294901760
        %1649 = vmatpush1.msra.mxu0 %v1648
        %v1650 = vand.u32 %v385, 4294901760
        %1651 = vmatprep.subr.mxu0 %v1650
        %v1652 = vand.u32 %v384, 4294901760
        %1653 = vmatpush1.msra.mxu0 %v1652
        %v1654 = vand.u32 %v387, 4294901760
        %1655 = vmatprep.subr.mxu0 %v1654
        %v1656 = vand.u32 %v386, 4294901760
        %1657 = vmatpush1.msra.mxu0 %v1656
        %v1658 = vand.u32 %v389, 4294901760
        %1659 = vmatprep.subr.mxu0 %v1658
        %v1660 = vand.u32 %v388, 4294901760
        %1661 = vmatpush1.msra.mxu0 %v1660
        %v1662 = vand.u32 %v391, 4294901760
        %1663 = vmatprep.subr.mxu0 %v1662
        %v1664 = vand.u32 %v390, 4294901760
        %1665 = vmatpush1.msra.mxu0 %v1664
        %v1666 = vand.u32 %v393, 4294901760
        %1667 = vmatprep.subr.mxu0 %v1666
        %v1668 = vand.u32 %v392, 4294901760
        %1669 = vmatpush1.msra.mxu0 %v1668
        %v1670 = vand.u32 %v395, 4294901760
        %1671 = vmatprep.subr.mxu0 %v1670
        %v1672 = vand.u32 %v394, 4294901760
        %1673 = vmatpush1.msra.mxu0 %v1672
        %v1674 = vand.u32 %v397, 4294901760
        %1675 = vmatprep.mubr.f32.mxu0 %v1674
        %v1676 = vand.u32 %v331, 4294901760
        %1677 = vmatmul.mubr.f32.gmra.mrb[0].mxu0 %v1676
        %v1678 = vpop.f32.mrb[0].mxu0
        %v1679 = vadd.f32 %v1542, %v1678
        %v1680 = vpop.f32.mrb[0].mxu0
        %v1681 = vadd.f32 %v1544, %v1680
        %1682 = vdwg.mxu0
        %v1683 = vld [vmem:[%s2] sm:$0xff]
        %v1684 = vld [vmem:[%s2 + $0x8] sm:$0xff]
        %v1685 = vld [vmem:[%s2 + $0x10] sm:$0xff]
        %v1686 = vld [vmem:[%s2 + $0x18] sm:$0xff]
        %v1687 = vld [vmem:[%s2 + $0x20] sm:$0xff]
        %v1688 = vld [vmem:[%s2 + $0x28] sm:$0xff]
        %v1689 = vld [vmem:[%s2 + $0x30] sm:$0xff]
        %v1690 = vld [vmem:[%s2 + $0x38] sm:$0xff]
        %v1691 = vld [vmem:[%s2 + $0x40] sm:$0xff]
        %v1692 = vld [vmem:[%s2 + $0x48] sm:$0xff]
        %v1693 = vld [vmem:[%s2 + $0x50] sm:$0xff]
        %v1694 = vld [vmem:[%s2 + $0x58] sm:$0xff]
        %v1695 = vld [vmem:[%s2 + $0x60] sm:$0xff]
        %v1696 = vld [vmem:[%s2 + $0x68] sm:$0xff]
        %v1697 = vld [vmem:[%s2 + $0x70] sm:$0xff]
        %v1698 = vld [vmem:[%s2 + $0x78] sm:$0xff]
        %v1699 = vld [vmem:[%s2 + $0x80] sm:$0xff]
        %v1700 = vld [vmem:[%s2 + $0x88] sm:$0xff]
        %v1701 = vld [vmem:[%s2 + $0x90] sm:$0xff]
        %v1702 = vld [vmem:[%s2 + $0x98] sm:$0xff]
        %v1703 = vld [vmem:[%s2 + $0xa0] sm:$0xff]
        %v1704 = vld [vmem:[%s2 + $0xa8] sm:$0xff]
        %v1705 = vld [vmem:[%s2 + $0xb0] sm:$0xff]
        %v1706 = vld [vmem:[%s2 + $0xb8] sm:$0xff]
        %v1707 = vld [vmem:[%s2 + $0xc0] sm:$0xff]
        %v1708 = vld [vmem:[%s2 + $0xc8] sm:$0xff]
        %v1709 = vld [vmem:[%s2 + $0xd0] sm:$0xff]
        %v1710 = vld [vmem:[%s2 + $0xd8] sm:$0xff]
        %v1711 = vld [vmem:[%s2 + $0xe0] sm:$0xff]
        %v1712 = vld [vmem:[%s2 + $0xe8] sm:$0xff]
        %v1713 = vld [vmem:[%s2 + $0xf0] sm:$0xff]
        %v1714 = vld [vmem:[%s2 + $0xf8] sm:$0xff]
        %v1715 = vld [vmem:[%s2 + $0x100] sm:$0xff]
        %v1716 = vld [vmem:[%s2 + $0x108] sm:$0xff]
        %v1717 = vld [vmem:[%s2 + $0x110] sm:$0xff]
        %v1718 = vld [vmem:[%s2 + $0x118] sm:$0xff]
        %v1719 = vld [vmem:[%s2 + $0x120] sm:$0xff]
        %v1720 = vld [vmem:[%s2 + $0x128] sm:$0xff]
        %v1721 = vld [vmem:[%s2 + $0x130] sm:$0xff]
        %v1722 = vld [vmem:[%s2 + $0x138] sm:$0xff]
        %v1723 = vld [vmem:[%s2 + $0x140] sm:$0xff]
        %v1724 = vld [vmem:[%s2 + $0x148] sm:$0xff]
        %v1725 = vld [vmem:[%s2 + $0x150] sm:$0xff]
        %v1726 = vld [vmem:[%s2 + $0x158] sm:$0xff]
        %v1727 = vld [vmem:[%s2 + $0x160] sm:$0xff]
        %v1728 = vld [vmem:[%s2 + $0x168] sm:$0xff]
        %v1729 = vld [vmem:[%s2 + $0x170] sm:$0xff]
        %v1730 = vld [vmem:[%s2 + $0x178] sm:$0xff]
        %v1731 = vld [vmem:[%s2 + $0x180] sm:$0xff]
        %v1732 = vld [vmem:[%s2 + $0x188] sm:$0xff]
        %v1733 = vld [vmem:[%s2 + $0x190] sm:$0xff]
        %v1734 = vld [vmem:[%s2 + $0x198] sm:$0xff]
        %v1735 = vld [vmem:[%s2 + $0x1a0] sm:$0xff]
        %v1736 = vld [vmem:[%s2 + $0x1a8] sm:$0xff]
        %v1737 = vld [vmem:[%s2 + $0x1b0] sm:$0xff]
        %v1738 = vld [vmem:[%s2 + $0x1b8] sm:$0xff]
        %v1739 = vld [vmem:[%s2 + $0x1c0] sm:$0xff]
        %v1740 = vld [vmem:[%s2 + $0x1c8] sm:$0xff]
        %v1741 = vld [vmem:[%s2 + $0x1d0] sm:$0xff]
        %v1742 = vld [vmem:[%s2 + $0x1d8] sm:$0xff]
        %v1743 = vld [vmem:[%s2 + $0x1e0] sm:$0xff]
        %v1744 = vld [vmem:[%s2 + $0x1e8] sm:$0xff]
        %v1745 = vld [vmem:[%s2 + $0x1f0] sm:$0xff]
        %v1746 = vld [vmem:[%s2 + $0x1f8] sm:$0xff]
        %v1747 = vand.u32 %v1684, 4294901760
        %1748 = vmatprep.subr.mxu0 %v1747
        %v1749 = vand.u32 %v1683, 4294901760
        %1750 = vmatpush1.msra.mxu0 %v1749
        %v1751 = vand.u32 %v1686, 4294901760
        %1752 = vmatprep.subr.mxu0 %v1751
        %v1753 = vand.u32 %v1685, 4294901760
        %1754 = vmatpush1.msra.mxu0 %v1753
        %v1755 = vand.u32 %v1688, 4294901760
        %1756 = vmatprep.subr.mxu0 %v1755
        %v1757 = vand.u32 %v1687, 4294901760
        %1758 = vmatpush1.msra.mxu0 %v1757
        %v1759 = vand.u32 %v1690, 4294901760
        %1760 = vmatprep.subr.mxu0 %v1759
        %v1761 = vand.u32 %v1689, 4294901760
        %1762 = vmatpush1.msra.mxu0 %v1761
        %v1763 = vand.u32 %v1692, 4294901760
        %1764 = vmatprep.subr.mxu0 %v1763
        %v1765 = vand.u32 %v1691, 4294901760
        %1766 = vmatpush1.msra.mxu0 %v1765
        %v1767 = vand.u32 %v1694, 4294901760
        %1768 = vmatprep.subr.mxu0 %v1767
        %v1769 = vand.u32 %v1693, 4294901760
        %1770 = vmatpush1.msra.mxu0 %v1769
        %v1771 = vand.u32 %v1696, 4294901760
        %1772 = vmatprep.subr.mxu0 %v1771
        %v1773 = vand.u32 %v1695, 4294901760
        %1774 = vmatpush1.msra.mxu0 %v1773
        %v1775 = vand.u32 %v1698, 4294901760
        %1776 = vmatprep.subr.mxu0 %v1775
        %v1777 = vand.u32 %v1697, 4294901760
        %1778 = vmatpush1.msra.mxu0 %v1777
        %v1779 = vand.u32 %v1700, 4294901760
        %1780 = vmatprep.subr.mxu0 %v1779
        %v1781 = vand.u32 %v1699, 4294901760
        %1782 = vmatpush1.msra.mxu0 %v1781
        %v1783 = vand.u32 %v1702, 4294901760
        %1784 = vmatprep.subr.mxu0 %v1783
        %v1785 = vand.u32 %v1701, 4294901760
        %1786 = vmatpush1.msra.mxu0 %v1785
        %v1787 = vand.u32 %v1704, 4294901760
        %1788 = vmatprep.subr.mxu0 %v1787
        %v1789 = vand.u32 %v1703, 4294901760
        %1790 = vmatpush1.msra.mxu0 %v1789
        %v1791 = vand.u32 %v1706, 4294901760
        %1792 = vmatprep.subr.mxu0 %v1791
        %v1793 = vand.u32 %v1705, 4294901760
        %1794 = vmatpush1.msra.mxu0 %v1793
        %v1795 = vand.u32 %v1708, 4294901760
        %1796 = vmatprep.subr.mxu0 %v1795
        %v1797 = vand.u32 %v1707, 4294901760
        %1798 = vmatpush1.msra.mxu0 %v1797
        %v1799 = vand.u32 %v1710, 4294901760
        %1800 = vmatprep.subr.mxu0 %v1799
        %v1801 = vand.u32 %v1709, 4294901760
        %1802 = vmatpush1.msra.mxu0 %v1801
        %v1803 = vand.u32 %v1712, 4294901760
        %1804 = vmatprep.subr.mxu0 %v1803
        %v1805 = vand.u32 %v1711, 4294901760
        %1806 = vmatpush1.msra.mxu0 %v1805
        %v1807 = vand.u32 %v1714, 4294901760
        %1808 = vmatprep.subr.mxu0 %v1807
        %v1809 = vand.u32 %v1713, 4294901760
        %1810 = vmatpush1.msra.mxu0 %v1809
        %v1811 = vand.u32 %v1716, 4294901760
        %1812 = vmatprep.subr.mxu0 %v1811
        %v1813 = vand.u32 %v1715, 4294901760
        %1814 = vmatpush1.msra.mxu0 %v1813
        %v1815 = vand.u32 %v1718, 4294901760
        %1816 = vmatprep.subr.mxu0 %v1815
        %v1817 = vand.u32 %v1717, 4294901760
        %1818 = vmatpush1.msra.mxu0 %v1817
        %v1819 = vand.u32 %v1720, 4294901760
        %1820 = vmatprep.subr.mxu0 %v1819
        %v1821 = vand.u32 %v1719, 4294901760
        %1822 = vmatpush1.msra.mxu0 %v1821
        %v1823 = vand.u32 %v1722, 4294901760
        %1824 = vmatprep.subr.mxu0 %v1823
        %v1825 = vand.u32 %v1721, 4294901760
        %1826 = vmatpush1.msra.mxu0 %v1825
        %v1827 = vand.u32 %v1724, 4294901760
        %1828 = vmatprep.subr.mxu0 %v1827
        %v1829 = vand.u32 %v1723, 4294901760
        %1830 = vmatpush1.msra.mxu0 %v1829
        %v1831 = vand.u32 %v1726, 4294901760
        %1832 = vmatprep.subr.mxu0 %v1831
        %v1833 = vand.u32 %v1725, 4294901760
        %1834 = vmatpush1.msra.mxu0 %v1833
        %v1835 = vand.u32 %v1728, 4294901760
        %1836 = vmatprep.subr.mxu0 %v1835
        %v1837 = vand.u32 %v1727, 4294901760
        %1838 = vmatpush1.msra.mxu0 %v1837
        %v1839 = vand.u32 %v1730, 4294901760
        %1840 = vmatprep.subr.mxu0 %v1839
        %v1841 = vand.u32 %v1729, 4294901760
        %1842 = vmatpush1.msra.mxu0 %v1841
        %v1843 = vand.u32 %v1732, 4294901760
        %1844 = vmatprep.subr.mxu0 %v1843
        %v1845 = vand.u32 %v1731, 4294901760
        %1846 = vmatpush1.msra.mxu0 %v1845
        %v1847 = vand.u32 %v1734, 4294901760
        %1848 = vmatprep.subr.mxu0 %v1847
        %v1849 = vand.u32 %v1733, 4294901760
        %1850 = vmatpush1.msra.mxu0 %v1849
        %v1851 = vand.u32 %v1736, 4294901760
        %1852 = vmatprep.subr.mxu0 %v1851
        %v1853 = vand.u32 %v1735, 4294901760
        %1854 = vmatpush1.msra.mxu0 %v1853
        %v1855 = vand.u32 %v1738, 4294901760
        %1856 = vmatprep.subr.mxu0 %v1855
        %v1857 = vand.u32 %v1737, 4294901760
        %1858 = vmatpush1.msra.mxu0 %v1857
        %v1859 = vand.u32 %v1740, 4294901760
        %1860 = vmatprep.subr.mxu0 %v1859
        %v1861 = vand.u32 %v1739, 4294901760
        %1862 = vmatpush1.msra.mxu0 %v1861
        %v1863 = vand.u32 %v1742, 4294901760
        %1864 = vmatprep.subr.mxu0 %v1863
        %v1865 = vand.u32 %v1741, 4294901760
        %1866 = vmatpush1.msra.mxu0 %v1865
        %v1867 = vand.u32 %v1744, 4294901760
        %1868 = vmatprep.subr.mxu0 %v1867
        %v1869 = vand.u32 %v1743, 4294901760
        %1870 = vmatpush1.msra.mxu0 %v1869
        %v1871 = vand.u32 %v1746, 4294901760
        %1872 = vmatprep.subr.mxu0 %v1871
        %v1873 = vand.u32 %v1745, 4294901760
        %1874 = vmatpush1.msra.mxu0 %v1873
        %v1875 = vand.u32 %v397, 4294901760
        %v1876 = vsub.f32 %v397, %v1875
        %v1877 = vand.u32 %v1876, 4294901760
        %v1878 = vsub.f32 %v1876, %v1877
        %v1879 = vand.u32 %v1878, 4294901760
        %1880 = vmatprep.mubr.f32.mxu0 %v1879
        %v1881 = vand.u32 %v331, 4294901760
        %v1882 = vsub.f32 %v331, %v1881
        %v1883 = vand.u32 %v1882, 4294901760
        %v1884 = vsub.f32 %v1882, %v1883
        %v1885 = vand.u32 %v1884, 4294901760
        %1886 = vmatmul.mubr.f32.gmra.mrb[0].mxu0 %v1885
        %v1887 = vpop.f32.mrb[0].mxu0
        %v1888 = vadd.f32 0.0, %v1887
        %v1889 = vpop.f32.mrb[0].mxu0
        %v1890 = vadd.f32 0.0, %v1889
        %1891 = vdwg.mxu0
        %v1892 = vand.u32 %v1684, 4294901760
        %v1893 = vsub.f32 %v1684, %v1892
        %v1894 = vand.u32 %v1893, 4294901760
        %v1895 = vsub.f32 %v1893, %v1894
        %v1896 = vand.u32 %v1895, 4294901760
        %1897 = vmatprep.subr.mxu0 %v1896
        %v1898 = vand.u32 %v1683, 4294901760
        %v1899 = vsub.f32 %v1683, %v1898
        %v1900 = vand.u32 %v1899, 4294901760
        %v1901 = vsub.f32 %v1899, %v1900
        %v1902 = vand.u32 %v1901, 4294901760
        %1903 = vmatpush1.msra.mxu0 %v1902
        %v1904 = vand.u32 %v1686, 4294901760
        %v1905 = vsub.f32 %v1686, %v1904
        %v1906 = vand.u32 %v1905, 4294901760
        %v1907 = vsub.f32 %v1905, %v1906
        %v1908 = vand.u32 %v1907, 4294901760
        %1909 = vmatprep.subr.mxu0 %v1908
        %v1910 = vand.u32 %v1685, 4294901760
        %v1911 = vsub.f32 %v1685, %v1910
        %v1912 = vand.u32 %v1911, 4294901760
        %v1913 = vsub.f32 %v1911, %v1912
        %v1914 = vand.u32 %v1913, 4294901760
        %1915 = vmatpush1.msra.mxu0 %v1914
        %v1916 = vand.u32 %v1688, 4294901760
        %v1917 = vsub.f32 %v1688, %v1916
        %v1918 = vand.u32 %v1917, 4294901760
        %v1919 = vsub.f32 %v1917, %v1918
        %v1920 = vand.u32 %v1919, 4294901760
        %1921 = vmatprep.subr.mxu0 %v1920
        %v1922 = vand.u32 %v1687, 4294901760
        %v1923 = vsub.f32 %v1687, %v1922
        %v1924 = vand.u32 %v1923, 4294901760
        %v1925 = vsub.f32 %v1923, %v1924
        %v1926 = vand.u32 %v1925, 4294901760
        %1927 = vmatpush1.msra.mxu0 %v1926
        %v1928 = vand.u32 %v1690, 4294901760
        %v1929 = vsub.f32 %v1690, %v1928
        %v1930 = vand.u32 %v1929, 4294901760
        %v1931 = vsub.f32 %v1929, %v1930
        %v1932 = vand.u32 %v1931, 4294901760
        %1933 = vmatprep.subr.mxu0 %v1932
        %v1934 = vand.u32 %v1689, 4294901760
        %v1935 = vsub.f32 %v1689, %v1934
        %v1936 = vand.u32 %v1935, 4294901760
        %v1937 = vsub.f32 %v1935, %v1936
        %v1938 = vand.u32 %v1937, 4294901760
        %1939 = vmatpush1.msra.mxu0 %v1938
        %v1940 = vand.u32 %v1692, 4294901760
        %v1941 = vsub.f32 %v1692, %v1940
        %v1942 = vand.u32 %v1941, 4294901760
        %v1943 = vsub.f32 %v1941, %v1942
        %v1944 = vand.u32 %v1943, 4294901760
        %1945 = vmatprep.subr.mxu0 %v1944
        %v1946 = vand.u32 %v1691, 4294901760
        %v1947 = vsub.f32 %v1691, %v1946
        %v1948 = vand.u32 %v1947, 4294901760
        %v1949 = vsub.f32 %v1947, %v1948
        %v1950 = vand.u32 %v1949, 4294901760
        %1951 = vmatpush1.msra.mxu0 %v1950
        %v1952 = vand.u32 %v1694, 4294901760
        %v1953 = vsub.f32 %v1694, %v1952
        %v1954 = vand.u32 %v1953, 4294901760
        %v1955 = vsub.f32 %v1953, %v1954
        %v1956 = vand.u32 %v1955, 4294901760
        %1957 = vmatprep.subr.mxu0 %v1956
        %v1958 = vand.u32 %v1693, 4294901760
        %v1959 = vsub.f32 %v1693, %v1958
        %v1960 = vand.u32 %v1959, 4294901760
        %v1961 = vsub.f32 %v1959, %v1960
        %v1962 = vand.u32 %v1961, 4294901760
        %1963 = vmatpush1.msra.mxu0 %v1962
        %v1964 = vand.u32 %v1696, 4294901760
        %v1965 = vsub.f32 %v1696, %v1964
        %v1966 = vand.u32 %v1965, 4294901760
        %v1967 = vsub.f32 %v1965, %v1966
        %v1968 = vand.u32 %v1967, 4294901760
        %1969 = vmatprep.subr.mxu0 %v1968
        %v1970 = vand.u32 %v1695, 4294901760
        %v1971 = vsub.f32 %v1695, %v1970
        %v1972 = vand.u32 %v1971, 4294901760
        %v1973 = vsub.f32 %v1971, %v1972
        %v1974 = vand.u32 %v1973, 4294901760
        %1975 = vmatpush1.msra.mxu0 %v1974
        %v1976 = vand.u32 %v1698, 4294901760
        %v1977 = vsub.f32 %v1698, %v1976
        %v1978 = vand.u32 %v1977, 4294901760
        %v1979 = vsub.f32 %v1977, %v1978
        %v1980 = vand.u32 %v1979, 4294901760
        %1981 = vmatprep.subr.mxu0 %v1980
        %v1982 = vand.u32 %v1697, 4294901760
        %v1983 = vsub.f32 %v1697, %v1982
        %v1984 = vand.u32 %v1983, 4294901760
        %v1985 = vsub.f32 %v1983, %v1984
        %v1986 = vand.u32 %v1985, 4294901760
        %1987 = vmatpush1.msra.mxu0 %v1986
        %v1988 = vand.u32 %v1700, 4294901760
        %v1989 = vsub.f32 %v1700, %v1988
        %v1990 = vand.u32 %v1989, 4294901760
        %v1991 = vsub.f32 %v1989, %v1990
        %v1992 = vand.u32 %v1991, 4294901760
        %1993 = vmatprep.subr.mxu0 %v1992
        %v1994 = vand.u32 %v1699, 4294901760
        %v1995 = vsub.f32 %v1699, %v1994
        %v1996 = vand.u32 %v1995, 4294901760
        %v1997 = vsub.f32 %v1995, %v1996
        %v1998 = vand.u32 %v1997, 4294901760
        %1999 = vmatpush1.msra.mxu0 %v1998
        %v2000 = vand.u32 %v1702, 4294901760
        %v2001 = vsub.f32 %v1702, %v2000
        %v2002 = vand.u32 %v2001, 4294901760
        %v2003 = vsub.f32 %v2001, %v2002
        %v2004 = vand.u32 %v2003, 4294901760
        %2005 = vmatprep.subr.mxu0 %v2004
        %v2006 = vand.u32 %v1701, 4294901760
        %v2007 = vsub.f32 %v1701, %v2006
        %v2008 = vand.u32 %v2007, 4294901760
        %v2009 = vsub.f32 %v2007, %v2008
        %v2010 = vand.u32 %v2009, 4294901760
        %2011 = vmatpush1.msra.mxu0 %v2010
        %v2012 = vand.u32 %v1704, 4294901760
        %v2013 = vsub.f32 %v1704, %v2012
        %v2014 = vand.u32 %v2013, 4294901760
        %v2015 = vsub.f32 %v2013, %v2014
        %v2016 = vand.u32 %v2015, 4294901760
        %2017 = vmatprep.subr.mxu0 %v2016
        %v2018 = vand.u32 %v1703, 4294901760
        %v2019 = vsub.f32 %v1703, %v2018
        %v2020 = vand.u32 %v2019, 4294901760
        %v2021 = vsub.f32 %v2019, %v2020
        %v2022 = vand.u32 %v2021, 4294901760
        %2023 = vmatpush1.msra.mxu0 %v2022
        %v2024 = vand.u32 %v1706, 4294901760
        %v2025 = vsub.f32 %v1706, %v2024
        %v2026 = vand.u32 %v2025, 4294901760
        %v2027 = vsub.f32 %v2025, %v2026
        %v2028 = vand.u32 %v2027, 4294901760
        %2029 = vmatprep.subr.mxu0 %v2028
        %v2030 = vand.u32 %v1705, 4294901760
        %v2031 = vsub.f32 %v1705, %v2030
        %v2032 = vand.u32 %v2031, 4294901760
        %v2033 = vsub.f32 %v2031, %v2032
        %v2034 = vand.u32 %v2033, 4294901760
        %2035 = vmatpush1.msra.mxu0 %v2034
        %v2036 = vand.u32 %v1708, 4294901760
        %v2037 = vsub.f32 %v1708, %v2036
        %v2038 = vand.u32 %v2037, 4294901760
        %v2039 = vsub.f32 %v2037, %v2038
        %v2040 = vand.u32 %v2039, 4294901760
        %2041 = vmatprep.subr.mxu0 %v2040
        %v2042 = vand.u32 %v1707, 4294901760
        %v2043 = vsub.f32 %v1707, %v2042
        %v2044 = vand.u32 %v2043, 4294901760
        %v2045 = vsub.f32 %v2043, %v2044
        %v2046 = vand.u32 %v2045, 4294901760
        %2047 = vmatpush1.msra.mxu0 %v2046
        %v2048 = vand.u32 %v1710, 4294901760
        %v2049 = vsub.f32 %v1710, %v2048
        %v2050 = vand.u32 %v2049, 4294901760
        %v2051 = vsub.f32 %v2049, %v2050
        %v2052 = vand.u32 %v2051, 4294901760
        %2053 = vmatprep.subr.mxu0 %v2052
        %v2054 = vand.u32 %v1709, 4294901760
        %v2055 = vsub.f32 %v1709, %v2054
        %v2056 = vand.u32 %v2055, 4294901760
        %v2057 = vsub.f32 %v2055, %v2056
        %v2058 = vand.u32 %v2057, 4294901760
        %2059 = vmatpush1.msra.mxu0 %v2058
        %v2060 = vand.u32 %v1712, 4294901760
        %v2061 = vsub.f32 %v1712, %v2060
        %v2062 = vand.u32 %v2061, 4294901760
        %v2063 = vsub.f32 %v2061, %v2062
        %v2064 = vand.u32 %v2063, 4294901760
        %2065 = vmatprep.subr.mxu0 %v2064
        %v2066 = vand.u32 %v1711, 4294901760
        %v2067 = vsub.f32 %v1711, %v2066
        %v2068 = vand.u32 %v2067, 4294901760
        %v2069 = vsub.f32 %v2067, %v2068
        %v2070 = vand.u32 %v2069, 4294901760
        %2071 = vmatpush1.msra.mxu0 %v2070
        %v2072 = vand.u32 %v1714, 4294901760
        %v2073 = vsub.f32 %v1714, %v2072
        %v2074 = vand.u32 %v2073, 4294901760
        %v2075 = vsub.f32 %v2073, %v2074
        %v2076 = vand.u32 %v2075, 4294901760
        %2077 = vmatprep.subr.mxu0 %v2076
        %v2078 = vand.u32 %v1713, 4294901760
        %v2079 = vsub.f32 %v1713, %v2078
        %v2080 = vand.u32 %v2079, 4294901760
        %v2081 = vsub.f32 %v2079, %v2080
        %v2082 = vand.u32 %v2081, 4294901760
        %2083 = vmatpush1.msra.mxu0 %v2082
        %v2084 = vand.u32 %v1716, 4294901760
        %v2085 = vsub.f32 %v1716, %v2084
        %v2086 = vand.u32 %v2085, 4294901760
        %v2087 = vsub.f32 %v2085, %v2086
        %v2088 = vand.u32 %v2087, 4294901760
        %2089 = vmatprep.subr.mxu0 %v2088
        %v2090 = vand.u32 %v1715, 4294901760
        %v2091 = vsub.f32 %v1715, %v2090
        %v2092 = vand.u32 %v2091, 4294901760
        %v2093 = vsub.f32 %v2091, %v2092
        %v2094 = vand.u32 %v2093, 4294901760
        %2095 = vmatpush1.msra.mxu0 %v2094
        %v2096 = vand.u32 %v1718, 4294901760
        %v2097 = vsub.f32 %v1718, %v2096
        %v2098 = vand.u32 %v2097, 4294901760
        %v2099 = vsub.f32 %v2097, %v2098
        %v2100 = vand.u32 %v2099, 4294901760
        %2101 = vmatprep.subr.mxu0 %v2100
        %v2102 = vand.u32 %v1717, 4294901760
        %v2103 = vsub.f32 %v1717, %v2102
        %v2104 = vand.u32 %v2103, 4294901760
        %v2105 = vsub.f32 %v2103, %v2104
        %v2106 = vand.u32 %v2105, 4294901760
        %2107 = vmatpush1.msra.mxu0 %v2106
        %v2108 = vand.u32 %v1720, 4294901760
        %v2109 = vsub.f32 %v1720, %v2108
        %v2110 = vand.u32 %v2109, 4294901760
        %v2111 = vsub.f32 %v2109, %v2110
        %v2112 = vand.u32 %v2111, 4294901760
        %2113 = vmatprep.subr.mxu0 %v2112
        %v2114 = vand.u32 %v1719, 4294901760
        %v2115 = vsub.f32 %v1719, %v2114
        %v2116 = vand.u32 %v2115, 4294901760
        %v2117 = vsub.f32 %v2115, %v2116
        %v2118 = vand.u32 %v2117, 4294901760
        %2119 = vmatpush1.msra.mxu0 %v2118
        %v2120 = vand.u32 %v1722, 4294901760
        %v2121 = vsub.f32 %v1722, %v2120
        %v2122 = vand.u32 %v2121, 4294901760
        %v2123 = vsub.f32 %v2121, %v2122
        %v2124 = vand.u32 %v2123, 4294901760
        %2125 = vmatprep.subr.mxu0 %v2124
        %v2126 = vand.u32 %v1721, 4294901760
        %v2127 = vsub.f32 %v1721, %v2126
        %v2128 = vand.u32 %v2127, 4294901760
        %v2129 = vsub.f32 %v2127, %v2128
        %v2130 = vand.u32 %v2129, 4294901760
        %2131 = vmatpush1.msra.mxu0 %v2130
        %v2132 = vand.u32 %v1724, 4294901760
        %v2133 = vsub.f32 %v1724, %v2132
        %v2134 = vand.u32 %v2133, 4294901760
        %v2135 = vsub.f32 %v2133, %v2134
        %v2136 = vand.u32 %v2135, 4294901760
        %2137 = vmatprep.subr.mxu0 %v2136
        %v2138 = vand.u32 %v1723, 4294901760
        %v2139 = vsub.f32 %v1723, %v2138
        %v2140 = vand.u32 %v2139, 4294901760
        %v2141 = vsub.f32 %v2139, %v2140
        %v2142 = vand.u32 %v2141, 4294901760
        %2143 = vmatpush1.msra.mxu0 %v2142
        %v2144 = vand.u32 %v1726, 4294901760
        %v2145 = vsub.f32 %v1726, %v2144
        %v2146 = vand.u32 %v2145, 4294901760
        %v2147 = vsub.f32 %v2145, %v2146
        %v2148 = vand.u32 %v2147, 4294901760
        %2149 = vmatprep.subr.mxu0 %v2148
        %v2150 = vand.u32 %v1725, 4294901760
        %v2151 = vsub.f32 %v1725, %v2150
        %v2152 = vand.u32 %v2151, 4294901760
        %v2153 = vsub.f32 %v2151, %v2152
        %v2154 = vand.u32 %v2153, 4294901760
        %2155 = vmatpush1.msra.mxu0 %v2154
        %v2156 = vand.u32 %v1728, 4294901760
        %v2157 = vsub.f32 %v1728, %v2156
        %v2158 = vand.u32 %v2157, 4294901760
        %v2159 = vsub.f32 %v2157, %v2158
        %v2160 = vand.u32 %v2159, 4294901760
        %2161 = vmatprep.subr.mxu0 %v2160
        %v2162 = vand.u32 %v1727, 4294901760
        %v2163 = vsub.f32 %v1727, %v2162
        %v2164 = vand.u32 %v2163, 4294901760
        %v2165 = vsub.f32 %v2163, %v2164
        %v2166 = vand.u32 %v2165, 4294901760
        %2167 = vmatpush1.msra.mxu0 %v2166
        %v2168 = vand.u32 %v1730, 4294901760
        %v2169 = vsub.f32 %v1730, %v2168
        %v2170 = vand.u32 %v2169, 4294901760
        %v2171 = vsub.f32 %v2169, %v2170
        %v2172 = vand.u32 %v2171, 4294901760
        %2173 = vmatprep.subr.mxu0 %v2172
        %v2174 = vand.u32 %v1729, 4294901760
        %v2175 = vsub.f32 %v1729, %v2174
        %v2176 = vand.u32 %v2175, 4294901760
        %v2177 = vsub.f32 %v2175, %v2176
        %v2178 = vand.u32 %v2177, 4294901760
        %2179 = vmatpush1.msra.mxu0 %v2178
        %v2180 = vand.u32 %v1732, 4294901760
        %v2181 = vsub.f32 %v1732, %v2180
        %v2182 = vand.u32 %v2181, 4294901760
        %v2183 = vsub.f32 %v2181, %v2182
        %v2184 = vand.u32 %v2183, 4294901760
        %2185 = vmatprep.subr.mxu0 %v2184
        %v2186 = vand.u32 %v1731, 4294901760
        %v2187 = vsub.f32 %v1731, %v2186
        %v2188 = vand.u32 %v2187, 4294901760
        %v2189 = vsub.f32 %v2187, %v2188
        %v2190 = vand.u32 %v2189, 4294901760
        %2191 = vmatpush1.msra.mxu0 %v2190
        %v2192 = vand.u32 %v1734, 4294901760
        %v2193 = vsub.f32 %v1734, %v2192
        %v2194 = vand.u32 %v2193, 4294901760
        %v2195 = vsub.f32 %v2193, %v2194
        %v2196 = vand.u32 %v2195, 4294901760
        %2197 = vmatprep.subr.mxu0 %v2196
        %v2198 = vand.u32 %v1733, 4294901760
        %v2199 = vsub.f32 %v1733, %v2198
        %v2200 = vand.u32 %v2199, 4294901760
        %v2201 = vsub.f32 %v2199, %v2200
        %v2202 = vand.u32 %v2201, 4294901760
        %2203 = vmatpush1.msra.mxu0 %v2202
        %v2204 = vand.u32 %v1736, 4294901760
        %v2205 = vsub.f32 %v1736, %v2204
        %v2206 = vand.u32 %v2205, 4294901760
        %v2207 = vsub.f32 %v2205, %v2206
        %v2208 = vand.u32 %v2207, 4294901760
        %2209 = vmatprep.subr.mxu0 %v2208
        %v2210 = vand.u32 %v1735, 4294901760
        %v2211 = vsub.f32 %v1735, %v2210
        %v2212 = vand.u32 %v2211, 4294901760
        %v2213 = vsub.f32 %v2211, %v2212
        %v2214 = vand.u32 %v2213, 4294901760
        %2215 = vmatpush1.msra.mxu0 %v2214
        %v2216 = vand.u32 %v1738, 4294901760
        %v2217 = vsub.f32 %v1738, %v2216
        %v2218 = vand.u32 %v2217, 4294901760
        %v2219 = vsub.f32 %v2217, %v2218
        %v2220 = vand.u32 %v2219, 4294901760
        %2221 = vmatprep.subr.mxu0 %v2220
        %v2222 = vand.u32 %v1737, 4294901760
        %v2223 = vsub.f32 %v1737, %v2222
        %v2224 = vand.u32 %v2223, 4294901760
        %v2225 = vsub.f32 %v2223, %v2224
        %v2226 = vand.u32 %v2225, 4294901760
        %2227 = vmatpush1.msra.mxu0 %v2226
        %v2228 = vand.u32 %v1740, 4294901760
        %v2229 = vsub.f32 %v1740, %v2228
        %v2230 = vand.u32 %v2229, 4294901760
        %v2231 = vsub.f32 %v2229, %v2230
        %v2232 = vand.u32 %v2231, 4294901760
        %2233 = vmatprep.subr.mxu0 %v2232
        %v2234 = vand.u32 %v1739, 4294901760
        %v2235 = vsub.f32 %v1739, %v2234
        %v2236 = vand.u32 %v2235, 4294901760
        %v2237 = vsub.f32 %v2235, %v2236
        %v2238 = vand.u32 %v2237, 4294901760
        %2239 = vmatpush1.msra.mxu0 %v2238
        %v2240 = vand.u32 %v1742, 4294901760
        %v2241 = vsub.f32 %v1742, %v2240
        %v2242 = vand.u32 %v2241, 4294901760
        %v2243 = vsub.f32 %v2241, %v2242
        %v2244 = vand.u32 %v2243, 4294901760
        %2245 = vmatprep.subr.mxu0 %v2244
        %v2246 = vand.u32 %v1741, 4294901760
        %v2247 = vsub.f32 %v1741, %v2246
        %v2248 = vand.u32 %v2247, 4294901760
        %v2249 = vsub.f32 %v2247, %v2248
        %v2250 = vand.u32 %v2249, 4294901760
        %2251 = vmatpush1.msra.mxu0 %v2250
        %v2252 = vand.u32 %v1744, 4294901760
        %v2253 = vsub.f32 %v1744, %v2252
        %v2254 = vand.u32 %v2253, 4294901760
        %v2255 = vsub.f32 %v2253, %v2254
        %v2256 = vand.u32 %v2255, 4294901760
        %2257 = vmatprep.subr.mxu0 %v2256
        %v2258 = vand.u32 %v1743, 4294901760
        %v2259 = vsub.f32 %v1743, %v2258
        %v2260 = vand.u32 %v2259, 4294901760
        %v2261 = vsub.f32 %v2259, %v2260
        %v2262 = vand.u32 %v2261, 4294901760
        %2263 = vmatpush1.msra.mxu0 %v2262
        %v2264 = vand.u32 %v1746, 4294901760
        %v2265 = vsub.f32 %v1746, %v2264
        %v2266 = vand.u32 %v2265, 4294901760
        %v2267 = vsub.f32 %v2265, %v2266
        %v2268 = vand.u32 %v2267, 4294901760
        %2269 = vmatprep.subr.mxu0 %v2268
        %v2270 = vand.u32 %v1745, 4294901760
        %v2271 = vsub.f32 %v1745, %v2270
        %v2272 = vand.u32 %v2271, 4294901760
        %v2273 = vsub.f32 %v2271, %v2272
        %v2274 = vand.u32 %v2273, 4294901760
        %2275 = vmatpush1.msra.mxu0 %v2274
        %v2276 = vand.u32 %v397, 4294901760
        %2277 = vmatprep.mubr.f32.mxu0 %v2276
        %v2278 = vand.u32 %v331, 4294901760
        %2279 = vmatmul.mubr.f32.gmra.mrb[0].mxu0 %v2278
        %v2280 = vpop.f32.mrb[0].mxu0
        %v2281 = vadd.f32 %v1888, %v2280
        %v2282 = vpop.f32.mrb[0].mxu0
        %v2283 = vadd.f32 %v1890, %v2282
        %2284 = vdwg.mxu0
        %v2285 = vand.u32 %v1684, 4294901760
        %v2286 = vsub.f32 %v1684, %v2285
        %2287 = vmatprep.subr.mxu0 %v2286
        %v2288 = vand.u32 %v1683, 4294901760
        %v2289 = vsub.f32 %v1683, %v2288
        %2290 = vmatpush1.msra.mxu0 %v2289
        %v2291 = vand.u32 %v1686, 4294901760
        %v2292 = vsub.f32 %v1686, %v2291
        %2293 = vmatprep.subr.mxu0 %v2292
        %v2294 = vand.u32 %v1685, 4294901760
        %v2295 = vsub.f32 %v1685, %v2294
        %2296 = vmatpush1.msra.mxu0 %v2295
        %v2297 = vand.u32 %v1688, 4294901760
        %v2298 = vsub.f32 %v1688, %v2297
        %2299 = vmatprep.subr.mxu0 %v2298
        %v2300 = vand.u32 %v1687, 4294901760
        %v2301 = vsub.f32 %v1687, %v2300
        %2302 = vmatpush1.msra.mxu0 %v2301
        %v2303 = vand.u32 %v1690, 4294901760
        %v2304 = vsub.f32 %v1690, %v2303
        %2305 = vmatprep.subr.mxu0 %v2304
        %v2306 = vand.u32 %v1689, 4294901760
        %v2307 = vsub.f32 %v1689, %v2306
        %2308 = vmatpush1.msra.mxu0 %v2307
        %v2309 = vand.u32 %v1692, 4294901760
        %v2310 = vsub.f32 %v1692, %v2309
        %2311 = vmatprep.subr.mxu0 %v2310
        %v2312 = vand.u32 %v1691, 4294901760
        %v2313 = vsub.f32 %v1691, %v2312
        %2314 = vmatpush1.msra.mxu0 %v2313
        %v2315 = vand.u32 %v1694, 4294901760
        %v2316 = vsub.f32 %v1694, %v2315
        %2317 = vmatprep.subr.mxu0 %v2316
        %v2318 = vand.u32 %v1693, 4294901760
        %v2319 = vsub.f32 %v1693, %v2318
        %2320 = vmatpush1.msra.mxu0 %v2319
        %v2321 = vand.u32 %v1696, 4294901760
        %v2322 = vsub.f32 %v1696, %v2321
        %2323 = vmatprep.subr.mxu0 %v2322
        %v2324 = vand.u32 %v1695, 4294901760
        %v2325 = vsub.f32 %v1695, %v2324
        %2326 = vmatpush1.msra.mxu0 %v2325
        %v2327 = vand.u32 %v1698, 4294901760
        %v2328 = vsub.f32 %v1698, %v2327
        %2329 = vmatprep.subr.mxu0 %v2328
        %v2330 = vand.u32 %v1697, 4294901760
        %v2331 = vsub.f32 %v1697, %v2330
        %2332 = vmatpush1.msra.mxu0 %v2331
        %v2333 = vand.u32 %v1700, 4294901760
        %v2334 = vsub.f32 %v1700, %v2333
        %2335 = vmatprep.subr.mxu0 %v2334
        %v2336 = vand.u32 %v1699, 4294901760
        %v2337 = vsub.f32 %v1699, %v2336
        %2338 = vmatpush1.msra.mxu0 %v2337
        %v2339 = vand.u32 %v1702, 4294901760
        %v2340 = vsub.f32 %v1702, %v2339
        %2341 = vmatprep.subr.mxu0 %v2340
        %v2342 = vand.u32 %v1701, 4294901760
        %v2343 = vsub.f32 %v1701, %v2342
        %2344 = vmatpush1.msra.mxu0 %v2343
        %v2345 = vand.u32 %v1704, 4294901760
        %v2346 = vsub.f32 %v1704, %v2345
        %2347 = vmatprep.subr.mxu0 %v2346
        %v2348 = vand.u32 %v1703, 4294901760
        %v2349 = vsub.f32 %v1703, %v2348
        %2350 = vmatpush1.msra.mxu0 %v2349
        %v2351 = vand.u32 %v1706, 4294901760
        %v2352 = vsub.f32 %v1706, %v2351
        %2353 = vmatprep.subr.mxu0 %v2352
        %v2354 = vand.u32 %v1705, 4294901760
        %v2355 = vsub.f32 %v1705, %v2354
        %2356 = vmatpush1.msra.mxu0 %v2355
        %v2357 = vand.u32 %v1708, 4294901760
        %v2358 = vsub.f32 %v1708, %v2357
        %2359 = vmatprep.subr.mxu0 %v2358
        %v2360 = vand.u32 %v1707, 4294901760
        %v2361 = vsub.f32 %v1707, %v2360
        %2362 = vmatpush1.msra.mxu0 %v2361
        %v2363 = vand.u32 %v1710, 4294901760
        %v2364 = vsub.f32 %v1710, %v2363
        %2365 = vmatprep.subr.mxu0 %v2364
        %v2366 = vand.u32 %v1709, 4294901760
        %v2367 = vsub.f32 %v1709, %v2366
        %2368 = vmatpush1.msra.mxu0 %v2367
        %v2369 = vand.u32 %v1712, 4294901760
        %v2370 = vsub.f32 %v1712, %v2369
        %2371 = vmatprep.subr.mxu0 %v2370
        %v2372 = vand.u32 %v1711, 4294901760
        %v2373 = vsub.f32 %v1711, %v2372
        %2374 = vmatpush1.msra.mxu0 %v2373
        %v2375 = vand.u32 %v1714, 4294901760
        %v2376 = vsub.f32 %v1714, %v2375
        %2377 = vmatprep.subr.mxu0 %v2376
        %v2378 = vand.u32 %v1713, 4294901760
        %v2379 = vsub.f32 %v1713, %v2378
        %2380 = vmatpush1.msra.mxu0 %v2379
        %v2381 = vand.u32 %v1716, 4294901760
        %v2382 = vsub.f32 %v1716, %v2381
        %2383 = vmatprep.subr.mxu0 %v2382
        %v2384 = vand.u32 %v1715, 4294901760
        %v2385 = vsub.f32 %v1715, %v2384
        %2386 = vmatpush1.msra.mxu0 %v2385
        %v2387 = vand.u32 %v1718, 4294901760
        %v2388 = vsub.f32 %v1718, %v2387
        %2389 = vmatprep.subr.mxu0 %v2388
        %v2390 = vand.u32 %v1717, 4294901760
        %v2391 = vsub.f32 %v1717, %v2390
        %2392 = vmatpush1.msra.mxu0 %v2391
        %v2393 = vand.u32 %v1720, 4294901760
        %v2394 = vsub.f32 %v1720, %v2393
        %2395 = vmatprep.subr.mxu0 %v2394
        %v2396 = vand.u32 %v1719, 4294901760
        %v2397 = vsub.f32 %v1719, %v2396
        %2398 = vmatpush1.msra.mxu0 %v2397
        %v2399 = vand.u32 %v1722, 4294901760
        %v2400 = vsub.f32 %v1722, %v2399
        %2401 = vmatprep.subr.mxu0 %v2400
        %v2402 = vand.u32 %v1721, 4294901760
        %v2403 = vsub.f32 %v1721, %v2402
        %2404 = vmatpush1.msra.mxu0 %v2403
        %v2405 = vand.u32 %v1724, 4294901760
        %v2406 = vsub.f32 %v1724, %v2405
        %2407 = vmatprep.subr.mxu0 %v2406
        %v2408 = vand.u32 %v1723, 4294901760
        %v2409 = vsub.f32 %v1723, %v2408
        %2410 = vmatpush1.msra.mxu0 %v2409
        %v2411 = vand.u32 %v1726, 4294901760
        %v2412 = vsub.f32 %v1726, %v2411
        %2413 = vmatprep.subr.mxu0 %v2412
        %v2414 = vand.u32 %v1725, 4294901760
        %v2415 = vsub.f32 %v1725, %v2414
        %2416 = vmatpush1.msra.mxu0 %v2415
        %v2417 = vand.u32 %v1728, 4294901760
        %v2418 = vsub.f32 %v1728, %v2417
        %2419 = vmatprep.subr.mxu0 %v2418
        %v2420 = vand.u32 %v1727, 4294901760
        %v2421 = vsub.f32 %v1727, %v2420
        %2422 = vmatpush1.msra.mxu0 %v2421
        %v2423 = vand.u32 %v1730, 4294901760
        %v2424 = vsub.f32 %v1730, %v2423
        %2425 = vmatprep.subr.mxu0 %v2424
        %v2426 = vand.u32 %v1729, 4294901760
        %v2427 = vsub.f32 %v1729, %v2426
        %2428 = vmatpush1.msra.mxu0 %v2427
        %v2429 = vand.u32 %v1732, 4294901760
        %v2430 = vsub.f32 %v1732, %v2429
        %2431 = vmatprep.subr.mxu0 %v2430
        %v2432 = vand.u32 %v1731, 4294901760
        %v2433 = vsub.f32 %v1731, %v2432
        %2434 = vmatpush1.msra.mxu0 %v2433
        %v2435 = vand.u32 %v1734, 4294901760
        %v2436 = vsub.f32 %v1734, %v2435
        %2437 = vmatprep.subr.mxu0 %v2436
        %v2438 = vand.u32 %v1733, 4294901760
        %v2439 = vsub.f32 %v1733, %v2438
        %2440 = vmatpush1.msra.mxu0 %v2439
        %v2441 = vand.u32 %v1736, 4294901760
        %v2442 = vsub.f32 %v1736, %v2441
        %2443 = vmatprep.subr.mxu0 %v2442
        %v2444 = vand.u32 %v1735, 4294901760
        %v2445 = vsub.f32 %v1735, %v2444
        %2446 = vmatpush1.msra.mxu0 %v2445
        %v2447 = vand.u32 %v1738, 4294901760
        %v2448 = vsub.f32 %v1738, %v2447
        %2449 = vmatprep.subr.mxu0 %v2448
        %v2450 = vand.u32 %v1737, 4294901760
        %v2451 = vsub.f32 %v1737, %v2450
        %2452 = vmatpush1.msra.mxu0 %v2451
        %v2453 = vand.u32 %v1740, 4294901760
        %v2454 = vsub.f32 %v1740, %v2453
        %2455 = vmatprep.subr.mxu0 %v2454
        %v2456 = vand.u32 %v1739, 4294901760
        %v2457 = vsub.f32 %v1739, %v2456
        %2458 = vmatpush1.msra.mxu0 %v2457
        %v2459 = vand.u32 %v1742, 4294901760
        %v2460 = vsub.f32 %v1742, %v2459
        %2461 = vmatprep.subr.mxu0 %v2460
        %v2462 = vand.u32 %v1741, 4294901760
        %v2463 = vsub.f32 %v1741, %v2462
        %2464 = vmatpush1.msra.mxu0 %v2463
        %v2465 = vand.u32 %v1744, 4294901760
        %v2466 = vsub.f32 %v1744, %v2465
        %2467 = vmatprep.subr.mxu0 %v2466
        %v2468 = vand.u32 %v1743, 4294901760
        %v2469 = vsub.f32 %v1743, %v2468
        %2470 = vmatpush1.msra.mxu0 %v2469
        %v2471 = vand.u32 %v1746, 4294901760
        %v2472 = vsub.f32 %v1746, %v2471
        %2473 = vmatprep.subr.mxu0 %v2472
        %v2474 = vand.u32 %v1745, 4294901760
        %v2475 = vsub.f32 %v1745, %v2474
        %2476 = vmatpush1.msra.mxu0 %v2475
        %v2477 = vand.u32 %v397, 4294901760
        %v2478 = vsub.f32 %v397, %v2477
        %2479 = vmatprep.mubr.f32.mxu0 %v2478
        %v2480 = vand.u32 %v331, 4294901760
        %v2481 = vsub.f32 %v331, %v2480
        %2482 = vmatmul.mubr.f32.gmra.mrb[0].mxu0 %v2481
        %v2483 = vpop.f32.mrb[0].mxu0
        %v2484 = vadd.f32 %v2281, %v2483
        %v2485 = vpop.f32.mrb[0].mxu0
        %v2486 = vadd.f32 %v2283, %v2485
        %2487 = vdwg.mxu0
        %v2488 = vand.u32 %v1684, 4294901760
        %2489 = vmatprep.subr.mxu0 %v2488
        %v2490 = vand.u32 %v1683, 4294901760
        %2491 = vmatpush1.msra.mxu0 %v2490
        %v2492 = vand.u32 %v1686, 4294901760
        %2493 = vmatprep.subr.mxu0 %v2492
        %v2494 = vand.u32 %v1685, 4294901760
        %2495 = vmatpush1.msra.mxu0 %v2494
        %v2496 = vand.u32 %v1688, 4294901760
        %2497 = vmatprep.subr.mxu0 %v2496
        %v2498 = vand.u32 %v1687, 4294901760
        %2499 = vmatpush1.msra.mxu0 %v2498
        %v2500 = vand.u32 %v1690, 4294901760
        %2501 = vmatprep.subr.mxu0 %v2500
        %v2502 = vand.u32 %v1689, 4294901760
        %2503 = vmatpush1.msra.mxu0 %v2502
        %v2504 = vand.u32 %v1692, 4294901760
        %2505 = vmatprep.subr.mxu0 %v2504
        %v2506 = vand.u32 %v1691, 4294901760
        %2507 = vmatpush1.msra.mxu0 %v2506
        %v2508 = vand.u32 %v1694, 4294901760
        %2509 = vmatprep.subr.mxu0 %v2508
        %v2510 = vand.u32 %v1693, 4294901760
        %2511 = vmatpush1.msra.mxu0 %v2510
        %v2512 = vand.u32 %v1696, 4294901760
        %2513 = vmatprep.subr.mxu0 %v2512
        %v2514 = vand.u32 %v1695, 4294901760
        %2515 = vmatpush1.msra.mxu0 %v2514
        %v2516 = vand.u32 %v1698, 4294901760
        %2517 = vmatprep.subr.mxu0 %v2516
        %v2518 = vand.u32 %v1697, 4294901760
        %2519 = vmatpush1.msra.mxu0 %v2518
        %v2520 = vand.u32 %v1700, 4294901760
        %2521 = vmatprep.subr.mxu0 %v2520
        %v2522 = vand.u32 %v1699, 4294901760
        %2523 = vmatpush1.msra.mxu0 %v2522
        %v2524 = vand.u32 %v1702, 4294901760
        %2525 = vmatprep.subr.mxu0 %v2524
        %v2526 = vand.u32 %v1701, 4294901760
        %2527 = vmatpush1.msra.mxu0 %v2526
        %v2528 = vand.u32 %v1704, 4294901760
        %2529 = vmatprep.subr.mxu0 %v2528
        %v2530 = vand.u32 %v1703, 4294901760
        %2531 = vmatpush1.msra.mxu0 %v2530
        %v2532 = vand.u32 %v1706, 4294901760
        %2533 = vmatprep.subr.mxu0 %v2532
        %v2534 = vand.u32 %v1705, 4294901760
        %2535 = vmatpush1.msra.mxu0 %v2534
        %v2536 = vand.u32 %v1708, 4294901760
        %2537 = vmatprep.subr.mxu0 %v2536
        %v2538 = vand.u32 %v1707, 4294901760
        %2539 = vmatpush1.msra.mxu0 %v2538
        %v2540 = vand.u32 %v1710, 4294901760
        %2541 = vmatprep.subr.mxu0 %v2540
        %v2542 = vand.u32 %v1709, 4294901760
        %2543 = vmatpush1.msra.mxu0 %v2542
        %v2544 = vand.u32 %v1712, 4294901760
        %2545 = vmatprep.subr.mxu0 %v2544
        %v2546 = vand.u32 %v1711, 4294901760
        %2547 = vmatpush1.msra.mxu0 %v2546
        %v2548 = vand.u32 %v1714, 4294901760
        %2549 = vmatprep.subr.mxu0 %v2548
        %v2550 = vand.u32 %v1713, 4294901760
        %2551 = vmatpush1.msra.mxu0 %v2550
        %v2552 = vand.u32 %v1716, 4294901760
        %2553 = vmatprep.subr.mxu0 %v2552
        %v2554 = vand.u32 %v1715, 4294901760
        %2555 = vmatpush1.msra.mxu0 %v2554
        %v2556 = vand.u32 %v1718, 4294901760
        %2557 = vmatprep.subr.mxu0 %v2556
        %v2558 = vand.u32 %v1717, 4294901760
        %2559 = vmatpush1.msra.mxu0 %v2558
        %v2560 = vand.u32 %v1720, 4294901760
        %2561 = vmatprep.subr.mxu0 %v2560
        %v2562 = vand.u32 %v1719, 4294901760
        %2563 = vmatpush1.msra.mxu0 %v2562
        %v2564 = vand.u32 %v1722, 4294901760
        %2565 = vmatprep.subr.mxu0 %v2564
        %v2566 = vand.u32 %v1721, 4294901760
        %2567 = vmatpush1.msra.mxu0 %v2566
        %v2568 = vand.u32 %v1724, 4294901760
        %2569 = vmatprep.subr.mxu0 %v2568
        %v2570 = vand.u32 %v1723, 4294901760
        %2571 = vmatpush1.msra.mxu0 %v2570
        %v2572 = vand.u32 %v1726, 4294901760
        %2573 = vmatprep.subr.mxu0 %v2572
        %v2574 = vand.u32 %v1725, 4294901760
        %2575 = vmatpush1.msra.mxu0 %v2574
        %v2576 = vand.u32 %v1728, 4294901760
        %2577 = vmatprep.subr.mxu0 %v2576
        %v2578 = vand.u32 %v1727, 4294901760
        %2579 = vmatpush1.msra.mxu0 %v2578
        %v2580 = vand.u32 %v1730, 4294901760
        %2581 = vmatprep.subr.mxu0 %v2580
        %v2582 = vand.u32 %v1729, 4294901760
        %2583 = vmatpush1.msra.mxu0 %v2582
        %v2584 = vand.u32 %v1732, 4294901760
        %2585 = vmatprep.subr.mxu0 %v2584
        %v2586 = vand.u32 %v1731, 4294901760
        %2587 = vmatpush1.msra.mxu0 %v2586
        %v2588 = vand.u32 %v1734, 4294901760
        %2589 = vmatprep.subr.mxu0 %v2588
        %v2590 = vand.u32 %v1733, 4294901760
        %2591 = vmatpush1.msra.mxu0 %v2590
        %v2592 = vand.u32 %v1736, 4294901760
        %2593 = vmatprep.subr.mxu0 %v2592
        %v2594 = vand.u32 %v1735, 4294901760
        %2595 = vmatpush1.msra.mxu0 %v2594
        %v2596 = vand.u32 %v1738, 4294901760
        %2597 = vmatprep.subr.mxu0 %v2596
        %v2598 = vand.u32 %v1737, 4294901760
        %2599 = vmatpush1.msra.mxu0 %v2598
        %v2600 = vand.u32 %v1740, 4294901760
        %2601 = vmatprep.subr.mxu0 %v2600
        %v2602 = vand.u32 %v1739, 4294901760
        %2603 = vmatpush1.msra.mxu0 %v2602
        %v2604 = vand.u32 %v1742, 4294901760
        %2605 = vmatprep.subr.mxu0 %v2604
        %v2606 = vand.u32 %v1741, 4294901760
        %2607 = vmatpush1.msra.mxu0 %v2606
        %v2608 = vand.u32 %v1744, 4294901760
        %2609 = vmatprep.subr.mxu0 %v2608
        %v2610 = vand.u32 %v1743, 4294901760
        %2611 = vmatpush1.msra.mxu0 %v2610
        %v2612 = vand.u32 %v1746, 4294901760
        %2613 = vmatprep.subr.mxu0 %v2612
        %v2614 = vand.u32 %v1745, 4294901760
        %2615 = vmatpush1.msra.mxu0 %v2614
        %v2616 = vand.u32 %v397, 4294901760
        %v2617 = vsub.f32 %v397, %v2616
        %v2618 = vand.u32 %v2617, 4294901760
        %2619 = vmatprep.mubr.f32.mxu0 %v2618
        %v2620 = vand.u32 %v331, 4294901760
        %v2621 = vsub.f32 %v331, %v2620
        %v2622 = vand.u32 %v2621, 4294901760
        %2623 = vmatmul.mubr.f32.gmra.mrb[0].mxu0 %v2622
        %v2624 = vpop.f32.mrb[0].mxu0
        %v2625 = vadd.f32 %v2484, %v2624
        %v2626 = vpop.f32.mrb[0].mxu0
        %v2627 = vadd.f32 %v2486, %v2626
        %2628 = vdwg.mxu0
        %v2629 = vand.u32 %v1684, 4294901760
        %v2630 = vsub.f32 %v1684, %v2629
        %v2631 = vand.u32 %v2630, 4294901760
        %2632 = vmatprep.subr.mxu0 %v2631
        %v2633 = vand.u32 %v1683, 4294901760
        %v2634 = vsub.f32 %v1683, %v2633
        %v2635 = vand.u32 %v2634, 4294901760
        %2636 = vmatpush1.msra.mxu0 %v2635
        %v2637 = vand.u32 %v1686, 4294901760
        %v2638 = vsub.f32 %v1686, %v2637
        %v2639 = vand.u32 %v2638, 4294901760
        %2640 = vmatprep.subr.mxu0 %v2639
        %v2641 = vand.u32 %v1685, 4294901760
        %v2642 = vsub.f32 %v1685, %v2641
        %v2643 = vand.u32 %v2642, 4294901760
        %2644 = vmatpush1.msra.mxu0 %v2643
        %v2645 = vand.u32 %v1688, 4294901760
        %v2646 = vsub.f32 %v1688, %v2645
        %v2647 = vand.u32 %v2646, 4294901760
        %2648 = vmatprep.subr.mxu0 %v2647
        %v2649 = vand.u32 %v1687, 4294901760
        %v2650 = vsub.f32 %v1687, %v2649
        %v2651 = vand.u32 %v2650, 4294901760
        %2652 = vmatpush1.msra.mxu0 %v2651
        %v2653 = vand.u32 %v1690, 4294901760
        %v2654 = vsub.f32 %v1690, %v2653
        %v2655 = vand.u32 %v2654, 4294901760
        %2656 = vmatprep.subr.mxu0 %v2655
        %v2657 = vand.u32 %v1689, 4294901760
        %v2658 = vsub.f32 %v1689, %v2657
        %v2659 = vand.u32 %v2658, 4294901760
        %2660 = vmatpush1.msra.mxu0 %v2659
        %v2661 = vand.u32 %v1692, 4294901760
        %v2662 = vsub.f32 %v1692, %v2661
        %v2663 = vand.u32 %v2662, 4294901760
        %2664 = vmatprep.subr.mxu0 %v2663
        %v2665 = vand.u32 %v1691, 4294901760
        %v2666 = vsub.f32 %v1691, %v2665
        %v2667 = vand.u32 %v2666, 4294901760
        %2668 = vmatpush1.msra.mxu0 %v2667
        %v2669 = vand.u32 %v1694, 4294901760
        %v2670 = vsub.f32 %v1694, %v2669
        %v2671 = vand.u32 %v2670, 4294901760
        %2672 = vmatprep.subr.mxu0 %v2671
        %v2673 = vand.u32 %v1693, 4294901760
        %v2674 = vsub.f32 %v1693, %v2673
        %v2675 = vand.u32 %v2674, 4294901760
        %2676 = vmatpush1.msra.mxu0 %v2675
        %v2677 = vand.u32 %v1696, 4294901760
        %v2678 = vsub.f32 %v1696, %v2677
        %v2679 = vand.u32 %v2678, 4294901760
        %2680 = vmatprep.subr.mxu0 %v2679
        %v2681 = vand.u32 %v1695, 4294901760
        %v2682 = vsub.f32 %v1695, %v2681
        %v2683 = vand.u32 %v2682, 4294901760
        %2684 = vmatpush1.msra.mxu0 %v2683
        %v2685 = vand.u32 %v1698, 4294901760
        %v2686 = vsub.f32 %v1698, %v2685
        %v2687 = vand.u32 %v2686, 4294901760
        %2688 = vmatprep.subr.mxu0 %v2687
        %v2689 = vand.u32 %v1697, 4294901760
        %v2690 = vsub.f32 %v1697, %v2689
        %v2691 = vand.u32 %v2690, 4294901760
        %2692 = vmatpush1.msra.mxu0 %v2691
        %v2693 = vand.u32 %v1700, 4294901760
        %v2694 = vsub.f32 %v1700, %v2693
        %v2695 = vand.u32 %v2694, 4294901760
        %2696 = vmatprep.subr.mxu0 %v2695
        %v2697 = vand.u32 %v1699, 4294901760
        %v2698 = vsub.f32 %v1699, %v2697
        %v2699 = vand.u32 %v2698, 4294901760
        %2700 = vmatpush1.msra.mxu0 %v2699
        %v2701 = vand.u32 %v1702, 4294901760
        %v2702 = vsub.f32 %v1702, %v2701
        %v2703 = vand.u32 %v2702, 4294901760
        %2704 = vmatprep.subr.mxu0 %v2703
        %v2705 = vand.u32 %v1701, 4294901760
        %v2706 = vsub.f32 %v1701, %v2705
        %v2707 = vand.u32 %v2706, 4294901760
        %2708 = vmatpush1.msra.mxu0 %v2707
        %v2709 = vand.u32 %v1704, 4294901760
        %v2710 = vsub.f32 %v1704, %v2709
        %v2711 = vand.u32 %v2710, 4294901760
        %2712 = vmatprep.subr.mxu0 %v2711
        %v2713 = vand.u32 %v1703, 4294901760
        %v2714 = vsub.f32 %v1703, %v2713
        %v2715 = vand.u32 %v2714, 4294901760
        %2716 = vmatpush1.msra.mxu0 %v2715
        %v2717 = vand.u32 %v1706, 4294901760
        %v2718 = vsub.f32 %v1706, %v2717
        %v2719 = vand.u32 %v2718, 4294901760
        %2720 = vmatprep.subr.mxu0 %v2719
        %v2721 = vand.u32 %v1705, 4294901760
        %v2722 = vsub.f32 %v1705, %v2721
        %v2723 = vand.u32 %v2722, 4294901760
        %2724 = vmatpush1.msra.mxu0 %v2723
        %v2725 = vand.u32 %v1708, 4294901760
        %v2726 = vsub.f32 %v1708, %v2725
        %v2727 = vand.u32 %v2726, 4294901760
        %2728 = vmatprep.subr.mxu0 %v2727
        %v2729 = vand.u32 %v1707, 4294901760
        %v2730 = vsub.f32 %v1707, %v2729
        %v2731 = vand.u32 %v2730, 4294901760
        %2732 = vmatpush1.msra.mxu0 %v2731
        %v2733 = vand.u32 %v1710, 4294901760
        %v2734 = vsub.f32 %v1710, %v2733
        %v2735 = vand.u32 %v2734, 4294901760
        %2736 = vmatprep.subr.mxu0 %v2735
        %v2737 = vand.u32 %v1709, 4294901760
        %v2738 = vsub.f32 %v1709, %v2737
        %v2739 = vand.u32 %v2738, 4294901760
        %2740 = vmatpush1.msra.mxu0 %v2739
        %v2741 = vand.u32 %v1712, 4294901760
        %v2742 = vsub.f32 %v1712, %v2741
        %v2743 = vand.u32 %v2742, 4294901760
        %2744 = vmatprep.subr.mxu0 %v2743
        %v2745 = vand.u32 %v1711, 4294901760
        %v2746 = vsub.f32 %v1711, %v2745
        %v2747 = vand.u32 %v2746, 4294901760
        %2748 = vmatpush1.msra.mxu0 %v2747
        %v2749 = vand.u32 %v1714, 4294901760
        %v2750 = vsub.f32 %v1714, %v2749
        %v2751 = vand.u32 %v2750, 4294901760
        %2752 = vmatprep.subr.mxu0 %v2751
        %v2753 = vand.u32 %v1713, 4294901760
        %v2754 = vsub.f32 %v1713, %v2753
        %v2755 = vand.u32 %v2754, 4294901760
        %2756 = vmatpush1.msra.mxu0 %v2755
        %v2757 = vand.u32 %v1716, 4294901760
        %v2758 = vsub.f32 %v1716, %v2757
        %v2759 = vand.u32 %v2758, 4294901760
        %2760 = vmatprep.subr.mxu0 %v2759
        %v2761 = vand.u32 %v1715, 4294901760
        %v2762 = vsub.f32 %v1715, %v2761
        %v2763 = vand.u32 %v2762, 4294901760
        %2764 = vmatpush1.msra.mxu0 %v2763
        %v2765 = vand.u32 %v1718, 4294901760
        %v2766 = vsub.f32 %v1718, %v2765
        %v2767 = vand.u32 %v2766, 4294901760
        %2768 = vmatprep.subr.mxu0 %v2767
        %v2769 = vand.u32 %v1717, 4294901760
        %v2770 = vsub.f32 %v1717, %v2769
        %v2771 = vand.u32 %v2770, 4294901760
        %2772 = vmatpush1.msra.mxu0 %v2771
        %v2773 = vand.u32 %v1720, 4294901760
        %v2774 = vsub.f32 %v1720, %v2773
        %v2775 = vand.u32 %v2774, 4294901760
        %2776 = vmatprep.subr.mxu0 %v2775
        %v2777 = vand.u32 %v1719, 4294901760
        %v2778 = vsub.f32 %v1719, %v2777
        %v2779 = vand.u32 %v2778, 4294901760
        %2780 = vmatpush1.msra.mxu0 %v2779
        %v2781 = vand.u32 %v1722, 4294901760
        %v2782 = vsub.f32 %v1722, %v2781
        %v2783 = vand.u32 %v2782, 4294901760
        %2784 = vmatprep.subr.mxu0 %v2783
        %v2785 = vand.u32 %v1721, 4294901760
        %v2786 = vsub.f32 %v1721, %v2785
        %v2787 = vand.u32 %v2786, 4294901760
        %2788 = vmatpush1.msra.mxu0 %v2787
        %v2789 = vand.u32 %v1724, 4294901760
        %v2790 = vsub.f32 %v1724, %v2789
        %v2791 = vand.u32 %v2790, 4294901760
        %2792 = vmatprep.subr.mxu0 %v2791
        %v2793 = vand.u32 %v1723, 4294901760
        %v2794 = vsub.f32 %v1723, %v2793
        %v2795 = vand.u32 %v2794, 4294901760
        %2796 = vmatpush1.msra.mxu0 %v2795
        %v2797 = vand.u32 %v1726, 4294901760
        %v2798 = vsub.f32 %v1726, %v2797
        %v2799 = vand.u32 %v2798, 4294901760
        %2800 = vmatprep.subr.mxu0 %v2799
        %v2801 = vand.u32 %v1725, 4294901760
        %v2802 = vsub.f32 %v1725, %v2801
        %v2803 = vand.u32 %v2802, 4294901760
        %2804 = vmatpush1.msra.mxu0 %v2803
        %v2805 = vand.u32 %v1728, 4294901760
        %v2806 = vsub.f32 %v1728, %v2805
        %v2807 = vand.u32 %v2806, 4294901760
        %2808 = vmatprep.subr.mxu0 %v2807
        %v2809 = vand.u32 %v1727, 4294901760
        %v2810 = vsub.f32 %v1727, %v2809
        %v2811 = vand.u32 %v2810, 4294901760
        %2812 = vmatpush1.msra.mxu0 %v2811
        %v2813 = vand.u32 %v1730, 4294901760
        %v2814 = vsub.f32 %v1730, %v2813
        %v2815 = vand.u32 %v2814, 4294901760
        %2816 = vmatprep.subr.mxu0 %v2815
        %v2817 = vand.u32 %v1729, 4294901760
        %v2818 = vsub.f32 %v1729, %v2817
        %v2819 = vand.u32 %v2818, 4294901760
        %2820 = vmatpush1.msra.mxu0 %v2819
        %v2821 = vand.u32 %v1732, 4294901760
        %v2822 = vsub.f32 %v1732, %v2821
        %v2823 = vand.u32 %v2822, 4294901760
        %2824 = vmatprep.subr.mxu0 %v2823
        %v2825 = vand.u32 %v1731, 4294901760
        %v2826 = vsub.f32 %v1731, %v2825
        %v2827 = vand.u32 %v2826, 4294901760
        %2828 = vmatpush1.msra.mxu0 %v2827
        %v2829 = vand.u32 %v1734, 4294901760
        %v2830 = vsub.f32 %v1734, %v2829
        %v2831 = vand.u32 %v2830, 4294901760
        %2832 = vmatprep.subr.mxu0 %v2831
        %v2833 = vand.u32 %v1733, 4294901760
        %v2834 = vsub.f32 %v1733, %v2833
        %v2835 = vand.u32 %v2834, 4294901760
        %2836 = vmatpush1.msra.mxu0 %v2835
        %v2837 = vand.u32 %v1736, 4294901760
        %v2838 = vsub.f32 %v1736, %v2837
        %v2839 = vand.u32 %v2838, 4294901760
        %2840 = vmatprep.subr.mxu0 %v2839
        %v2841 = vand.u32 %v1735, 4294901760
        %v2842 = vsub.f32 %v1735, %v2841
        %v2843 = vand.u32 %v2842, 4294901760
        %2844 = vmatpush1.msra.mxu0 %v2843
        %v2845 = vand.u32 %v1738, 4294901760
        %v2846 = vsub.f32 %v1738, %v2845
        %v2847 = vand.u32 %v2846, 4294901760
        %2848 = vmatprep.subr.mxu0 %v2847
        %v2849 = vand.u32 %v1737, 4294901760
        %v2850 = vsub.f32 %v1737, %v2849
        %v2851 = vand.u32 %v2850, 4294901760
        %2852 = vmatpush1.msra.mxu0 %v2851
        %v2853 = vand.u32 %v1740, 4294901760
        %v2854 = vsub.f32 %v1740, %v2853
        %v2855 = vand.u32 %v2854, 4294901760
        %2856 = vmatprep.subr.mxu0 %v2855
        %v2857 = vand.u32 %v1739, 4294901760
        %v2858 = vsub.f32 %v1739, %v2857
        %v2859 = vand.u32 %v2858, 4294901760
        %2860 = vmatpush1.msra.mxu0 %v2859
        %v2861 = vand.u32 %v1742, 4294901760
        %v2862 = vsub.f32 %v1742, %v2861
        %v2863 = vand.u32 %v2862, 4294901760
        %2864 = vmatprep.subr.mxu0 %v2863
        %v2865 = vand.u32 %v1741, 4294901760
        %v2866 = vsub.f32 %v1741, %v2865
        %v2867 = vand.u32 %v2866, 4294901760
        %2868 = vmatpush1.msra.mxu0 %v2867
        %v2869 = vand.u32 %v1744, 4294901760
        %v2870 = vsub.f32 %v1744, %v2869
        %v2871 = vand.u32 %v2870, 4294901760
        %2872 = vmatprep.subr.mxu0 %v2871
        %v2873 = vand.u32 %v1743, 4294901760
        %v2874 = vsub.f32 %v1743, %v2873
        %v2875 = vand.u32 %v2874, 4294901760
        %2876 = vmatpush1.msra.mxu0 %v2875
        %v2877 = vand.u32 %v1746, 4294901760
        %v2878 = vsub.f32 %v1746, %v2877
        %v2879 = vand.u32 %v2878, 4294901760
        %2880 = vmatprep.subr.mxu0 %v2879
        %v2881 = vand.u32 %v1745, 4294901760
        %v2882 = vsub.f32 %v1745, %v2881
        %v2883 = vand.u32 %v2882, 4294901760
        %2884 = vmatpush1.msra.mxu0 %v2883
        %v2885 = vand.u32 %v397, 4294901760
        %2886 = vmatprep.mubr.f32.mxu0 %v2885
        %v2887 = vand.u32 %v331, 4294901760
        %2888 = vmatmul.mubr.f32.gmra.mrb[0].mxu0 %v2887
        %v2889 = vpop.f32.mrb[0].mxu0
        %v2890 = vadd.f32 %v2625, %v2889
        %v2891 = vpop.f32.mrb[0].mxu0
        %v2892 = vadd.f32 %v2627, %v2891
        %2893 = vdwg.mxu0
        %v2894 = vand.u32 %v1684, 4294901760
        %2895 = vmatprep.subr.mxu0 %v2894
        %v2896 = vand.u32 %v1683, 4294901760
        %2897 = vmatpush1.msra.mxu0 %v2896
        %v2898 = vand.u32 %v1686, 4294901760
        %2899 = vmatprep.subr.mxu0 %v2898
        %v2900 = vand.u32 %v1685, 4294901760
        %2901 = vmatpush1.msra.mxu0 %v2900
        %v2902 = vand.u32 %v1688, 4294901760
        %2903 = vmatprep.subr.mxu0 %v2902
        %v2904 = vand.u32 %v1687, 4294901760
        %2905 = vmatpush1.msra.mxu0 %v2904
        %v2906 = vand.u32 %v1690, 4294901760
        %2907 = vmatprep.subr.mxu0 %v2906
        %v2908 = vand.u32 %v1689, 4294901760
        %2909 = vmatpush1.msra.mxu0 %v2908
        %v2910 = vand.u32 %v1692, 4294901760
        %2911 = vmatprep.subr.mxu0 %v2910
        %v2912 = vand.u32 %v1691, 4294901760
        %2913 = vmatpush1.msra.mxu0 %v2912
        %v2914 = vand.u32 %v1694, 4294901760
        %2915 = vmatprep.subr.mxu0 %v2914
        %v2916 = vand.u32 %v1693, 4294901760
        %2917 = vmatpush1.msra.mxu0 %v2916
        %v2918 = vand.u32 %v1696, 4294901760
        %2919 = vmatprep.subr.mxu0 %v2918
        %v2920 = vand.u32 %v1695, 4294901760
        %2921 = vmatpush1.msra.mxu0 %v2920
        %v2922 = vand.u32 %v1698, 4294901760
        %2923 = vmatprep.subr.mxu0 %v2922
        %v2924 = vand.u32 %v1697, 4294901760
        %2925 = vmatpush1.msra.mxu0 %v2924
        %v2926 = vand.u32 %v1700, 4294901760
        %2927 = vmatprep.subr.mxu0 %v2926
        %v2928 = vand.u32 %v1699, 4294901760
        %2929 = vmatpush1.msra.mxu0 %v2928
        %v2930 = vand.u32 %v1702, 4294901760
        %2931 = vmatprep.subr.mxu0 %v2930
        %v2932 = vand.u32 %v1701, 4294901760
        %2933 = vmatpush1.msra.mxu0 %v2932
        %v2934 = vand.u32 %v1704, 4294901760
        %2935 = vmatprep.subr.mxu0 %v2934
        %v2936 = vand.u32 %v1703, 4294901760
        %2937 = vmatpush1.msra.mxu0 %v2936
        %v2938 = vand.u32 %v1706, 4294901760
        %2939 = vmatprep.subr.mxu0 %v2938
        %v2940 = vand.u32 %v1705, 4294901760
        %2941 = vmatpush1.msra.mxu0 %v2940
        %v2942 = vand.u32 %v1708, 4294901760
        %2943 = vmatprep.subr.mxu0 %v2942
        %v2944 = vand.u32 %v1707, 4294901760
        %2945 = vmatpush1.msra.mxu0 %v2944
        %v2946 = vand.u32 %v1710, 4294901760
        %2947 = vmatprep.subr.mxu0 %v2946
        %v2948 = vand.u32 %v1709, 4294901760
        %2949 = vmatpush1.msra.mxu0 %v2948
        %v2950 = vand.u32 %v1712, 4294901760
        %2951 = vmatprep.subr.mxu0 %v2950
        %v2952 = vand.u32 %v1711, 4294901760
        %2953 = vmatpush1.msra.mxu0 %v2952
        %v2954 = vand.u32 %v1714, 4294901760
        %2955 = vmatprep.subr.mxu0 %v2954
        %v2956 = vand.u32 %v1713, 4294901760
        %2957 = vmatpush1.msra.mxu0 %v2956
        %v2958 = vand.u32 %v1716, 4294901760
        %2959 = vmatprep.subr.mxu0 %v2958
        %v2960 = vand.u32 %v1715, 4294901760
        %2961 = vmatpush1.msra.mxu0 %v2960
        %v2962 = vand.u32 %v1718, 4294901760
        %2963 = vmatprep.subr.mxu0 %v2962
        %v2964 = vand.u32 %v1717, 4294901760
        %2965 = vmatpush1.msra.mxu0 %v2964
        %v2966 = vand.u32 %v1720, 4294901760
        %2967 = vmatprep.subr.mxu0 %v2966
        %v2968 = vand.u32 %v1719, 4294901760
        %2969 = vmatpush1.msra.mxu0 %v2968
        %v2970 = vand.u32 %v1722, 4294901760
        %2971 = vmatprep.subr.mxu0 %v2970
        %v2972 = vand.u32 %v1721, 4294901760
        %2973 = vmatpush1.msra.mxu0 %v2972
        %v2974 = vand.u32 %v1724, 4294901760
        %2975 = vmatprep.subr.mxu0 %v2974
        %v2976 = vand.u32 %v1723, 4294901760
        %2977 = vmatpush1.msra.mxu0 %v2976
        %v2978 = vand.u32 %v1726, 4294901760
        %2979 = vmatprep.subr.mxu0 %v2978
        %v2980 = vand.u32 %v1725, 4294901760
        %2981 = vmatpush1.msra.mxu0 %v2980
        %v2982 = vand.u32 %v1728, 4294901760
        %2983 = vmatprep.subr.mxu0 %v2982
        %v2984 = vand.u32 %v1727, 4294901760
        %2985 = vmatpush1.msra.mxu0 %v2984
        %v2986 = vand.u32 %v1730, 4294901760
        %2987 = vmatprep.subr.mxu0 %v2986
        %v2988 = vand.u32 %v1729, 4294901760
        %2989 = vmatpush1.msra.mxu0 %v2988
        %v2990 = vand.u32 %v1732, 4294901760
        %2991 = vmatprep.subr.mxu0 %v2990
        %v2992 = vand.u32 %v1731, 4294901760
        %2993 = vmatpush1.msra.mxu0 %v2992
        %v2994 = vand.u32 %v1734, 4294901760
        %2995 = vmatprep.subr.mxu0 %v2994
        %v2996 = vand.u32 %v1733, 4294901760
        %2997 = vmatpush1.msra.mxu0 %v2996
        %v2998 = vand.u32 %v1736, 4294901760
        %2999 = vmatprep.subr.mxu0 %v2998
        %v3000 = vand.u32 %v1735, 4294901760
        %3001 = vmatpush1.msra.mxu0 %v3000
        %v3002 = vand.u32 %v1738, 4294901760
        %3003 = vmatprep.subr.mxu0 %v3002
        %v3004 = vand.u32 %v1737, 4294901760
        %3005 = vmatpush1.msra.mxu0 %v3004
        %v3006 = vand.u32 %v1740, 4294901760
        %3007 = vmatprep.subr.mxu0 %v3006
        %v3008 = vand.u32 %v1739, 4294901760
        %3009 = vmatpush1.msra.mxu0 %v3008
        %v3010 = vand.u32 %v1742, 4294901760
        %3011 = vmatprep.subr.mxu0 %v3010
        %v3012 = vand.u32 %v1741, 4294901760
        %3013 = vmatpush1.msra.mxu0 %v3012
        %v3014 = vand.u32 %v1744, 4294901760
        %3015 = vmatprep.subr.mxu0 %v3014
        %v3016 = vand.u32 %v1743, 4294901760
        %3017 = vmatpush1.msra.mxu0 %v3016
        %v3018 = vand.u32 %v1746, 4294901760
        %3019 = vmatprep.subr.mxu0 %v3018
        %v3020 = vand.u32 %v1745, 4294901760
        %3021 = vmatpush1.msra.mxu0 %v3020
        %v3022 = vand.u32 %v397, 4294901760
        %3023 = vmatprep.mubr.f32.mxu0 %v3022
        %v3024 = vand.u32 %v331, 4294901760
        %3025 = vmatmul.mubr.f32.gmra.mrb[0].mxu0 %v3024
        %v3026 = vpop.f32.mrb[0].mxu0
        %v3027 = vadd.f32 %v2890, %v3026
        %v3028 = vpop.f32.mrb[0].mxu0
        %v3029 = vadd.f32 %v2892, %v3028
        %3030 = vdwg.mxu0
        %v3031 = vld [vmem:[%s3] sm:$0xff]
        %v3032 = vld [vmem:[%s4] sm:$0xff]
        %vm3033 = vcmask 31744
        %v3035 = vsel %vm3033, %v3032, 0
        %vm3037 = vcmask 1043456
        %v3039 = vsel %vm3037, %v3027, 0
        %v3042 = vsel %vm3037, %v3029, 0
        %3044 = vmatprep.subr.mxu0 %v3042
        %3045 = vmatpush1.msra.mxu0 %v3039
        %3046 = vmatprep.subr.mxu0 0.0
        %3047 = vmatpush1.msra.mxu0 0.0
        %3048 = vmatprep.subr.mxu0 0.0
        %3049 = vmatpush1.msra.mxu0 0.0
        %3050 = vmatprep.subr.mxu0 0.0
        %3051 = vmatpush1.msra.mxu0 0.0
        %3052 = vmatprep.subr.mxu0 0.0
        %3053 = vmatpush1.msra.mxu0 0.0
        %3054 = vmatprep.subr.mxu0 0.0
        %3055 = vmatpush1.msra.mxu0 0.0
        %3056 = vmatprep.subr.mxu0 0.0
        %3057 = vmatpush1.msra.mxu0 0.0
        %3058 = vmatprep.subr.mxu0 0.0
        %3059 = vmatpush1.msra.mxu0 0.0
        %3060 = vmatprep.subr.mxu0 0.0
        %3061 = vmatpush1.msra.mxu0 0.0
        %3062 = vmatprep.subr.mxu0 0.0
        %3063 = vmatpush1.msra.mxu0 0.0
        %3064 = vmatprep.subr.mxu0 0.0
        %3065 = vmatpush1.msra.mxu0 0.0
        %3066 = vmatprep.subr.mxu0 0.0
        %3067 = vmatpush1.msra.mxu0 0.0
        %3068 = vmatprep.subr.mxu0 0.0
        %3069 = vmatpush1.msra.mxu0 0.0
        %3070 = vmatprep.subr.mxu0 0.0
        %3071 = vmatpush1.msra.mxu0 0.0
        %3072 = vmatprep.subr.mxu0 0.0
        %3073 = vmatpush1.msra.mxu0 0.0
        %3074 = vmatprep.subr.mxu0 0.0
        %3075 = vmatpush1.msra.mxu0 0.0
        %3076 = vmatprep.subr.mxu0 0.0
        %3077 = vmatpush1.msra.mxu0 0.0
        %3078 = vmatprep.subr.mxu0 0.0
        %3079 = vmatpush1.msra.mxu0 0.0
        %3080 = vmatprep.subr.mxu0 0.0
        %3081 = vmatpush1.msra.mxu0 0.0
        %3082 = vmatprep.subr.mxu0 0.0
        %3083 = vmatpush1.msra.mxu0 0.0
        %3084 = vmatprep.subr.mxu0 0.0
        %3085 = vmatpush1.msra.mxu0 0.0
        %3086 = vmatprep.subr.mxu0 0.0
        %3087 = vmatpush1.msra.mxu0 0.0
        %3088 = vmatprep.subr.mxu0 0.0
        %3089 = vmatpush1.msra.mxu0 0.0
        %3090 = vmatprep.subr.mxu0 0.0
        %3091 = vmatpush1.msra.mxu0 0.0
        %3092 = vmatprep.subr.mxu0 0.0
        %3093 = vmatpush1.msra.mxu0 0.0
        %3094 = vmatprep.subr.mxu0 0.0
        %3095 = vmatpush1.msra.mxu0 0.0
        %3096 = vmatprep.subr.mxu0 0.0
        %3097 = vmatpush1.msra.mxu0 0.0
        %3098 = vmatprep.subr.mxu0 0.0
        %3099 = vmatpush1.msra.mxu0 0.0
        %3100 = vmatprep.subr.mxu0 0.0
        %3101 = vmatpush1.msra.mxu0 0.0
        %3102 = vmatprep.subr.mxu0 0.0
        %3103 = vmatpush1.msra.mxu0 0.0
        %3104 = vmatprep.subr.mxu0 0.0
        %3105 = vmatpush1.msra.mxu0 0.0
        %3106 = vmatprep.subr.mxu0 0.0
        %3107 = vmatpush1.msra.mxu0 0.0
        %3108 = vmatprep.mubr.f32.mxu0 0.0
        %3109 = vmatmul.mubr.f32.gmra.mrb[0].mxu0 %v3035
        %v3110 = vpop.f32.mrb[0].mxu0
        %v3111 = vadd.f32 0.0, %v3110
        %v3112 = vpop.f32.mrb[0].mxu0
        %v3113 = vadd.f32 0.0, %v3112
        %3114 = vdwg.mxu0
        %v3116 = vsel %vm3033, %v3031, 0
        %v3119 = vsel %vm3037, %v1679, 0
        %v3122 = vsel %vm3037, %v1681, 0
        %3124 = vmatprep.subr.mxu0 %v3122
        %3125 = vmatpush1.msra.mxu0 %v3119
        %3126 = vmatprep.subr.mxu0 0.0
        %3127 = vmatpush1.msra.mxu0 0.0
        %3128 = vmatprep.subr.mxu0 0.0
        %3129 = vmatpush1.msra.mxu0 0.0
        %3130 = vmatprep.subr.mxu0 0.0
        %3131 = vmatpush1.msra.mxu0 0.0
        %3132 = vmatprep.subr.mxu0 0.0
        %3133 = vmatpush1.msra.mxu0 0.0
        %3134 = vmatprep.subr.mxu0 0.0
        %3135 = vmatpush1.msra.mxu0 0.0
        %3136 = vmatprep.subr.mxu0 0.0
        %3137 = vmatpush1.msra.mxu0 0.0
        %3138 = vmatprep.subr.mxu0 0.0
        %3139 = vmatpush1.msra.mxu0 0.0
        %3140 = vmatprep.subr.mxu0 0.0
        %3141 = vmatpush1.msra.mxu0 0.0
        %3142 = vmatprep.subr.mxu0 0.0
        %3143 = vmatpush1.msra.mxu0 0.0
        %3144 = vmatprep.subr.mxu0 0.0
        %3145 = vmatpush1.msra.mxu0 0.0
        %3146 = vmatprep.subr.mxu0 0.0
        %3147 = vmatpush1.msra.mxu0 0.0
        %3148 = vmatprep.subr.mxu0 0.0
        %3149 = vmatpush1.msra.mxu0 0.0
        %3150 = vmatprep.subr.mxu0 0.0
        %3151 = vmatpush1.msra.mxu0 0.0
        %3152 = vmatprep.subr.mxu0 0.0
        %3153 = vmatpush1.msra.mxu0 0.0
        %3154 = vmatprep.subr.mxu0 0.0
        %3155 = vmatpush1.msra.mxu0 0.0
        %3156 = vmatprep.subr.mxu0 0.0
        %3157 = vmatpush1.msra.mxu0 0.0
        %3158 = vmatprep.subr.mxu0 0.0
        %3159 = vmatpush1.msra.mxu0 0.0
        %3160 = vmatprep.subr.mxu0 0.0
        %3161 = vmatpush1.msra.mxu0 0.0
        %3162 = vmatprep.subr.mxu0 0.0
        %3163 = vmatpush1.msra.mxu0 0.0
        %3164 = vmatprep.subr.mxu0 0.0
        %3165 = vmatpush1.msra.mxu0 0.0
        %3166 = vmatprep.subr.mxu0 0.0
        %3167 = vmatpush1.msra.mxu0 0.0
        %3168 = vmatprep.subr.mxu0 0.0
        %3169 = vmatpush1.msra.mxu0 0.0
        %3170 = vmatprep.subr.mxu0 0.0
        %3171 = vmatpush1.msra.mxu0 0.0
        %3172 = vmatprep.subr.mxu0 0.0
        %3173 = vmatpush1.msra.mxu0 0.0
        %3174 = vmatprep.subr.mxu0 0.0
        %3175 = vmatpush1.msra.mxu0 0.0
        %3176 = vmatprep.subr.mxu0 0.0
        %3177 = vmatpush1.msra.mxu0 0.0
        %3178 = vmatprep.subr.mxu0 0.0
        %3179 = vmatpush1.msra.mxu0 0.0
        %3180 = vmatprep.subr.mxu0 0.0
        %3181 = vmatpush1.msra.mxu0 0.0
        %3182 = vmatprep.subr.mxu0 0.0
        %3183 = vmatpush1.msra.mxu0 0.0
        %3184 = vmatprep.subr.mxu0 0.0
        %3185 = vmatpush1.msra.mxu0 0.0
        %3186 = vmatprep.subr.mxu0 0.0
        %3187 = vmatpush1.msra.mxu0 0.0
        %3188 = vmatprep.mubr.f32.mxu0 0.0
        %3189 = vmatmul.mubr.f32.gmra.mrb[0].mxu0 %v3116
        %v3190 = vpop.f32.mrb[0].mxu0
        %v3191 = vadd.f32 %v3111, %v3190
        %v3192 = vpop.f32.mrb[0].mxu0
        %v3193 = vadd.f32 %v3113, %v3192
        %3194 = vdwg.mxu0
        %v3195 = vmax.f32 %v3191, 0.0
        %v3196 = vmax.f32 %v3193, 0.0
        %v3197 = vld [vmem:[%s5] sm:$0xf]
        %vm3198 = vcmask 64512
        %v3200 = vsel %vm3198, %v3197, 0
        %3202 = vmatprep.subr.mxu0 %v3196
        %3203 = vmatpush1.msra.mxu0 %v3195
        %3204 = vmatprep.subr.mxu0 0.0
        %3205 = vmatpush1.msra.mxu0 0.0
        %3206 = vmatprep.subr.mxu0 0.0
        %3207 = vmatpush1.msra.mxu0 0.0
        %3208 = vmatprep.subr.mxu0 0.0
        %3209 = vmatpush1.msra.mxu0 0.0
        %3210 = vmatprep.subr.mxu0 0.0
        %3211 = vmatpush1.msra.mxu0 0.0
        %3212 = vmatprep.subr.mxu0 0.0
        %3213 = vmatpush1.msra.mxu0 0.0
        %3214 = vmatprep.subr.mxu0 0.0
        %3215 = vmatpush1.msra.mxu0 0.0
        %3216 = vmatprep.subr.mxu0 0.0
        %3217 = vmatpush1.msra.mxu0 0.0
        %3218 = vmatprep.subr.mxu0 0.0
        %3219 = vmatpush1.msra.mxu0 0.0
        %3220 = vmatprep.subr.mxu0 0.0
        %3221 = vmatpush1.msra.mxu0 0.0
        %3222 = vmatprep.subr.mxu0 0.0
        %3223 = vmatpush1.msra.mxu0 0.0
        %3224 = vmatprep.subr.mxu0 0.0
        %3225 = vmatpush1.msra.mxu0 0.0
        %3226 = vmatprep.subr.mxu0 0.0
        %3227 = vmatpush1.msra.mxu0 0.0
        %3228 = vmatprep.subr.mxu0 0.0
        %3229 = vmatpush1.msra.mxu0 0.0
        %3230 = vmatprep.subr.mxu0 0.0
        %3231 = vmatpush1.msra.mxu0 0.0
        %3232 = vmatprep.subr.mxu0 0.0
        %3233 = vmatpush1.msra.mxu0 0.0
        %3234 = vmatprep.subr.mxu0 0.0
        %3235 = vmatpush1.msra.mxu0 0.0
        %3236 = vmatprep.subr.mxu0 0.0
        %3237 = vmatpush1.msra.mxu0 0.0
        %3238 = vmatprep.subr.mxu0 0.0
        %3239 = vmatpush1.msra.mxu0 0.0
        %3240 = vmatprep.subr.mxu0 0.0
        %3241 = vmatpush1.msra.mxu0 0.0
        %3242 = vmatprep.subr.mxu0 0.0
        %3243 = vmatpush1.msra.mxu0 0.0
        %3244 = vmatprep.subr.mxu0 0.0
        %3245 = vmatpush1.msra.mxu0 0.0
        %3246 = vmatprep.subr.mxu0 0.0
        %3247 = vmatpush1.msra.mxu0 0.0
        %3248 = vmatprep.subr.mxu0 0.0
        %3249 = vmatpush1.msra.mxu0 0.0
        %3250 = vmatprep.subr.mxu0 0.0
        %3251 = vmatpush1.msra.mxu0 0.0
        %3252 = vmatprep.subr.mxu0 0.0
        %3253 = vmatpush1.msra.mxu0 0.0
        %3254 = vmatprep.subr.mxu0 0.0
        %3255 = vmatpush1.msra.mxu0 0.0
        %3256 = vmatprep.subr.mxu0 0.0
        %3257 = vmatpush1.msra.mxu0 0.0
        %3258 = vmatprep.subr.mxu0 0.0
        %3259 = vmatpush1.msra.mxu0 0.0
        %3260 = vmatprep.subr.mxu0 0.0
        %3261 = vmatpush1.msra.mxu0 0.0
        %3262 = vmatprep.subr.mxu0 0.0
        %3263 = vmatpush1.msra.mxu0 0.0
        %3264 = vmatprep.subr.mxu0 0.0
        %3265 = vmatpush1.msra.mxu0 0.0
        %3266 = vmatprep.mubr.f32.mxu0 0.0
        %3267 = vmatmul.mubr.f32.gmra.mrb[0].mxu0 %v3200
        %v3268 = vpop.f32.mrb[0].mxu0
        %v3269 = vadd.f32 0.0, %v3268
        %v3270 = vpop.f32.mrb[0].mxu0
        %v3271 = vadd.f32 0.0, %v3270
        %3272 = vdwg.mxu0
        %v3273 = vld [vmem:[%s6] sm:$0xf]
        %v3275 = vsel %vm3198, %v3273, 0
        %3277 = vmatprep.subr.mxu0 %v3196
        %3278 = vmatpush1.msra.mxu0 %v3195
        %3279 = vmatprep.subr.mxu0 0.0
        %3280 = vmatpush1.msra.mxu0 0.0
        %3281 = vmatprep.subr.mxu0 0.0
        %3282 = vmatpush1.msra.mxu0 0.0
        %3283 = vmatprep.subr.mxu0 0.0
        %3284 = vmatpush1.msra.mxu0 0.0
        %3285 = vmatprep.subr.mxu0 0.0
        %3286 = vmatpush1.msra.mxu0 0.0
        %3287 = vmatprep.subr.mxu0 0.0
        %3288 = vmatpush1.msra.mxu0 0.0
        %3289 = vmatprep.subr.mxu0 0.0
        %3290 = vmatpush1.msra.mxu0 0.0
        %3291 = vmatprep.subr.mxu0 0.0
        %3292 = vmatpush1.msra.mxu0 0.0
        %3293 = vmatprep.subr.mxu0 0.0
        %3294 = vmatpush1.msra.mxu0 0.0
        %3295 = vmatprep.subr.mxu0 0.0
        %3296 = vmatpush1.msra.mxu0 0.0
        %3297 = vmatprep.subr.mxu0 0.0
        %3298 = vmatpush1.msra.mxu0 0.0
        %3299 = vmatprep.subr.mxu0 0.0
        %3300 = vmatpush1.msra.mxu0 0.0
        %3301 = vmatprep.subr.mxu0 0.0
        %3302 = vmatpush1.msra.mxu0 0.0
        %3303 = vmatprep.subr.mxu0 0.0
        %3304 = vmatpush1.msra.mxu0 0.0
        %3305 = vmatprep.subr.mxu0 0.0
        %3306 = vmatpush1.msra.mxu0 0.0
        %3307 = vmatprep.subr.mxu0 0.0
        %3308 = vmatpush1.msra.mxu0 0.0
        %3309 = vmatprep.subr.mxu0 0.0
        %3310 = vmatpush1.msra.mxu0 0.0
        %3311 = vmatprep.subr.mxu0 0.0
        %3312 = vmatpush1.msra.mxu0 0.0
        %3313 = vmatprep.subr.mxu0 0.0
        %3314 = vmatpush1.msra.mxu0 0.0
        %3315 = vmatprep.subr.mxu0 0.0
        %3316 = vmatpush1.msra.mxu0 0.0
        %3317 = vmatprep.subr.mxu0 0.0
        %3318 = vmatpush1.msra.mxu0 0.0
        %3319 = vmatprep.subr.mxu0 0.0
        %3320 = vmatpush1.msra.mxu0 0.0
        %3321 = vmatprep.subr.mxu0 0.0
        %3322 = vmatpush1.msra.mxu0 0.0
        %3323 = vmatprep.subr.mxu0 0.0
        %3324 = vmatpush1.msra.mxu0 0.0
        %3325 = vmatprep.subr.mxu0 0.0
        %3326 = vmatpush1.msra.mxu0 0.0
        %3327 = vmatprep.subr.mxu0 0.0
        %3328 = vmatpush1.msra.mxu0 0.0
        %3329 = vmatprep.subr.mxu0 0.0
        %3330 = vmatpush1.msra.mxu0 0.0
        %3331 = vmatprep.subr.mxu0 0.0
        %3332 = vmatpush1.msra.mxu0 0.0
        %3333 = vmatprep.subr.mxu0 0.0
        %3334 = vmatpush1.msra.mxu0 0.0
        %3335 = vmatprep.subr.mxu0 0.0
        %3336 = vmatpush1.msra.mxu0 0.0
        %3337 = vmatprep.subr.mxu0 0.0
        %3338 = vmatpush1.msra.mxu0 0.0
        %3339 = vmatprep.subr.mxu0 0.0
        %3340 = vmatpush1.msra.mxu0 0.0
        %3341 = vmatprep.mubr.f32.mxu0 0.0
        %3342 = vmatmul.mubr.f32.gmra.mrb[0].mxu0 %v3275
        %v3343 = vpop.f32.mrb[0].mxu0
        %v3344 = vadd.f32 0.0, %v3343
        %v3345 = vpop.f32.mrb[0].mxu0
        %v3346 = vadd.f32 0.0, %v3345
        %3347 = vdwg.mxu0
        %v3348 = vld [vmem:[%s7] sm:$0xff]
        %v3349 = vld [vmem:[%s7 + $0x8] sm:$0xff]
        %v3350 = vld [vmem:[%s7 + $0x10] sm:$0xff]
        %v3351 = vld [vmem:[%s7 + $0x18] sm:$0xff]
        %v3352 = vld [vmem:[%s7 + $0x20] sm:$0xff]
        %v3353 = vld [vmem:[%s7 + $0x28] sm:$0xff]
        %v3354 = vld [vmem:[%s7 + $0x30] sm:$0xff]
        %v3355 = vld [vmem:[%s7 + $0x38] sm:$0xff]
        %v3356 = vld [vmem:[%s7 + $0x40] sm:$0xff]
        %v3357 = vld [vmem:[%s7 + $0x48] sm:$0xff]
        %v3358 = vld [vmem:[%s7 + $0x50] sm:$0xff]
        %v3359 = vld [vmem:[%s7 + $0x58] sm:$0xff]
        %v3360 = vld [vmem:[%s7 + $0x60] sm:$0xff]
        %v3361 = vld [vmem:[%s7 + $0x68] sm:$0xff]
        %v3362 = vld [vmem:[%s7 + $0x70] sm:$0xff]
        %v3363 = vld [vmem:[%s7 + $0x78] sm:$0xff]
        %v3364 = vld [vmem:[%s7 + $0x80] sm:$0xff]
        %v3365 = vld [vmem:[%s7 + $0x88] sm:$0xff]
        %v3366 = vld [vmem:[%s7 + $0x90] sm:$0xff]
        %v3367 = vld [vmem:[%s7 + $0x98] sm:$0xff]
        %v3368 = vld [vmem:[%s7 + $0xa0] sm:$0xff]
        %v3369 = vld [vmem:[%s7 + $0xa8] sm:$0xff]
        %v3370 = vld [vmem:[%s7 + $0xb0] sm:$0xff]
        %v3371 = vld [vmem:[%s7 + $0xb8] sm:$0xff]
        %v3372 = vld [vmem:[%s7 + $0xc0] sm:$0xff]
        %v3373 = vld [vmem:[%s7 + $0xc8] sm:$0xff]
        %v3374 = vld [vmem:[%s7 + $0xd0] sm:$0xff]
        %v3375 = vld [vmem:[%s7 + $0xd8] sm:$0xff]
        %v3376 = vld [vmem:[%s7 + $0xe0] sm:$0xff]
        %v3377 = vld [vmem:[%s7 + $0xe8] sm:$0xff]
        %v3378 = vld [vmem:[%s7 + $0xf0] sm:$0xff]
        %v3379 = vld [vmem:[%s7 + $0xf8] sm:$0xff]
        %v3380 = vld [vmem:[%s7 + $0x100] sm:$0xff]
        %v3381 = vld [vmem:[%s7 + $0x108] sm:$0xff]
        %v3382 = vld [vmem:[%s7 + $0x110] sm:$0xff]
        %v3383 = vld [vmem:[%s7 + $0x118] sm:$0xff]
        %v3384 = vld [vmem:[%s8] sm:$0xff]
        %v3385 = vld [vmem:[%s8 + $0x8] sm:$0xff]
        %v3386 = vld [vmem:[%s8 + $0x10] sm:$0xff]
        %v3387 = vld [vmem:[%s8 + $0x18] sm:$0xff]
        %v3388 = vld [vmem:[%s8 + $0x20] sm:$0xff]
        %v3389 = vld [vmem:[%s8 + $0x28] sm:$0xff]
        %v3390 = vld [vmem:[%s8 + $0x30] sm:$0xff]
        %v3391 = vld [vmem:[%s8 + $0x38] sm:$0xff]
        %v3392 = vld [vmem:[%s8 + $0x40] sm:$0xff]
        %v3393 = vld [vmem:[%s8 + $0x48] sm:$0xff]
        %v3394 = vld [vmem:[%s8 + $0x50] sm:$0xff]
        %v3395 = vld [vmem:[%s8 + $0x58] sm:$0xff]
        %v3396 = vld [vmem:[%s8 + $0x60] sm:$0xff]
        %v3397 = vld [vmem:[%s8 + $0x68] sm:$0xff]
        %v3398 = vld [vmem:[%s8 + $0x70] sm:$0xff]
        %v3399 = vld [vmem:[%s8 + $0x78] sm:$0xff]
        %v3400 = vld [vmem:[%s8 + $0x80] sm:$0xff]
        %v3401 = vld [vmem:[%s8 + $0x88] sm:$0xff]
        %v3402 = vld [vmem:[%s8 + $0x90] sm:$0xff]
        %v3403 = vld [vmem:[%s8 + $0x98] sm:$0xff]
        %v3404 = vld [vmem:[%s8 + $0xa0] sm:$0xff]
        %v3405 = vld [vmem:[%s8 + $0xa8] sm:$0xff]
        %v3406 = vld [vmem:[%s8 + $0xb0] sm:$0xff]
        %v3407 = vld [vmem:[%s8 + $0xb8] sm:$0xff]
        %v3408 = vld [vmem:[%s8 + $0xc0] sm:$0xff]
        %v3409 = vld [vmem:[%s8 + $0xc8] sm:$0xff]
        %v3410 = vld [vmem:[%s8 + $0xd0] sm:$0xff]
        %v3411 = vld [vmem:[%s8 + $0xd8] sm:$0xff]
        %v3412 = vld [vmem:[%s8 + $0xe0] sm:$0xff]
        %v3413 = vld [vmem:[%s8 + $0xe8] sm:$0xff]
        %v3414 = vld [vmem:[%s8 + $0xf0] sm:$0xff]
        %v3415 = vld [vmem:[%s8 + $0xf8] sm:$0xff]
        %v3416 = vld [vmem:[%s8 + $0x100] sm:$0xff]
        %v3417 = vld [vmem:[%s8 + $0x108] sm:$0xff]
        %v3418 = vld [vmem:[%s8 + $0x110] sm:$0xff]
        %v3419 = vld [vmem:[%s8 + $0x118] sm:$0xff]
        %vm3420 = vcmask 130048
        %v3422 = vsel %vm3420, %v3346, 0
        %v3424 = vand.u32 %v3385, 4294901760
        %3425 = vmatprep.subr.mxu0 %v3424
        %v3426 = vand.u32 %v3384, 4294901760
        %3427 = vmatpush1.msra.mxu0 %v3426
        %v3428 = vand.u32 %v3387, 4294901760
        %3429 = vmatprep.subr.mxu0 %v3428
        %v3430 = vand.u32 %v3386, 4294901760
        %3431 = vmatpush1.msra.mxu0 %v3430
        %v3432 = vand.u32 %v3389, 4294901760
        %3433 = vmatprep.subr.mxu0 %v3432
        %v3434 = vand.u32 %v3388, 4294901760
        %3435 = vmatpush1.msra.mxu0 %v3434
        %v3436 = vand.u32 %v3391, 4294901760
        %3437 = vmatprep.subr.mxu0 %v3436
        %v3438 = vand.u32 %v3390, 4294901760
        %3439 = vmatpush1.msra.mxu0 %v3438
        %v3440 = vand.u32 %v3393, 4294901760
        %3441 = vmatprep.subr.mxu0 %v3440
        %v3442 = vand.u32 %v3392, 4294901760
        %3443 = vmatpush1.msra.mxu0 %v3442
        %v3444 = vand.u32 %v3395, 4294901760
        %3445 = vmatprep.subr.mxu0 %v3444
        %v3446 = vand.u32 %v3394, 4294901760
        %3447 = vmatpush1.msra.mxu0 %v3446
        %v3448 = vand.u32 %v3397, 4294901760
        %3449 = vmatprep.subr.mxu0 %v3448
        %v3450 = vand.u32 %v3396, 4294901760
        %3451 = vmatpush1.msra.mxu0 %v3450
        %v3452 = vand.u32 %v3399, 4294901760
        %3453 = vmatprep.subr.mxu0 %v3452
        %v3454 = vand.u32 %v3398, 4294901760
        %3455 = vmatpush1.msra.mxu0 %v3454
        %v3456 = vand.u32 %v3401, 4294901760
        %3457 = vmatprep.subr.mxu0 %v3456
        %v3458 = vand.u32 %v3400, 4294901760
        %3459 = vmatpush1.msra.mxu0 %v3458
        %v3460 = vand.u32 %v3403, 4294901760
        %3461 = vmatprep.subr.mxu0 %v3460
        %v3462 = vand.u32 %v3402, 4294901760
        %3463 = vmatpush1.msra.mxu0 %v3462
        %v3464 = vand.u32 %v3405, 4294901760
        %3465 = vmatprep.subr.mxu0 %v3464
        %v3466 = vand.u32 %v3404, 4294901760
        %3467 = vmatpush1.msra.mxu0 %v3466
        %v3468 = vand.u32 %v3407, 4294901760
        %3469 = vmatprep.subr.mxu0 %v3468
        %v3470 = vand.u32 %v3406, 4294901760
        %3471 = vmatpush1.msra.mxu0 %v3470
        %v3472 = vand.u32 %v3409, 4294901760
        %3473 = vmatprep.subr.mxu0 %v3472
        %v3474 = vand.u32 %v3408, 4294901760
        %3475 = vmatpush1.msra.mxu0 %v3474
        %v3476 = vand.u32 %v3411, 4294901760
        %3477 = vmatprep.subr.mxu0 %v3476
        %v3478 = vand.u32 %v3410, 4294901760
        %3479 = vmatpush1.msra.mxu0 %v3478
        %v3480 = vand.u32 %v3413, 4294901760
        %3481 = vmatprep.subr.mxu0 %v3480
        %v3482 = vand.u32 %v3412, 4294901760
        %3483 = vmatpush1.msra.mxu0 %v3482
        %v3484 = vand.u32 %v3415, 4294901760
        %3485 = vmatprep.subr.mxu0 %v3484
        %v3486 = vand.u32 %v3414, 4294901760
        %3487 = vmatpush1.msra.mxu0 %v3486
        %v3488 = vand.u32 %v3417, 4294901760
        %3489 = vmatprep.subr.mxu0 %v3488
        %v3490 = vand.u32 %v3416, 4294901760
        %3491 = vmatpush1.msra.mxu0 %v3490
        %v3492 = vand.u32 %v3419, 4294901760
        %3493 = vmatprep.subr.mxu0 %v3492
        %v3494 = vand.u32 %v3418, 4294901760
        %3495 = vmatpush1.msra.mxu0 %v3494
        %3496 = vmatprep.subr.mxu0 0.0
        %3497 = vmatpush1.msra.mxu0 0.0
        %3498 = vmatprep.subr.mxu0 0.0
        %3499 = vmatpush1.msra.mxu0 0.0
        %3500 = vmatprep.subr.mxu0 0.0
        %3501 = vmatpush1.msra.mxu0 0.0
        %3502 = vmatprep.subr.mxu0 0.0
        %3503 = vmatpush1.msra.mxu0 0.0
        %3504 = vmatprep.subr.mxu0 0.0
        %3505 = vmatpush1.msra.mxu0 0.0
        %3506 = vmatprep.subr.mxu0 0.0
        %3507 = vmatpush1.msra.mxu0 0.0
        %3508 = vmatprep.subr.mxu0 0.0
        %3509 = vmatpush1.msra.mxu0 0.0
        %3510 = vmatprep.subr.mxu0 0.0
        %3511 = vmatpush1.msra.mxu0 0.0
        %3512 = vmatprep.subr.mxu0 0.0
        %3513 = vmatpush1.msra.mxu0 0.0
        %3514 = vmatprep.subr.mxu0 0.0
        %3515 = vmatpush1.msra.mxu0 0.0
        %3516 = vmatprep.subr.mxu0 0.0
        %3517 = vmatpush1.msra.mxu0 0.0
        %3518 = vmatprep.subr.mxu0 0.0
        %3519 = vmatpush1.msra.mxu0 0.0
        %3520 = vmatprep.subr.mxu0 0.0
        %3521 = vmatpush1.msra.mxu0 0.0
        %3522 = vmatprep.subr.mxu0 0.0
        %3523 = vmatpush1.msra.mxu0 0.0
        %v3524 = vand.u32 %v3422, 4294901760
        %v3525 = vsub.f32 %v3422, %v3524
        %v3526 = vand.u32 %v3525, 4294901760
        %v3527 = vsub.f32 %v3525, %v3526
        %v3528 = vand.u32 %v3527, 4294901760
        %3529 = vmatprep.mubr.f32.mxu0 %v3528
        %v3530 = vand.u32 %v3344, 4294901760
        %v3531 = vsub.f32 %v3344, %v3530
        %v3532 = vand.u32 %v3531, 4294901760
        %v3533 = vsub.f32 %v3531, %v3532
        %v3534 = vand.u32 %v3533, 4294901760
        %3535 = vmatmul.mubr.f32.gmra.mrb[0].mxu0 %v3534
        %v3536 = vpop.f32.mrb[0].mxu0
        %v3537 = vadd.f32 0.0, %v3536
        %v3538 = vpop.f32.mrb[0].mxu0
        %v3539 = vadd.f32 0.0, %v3538
        %3540 = vdwg.mxu0
        %v3541 = vand.u32 %v3385, 4294901760
        %v3542 = vsub.f32 %v3385, %v3541
        %v3543 = vand.u32 %v3542, 4294901760
        %v3544 = vsub.f32 %v3542, %v3543
        %v3545 = vand.u32 %v3544, 4294901760
        %3546 = vmatprep.subr.mxu0 %v3545
        %v3547 = vand.u32 %v3384, 4294901760
        %v3548 = vsub.f32 %v3384, %v3547
        %v3549 = vand.u32 %v3548, 4294901760
        %v3550 = vsub.f32 %v3548, %v3549
        %v3551 = vand.u32 %v3550, 4294901760
        %3552 = vmatpush1.msra.mxu0 %v3551
        %v3553 = vand.u32 %v3387, 4294901760
        %v3554 = vsub.f32 %v3387, %v3553
        %v3555 = vand.u32 %v3554, 4294901760
        %v3556 = vsub.f32 %v3554, %v3555
        %v3557 = vand.u32 %v3556, 4294901760
        %3558 = vmatprep.subr.mxu0 %v3557
        %v3559 = vand.u32 %v3386, 4294901760
        %v3560 = vsub.f32 %v3386, %v3559
        %v3561 = vand.u32 %v3560, 4294901760
        %v3562 = vsub.f32 %v3560, %v3561
        %v3563 = vand.u32 %v3562, 4294901760
        %3564 = vmatpush1.msra.mxu0 %v3563
        %v3565 = vand.u32 %v3389, 4294901760
        %v3566 = vsub.f32 %v3389, %v3565
        %v3567 = vand.u32 %v3566, 4294901760
        %v3568 = vsub.f32 %v3566, %v3567
        %v3569 = vand.u32 %v3568, 4294901760
        %3570 = vmatprep.subr.mxu0 %v3569
        %v3571 = vand.u32 %v3388, 4294901760
        %v3572 = vsub.f32 %v3388, %v3571
        %v3573 = vand.u32 %v3572, 4294901760
        %v3574 = vsub.f32 %v3572, %v3573
        %v3575 = vand.u32 %v3574, 4294901760
        %3576 = vmatpush1.msra.mxu0 %v3575
        %v3577 = vand.u32 %v3391, 4294901760
        %v3578 = vsub.f32 %v3391, %v3577
        %v3579 = vand.u32 %v3578, 4294901760
        %v3580 = vsub.f32 %v3578, %v3579
        %v3581 = vand.u32 %v3580, 4294901760
        %3582 = vmatprep.subr.mxu0 %v3581
        %v3583 = vand.u32 %v3390, 4294901760
        %v3584 = vsub.f32 %v3390, %v3583
        %v3585 = vand.u32 %v3584, 4294901760
        %v3586 = vsub.f32 %v3584, %v3585
        %v3587 = vand.u32 %v3586, 4294901760
        %3588 = vmatpush1.msra.mxu0 %v3587
        %v3589 = vand.u32 %v3393, 4294901760
        %v3590 = vsub.f32 %v3393, %v3589
        %v3591 = vand.u32 %v3590, 4294901760
        %v3592 = vsub.f32 %v3590, %v3591
        %v3593 = vand.u32 %v3592, 4294901760
        %3594 = vmatprep.subr.mxu0 %v3593
        %v3595 = vand.u32 %v3392, 4294901760
        %v3596 = vsub.f32 %v3392, %v3595
        %v3597 = vand.u32 %v3596, 4294901760
        %v3598 = vsub.f32 %v3596, %v3597
        %v3599 = vand.u32 %v3598, 4294901760
        %3600 = vmatpush1.msra.mxu0 %v3599
        %v3601 = vand.u32 %v3395, 4294901760
        %v3602 = vsub.f32 %v3395, %v3601
        %v3603 = vand.u32 %v3602, 4294901760
        %v3604 = vsub.f32 %v3602, %v3603
        %v3605 = vand.u32 %v3604, 4294901760
        %3606 = vmatprep.subr.mxu0 %v3605
        %v3607 = vand.u32 %v3394, 4294901760
        %v3608 = vsub.f32 %v3394, %v3607
        %v3609 = vand.u32 %v3608, 4294901760
        %v3610 = vsub.f32 %v3608, %v3609
        %v3611 = vand.u32 %v3610, 4294901760
        %3612 = vmatpush1.msra.mxu0 %v3611
        %v3613 = vand.u32 %v3397, 4294901760
        %v3614 = vsub.f32 %v3397, %v3613
        %v3615 = vand.u32 %v3614, 4294901760
        %v3616 = vsub.f32 %v3614, %v3615
        %v3617 = vand.u32 %v3616, 4294901760
        %3618 = vmatprep.subr.mxu0 %v3617
        %v3619 = vand.u32 %v3396, 4294901760
        %v3620 = vsub.f32 %v3396, %v3619
        %v3621 = vand.u32 %v3620, 4294901760
        %v3622 = vsub.f32 %v3620, %v3621
        %v3623 = vand.u32 %v3622, 4294901760
        %3624 = vmatpush1.msra.mxu0 %v3623
        %v3625 = vand.u32 %v3399, 4294901760
        %v3626 = vsub.f32 %v3399, %v3625
        %v3627 = vand.u32 %v3626, 4294901760
        %v3628 = vsub.f32 %v3626, %v3627
        %v3629 = vand.u32 %v3628, 4294901760
        %3630 = vmatprep.subr.mxu0 %v3629
        %v3631 = vand.u32 %v3398, 4294901760
        %v3632 = vsub.f32 %v3398, %v3631
        %v3633 = vand.u32 %v3632, 4294901760
        %v3634 = vsub.f32 %v3632, %v3633
        %v3635 = vand.u32 %v3634, 4294901760
        %3636 = vmatpush1.msra.mxu0 %v3635
        %v3637 = vand.u32 %v3401, 4294901760
        %v3638 = vsub.f32 %v3401, %v3637
        %v3639 = vand.u32 %v3638, 4294901760
        %v3640 = vsub.f32 %v3638, %v3639
        %v3641 = vand.u32 %v3640, 4294901760
        %3642 = vmatprep.subr.mxu0 %v3641
        %v3643 = vand.u32 %v3400, 4294901760
        %v3644 = vsub.f32 %v3400, %v3643
        %v3645 = vand.u32 %v3644, 4294901760
        %v3646 = vsub.f32 %v3644, %v3645
        %v3647 = vand.u32 %v3646, 4294901760
        %3648 = vmatpush1.msra.mxu0 %v3647
        %v3649 = vand.u32 %v3403, 4294901760
        %v3650 = vsub.f32 %v3403, %v3649
        %v3651 = vand.u32 %v3650, 4294901760
        %v3652 = vsub.f32 %v3650, %v3651
        %v3653 = vand.u32 %v3652, 4294901760
        %3654 = vmatprep.subr.mxu0 %v3653
        %v3655 = vand.u32 %v3402, 4294901760
        %v3656 = vsub.f32 %v3402, %v3655
        %v3657 = vand.u32 %v3656, 4294901760
        %v3658 = vsub.f32 %v3656, %v3657
        %v3659 = vand.u32 %v3658, 4294901760
        %3660 = vmatpush1.msra.mxu0 %v3659
        %v3661 = vand.u32 %v3405, 4294901760
        %v3662 = vsub.f32 %v3405, %v3661
        %v3663 = vand.u32 %v3662, 4294901760
        %v3664 = vsub.f32 %v3662, %v3663
        %v3665 = vand.u32 %v3664, 4294901760
        %3666 = vmatprep.subr.mxu0 %v3665
        %v3667 = vand.u32 %v3404, 4294901760
        %v3668 = vsub.f32 %v3404, %v3667
        %v3669 = vand.u32 %v3668, 4294901760
        %v3670 = vsub.f32 %v3668, %v3669
        %v3671 = vand.u32 %v3670, 4294901760
        %3672 = vmatpush1.msra.mxu0 %v3671
        %v3673 = vand.u32 %v3407, 4294901760
        %v3674 = vsub.f32 %v3407, %v3673
        %v3675 = vand.u32 %v3674, 4294901760
        %v3676 = vsub.f32 %v3674, %v3675
        %v3677 = vand.u32 %v3676, 4294901760
        %3678 = vmatprep.subr.mxu0 %v3677
        %v3679 = vand.u32 %v3406, 4294901760
        %v3680 = vsub.f32 %v3406, %v3679
        %v3681 = vand.u32 %v3680, 4294901760
        %v3682 = vsub.f32 %v3680, %v3681
        %v3683 = vand.u32 %v3682, 4294901760
        %3684 = vmatpush1.msra.mxu0 %v3683
        %v3685 = vand.u32 %v3409, 4294901760
        %v3686 = vsub.f32 %v3409, %v3685
        %v3687 = vand.u32 %v3686, 4294901760
        %v3688 = vsub.f32 %v3686, %v3687
        %v3689 = vand.u32 %v3688, 4294901760
        %3690 = vmatprep.subr.mxu0 %v3689
        %v3691 = vand.u32 %v3408, 4294901760
        %v3692 = vsub.f32 %v3408, %v3691
        %v3693 = vand.u32 %v3692, 4294901760
        %v3694 = vsub.f32 %v3692, %v3693
        %v3695 = vand.u32 %v3694, 4294901760
        %3696 = vmatpush1.msra.mxu0 %v3695
        %v3697 = vand.u32 %v3411, 4294901760
        %v3698 = vsub.f32 %v3411, %v3697
        %v3699 = vand.u32 %v3698, 4294901760
        %v3700 = vsub.f32 %v3698, %v3699
        %v3701 = vand.u32 %v3700, 4294901760
        %3702 = vmatprep.subr.mxu0 %v3701
        %v3703 = vand.u32 %v3410, 4294901760
        %v3704 = vsub.f32 %v3410, %v3703
        %v3705 = vand.u32 %v3704, 4294901760
        %v3706 = vsub.f32 %v3704, %v3705
        %v3707 = vand.u32 %v3706, 4294901760
        %3708 = vmatpush1.msra.mxu0 %v3707
        %v3709 = vand.u32 %v3413, 4294901760
        %v3710 = vsub.f32 %v3413, %v3709
        %v3711 = vand.u32 %v3710, 4294901760
        %v3712 = vsub.f32 %v3710, %v3711
        %v3713 = vand.u32 %v3712, 4294901760
        %3714 = vmatprep.subr.mxu0 %v3713
        %v3715 = vand.u32 %v3412, 4294901760
        %v3716 = vsub.f32 %v3412, %v3715
        %v3717 = vand.u32 %v3716, 4294901760
        %v3718 = vsub.f32 %v3716, %v3717
        %v3719 = vand.u32 %v3718, 4294901760
        %3720 = vmatpush1.msra.mxu0 %v3719
        %v3721 = vand.u32 %v3415, 4294901760
        %v3722 = vsub.f32 %v3415, %v3721
        %v3723 = vand.u32 %v3722, 4294901760
        %v3724 = vsub.f32 %v3722, %v3723
        %v3725 = vand.u32 %v3724, 4294901760
        %3726 = vmatprep.subr.mxu0 %v3725
        %v3727 = vand.u32 %v3414, 4294901760
        %v3728 = vsub.f32 %v3414, %v3727
        %v3729 = vand.u32 %v3728, 4294901760
        %v3730 = vsub.f32 %v3728, %v3729
        %v3731 = vand.u32 %v3730, 4294901760
        %3732 = vmatpush1.msra.mxu0 %v3731
        %v3733 = vand.u32 %v3417, 4294901760
        %v3734 = vsub.f32 %v3417, %v3733
        %v3735 = vand.u32 %v3734, 4294901760
        %v3736 = vsub.f32 %v3734, %v3735
        %v3737 = vand.u32 %v3736, 4294901760
        %3738 = vmatprep.subr.mxu0 %v3737
        %v3739 = vand.u32 %v3416, 4294901760
        %v3740 = vsub.f32 %v3416, %v3739
        %v3741 = vand.u32 %v3740, 4294901760
        %v3742 = vsub.f32 %v3740, %v3741
        %v3743 = vand.u32 %v3742, 4294901760
        %3744 = vmatpush1.msra.mxu0 %v3743
        %v3745 = vand.u32 %v3419, 4294901760
        %v3746 = vsub.f32 %v3419, %v3745
        %v3747 = vand.u32 %v3746, 4294901760
        %v3748 = vsub.f32 %v3746, %v3747
        %v3749 = vand.u32 %v3748, 4294901760
        %3750 = vmatprep.subr.mxu0 %v3749
        %v3751 = vand.u32 %v3418, 4294901760
        %v3752 = vsub.f32 %v3418, %v3751
        %v3753 = vand.u32 %v3752, 4294901760
        %v3754 = vsub.f32 %v3752, %v3753
        %v3755 = vand.u32 %v3754, 4294901760
        %3756 = vmatpush1.msra.mxu0 %v3755
        %3757 = vmatprep.subr.mxu0 0.0
        %3758 = vmatpush1.msra.mxu0 0.0
        %3759 = vmatprep.subr.mxu0 0.0
        %3760 = vmatpush1.msra.mxu0 0.0
        %3761 = vmatprep.subr.mxu0 0.0
        %3762 = vmatpush1.msra.mxu0 0.0
        %3763 = vmatprep.subr.mxu0 0.0
        %3764 = vmatpush1.msra.mxu0 0.0
        %3765 = vmatprep.subr.mxu0 0.0
        %3766 = vmatpush1.msra.mxu0 0.0
        %3767 = vmatprep.subr.mxu0 0.0
        %3768 = vmatpush1.msra.mxu0 0.0
        %3769 = vmatprep.subr.mxu0 0.0
        %3770 = vmatpush1.msra.mxu0 0.0
        %3771 = vmatprep.subr.mxu0 0.0
        %3772 = vmatpush1.msra.mxu0 0.0
        %3773 = vmatprep.subr.mxu0 0.0
        %3774 = vmatpush1.msra.mxu0 0.0
        %3775 = vmatprep.subr.mxu0 0.0
        %3776 = vmatpush1.msra.mxu0 0.0
        %3777 = vmatprep.subr.mxu0 0.0
        %3778 = vmatpush1.msra.mxu0 0.0
        %3779 = vmatprep.subr.mxu0 0.0
        %3780 = vmatpush1.msra.mxu0 0.0
        %3781 = vmatprep.subr.mxu0 0.0
        %3782 = vmatpush1.msra.mxu0 0.0
        %3783 = vmatprep.subr.mxu0 0.0
        %3784 = vmatpush1.msra.mxu0 0.0
        %v3785 = vand.u32 %v3422, 4294901760
        %3786 = vmatprep.mubr.f32.mxu0 %v3785
        %v3787 = vand.u32 %v3344, 4294901760
        %3788 = vmatmul.mubr.f32.gmra.mrb[0].mxu0 %v3787
        %v3789 = vpop.f32.mrb[0].mxu0
        %v3790 = vadd.f32 %v3537, %v3789
        %v3791 = vpop.f32.mrb[0].mxu0
        %v3792 = vadd.f32 %v3539, %v3791
        %3793 = vdwg.mxu0
        %v3794 = vand.u32 %v3385, 4294901760
        %v3795 = vsub.f32 %v3385, %v3794
        %3796 = vmatprep.subr.mxu0 %v3795
        %v3797 = vand.u32 %v3384, 4294901760
        %v3798 = vsub.f32 %v3384, %v3797
        %3799 = vmatpush1.msra.mxu0 %v3798
        %v3800 = vand.u32 %v3387, 4294901760
        %v3801 = vsub.f32 %v3387, %v3800
        %3802 = vmatprep.subr.mxu0 %v3801
        %v3803 = vand.u32 %v3386, 4294901760
        %v3804 = vsub.f32 %v3386, %v3803
        %3805 = vmatpush1.msra.mxu0 %v3804
        %v3806 = vand.u32 %v3389, 4294901760
        %v3807 = vsub.f32 %v3389, %v3806
        %3808 = vmatprep.subr.mxu0 %v3807
        %v3809 = vand.u32 %v3388, 4294901760
        %v3810 = vsub.f32 %v3388, %v3809
        %3811 = vmatpush1.msra.mxu0 %v3810
        %v3812 = vand.u32 %v3391, 4294901760
        %v3813 = vsub.f32 %v3391, %v3812
        %3814 = vmatprep.subr.mxu0 %v3813
        %v3815 = vand.u32 %v3390, 4294901760
        %v3816 = vsub.f32 %v3390, %v3815
        %3817 = vmatpush1.msra.mxu0 %v3816
        %v3818 = vand.u32 %v3393, 4294901760
        %v3819 = vsub.f32 %v3393, %v3818
        %3820 = vmatprep.subr.mxu0 %v3819
        %v3821 = vand.u32 %v3392, 4294901760
        %v3822 = vsub.f32 %v3392, %v3821
        %3823 = vmatpush1.msra.mxu0 %v3822
        %v3824 = vand.u32 %v3395, 4294901760
        %v3825 = vsub.f32 %v3395, %v3824
        %3826 = vmatprep.subr.mxu0 %v3825
        %v3827 = vand.u32 %v3394, 4294901760
        %v3828 = vsub.f32 %v3394, %v3827
        %3829 = vmatpush1.msra.mxu0 %v3828
        %v3830 = vand.u32 %v3397, 4294901760
        %v3831 = vsub.f32 %v3397, %v3830
        %3832 = vmatprep.subr.mxu0 %v3831
        %v3833 = vand.u32 %v3396, 4294901760
        %v3834 = vsub.f32 %v3396, %v3833
        %3835 = vmatpush1.msra.mxu0 %v3834
        %v3836 = vand.u32 %v3399, 4294901760
        %v3837 = vsub.f32 %v3399, %v3836
        %3838 = vmatprep.subr.mxu0 %v3837
        %v3839 = vand.u32 %v3398, 4294901760
        %v3840 = vsub.f32 %v3398, %v3839
        %3841 = vmatpush1.msra.mxu0 %v3840
        %v3842 = vand.u32 %v3401, 4294901760
        %v3843 = vsub.f32 %v3401, %v3842
        %3844 = vmatprep.subr.mxu0 %v3843
        %v3845 = vand.u32 %v3400, 4294901760
        %v3846 = vsub.f32 %v3400, %v3845
        %3847 = vmatpush1.msra.mxu0 %v3846
        %v3848 = vand.u32 %v3403, 4294901760
        %v3849 = vsub.f32 %v3403, %v3848
        %3850 = vmatprep.subr.mxu0 %v3849
        %v3851 = vand.u32 %v3402, 4294901760
        %v3852 = vsub.f32 %v3402, %v3851
        %3853 = vmatpush1.msra.mxu0 %v3852
        %v3854 = vand.u32 %v3405, 4294901760
        %v3855 = vsub.f32 %v3405, %v3854
        %3856 = vmatprep.subr.mxu0 %v3855
        %v3857 = vand.u32 %v3404, 4294901760
        %v3858 = vsub.f32 %v3404, %v3857
        %3859 = vmatpush1.msra.mxu0 %v3858
        %v3860 = vand.u32 %v3407, 4294901760
        %v3861 = vsub.f32 %v3407, %v3860
        %3862 = vmatprep.subr.mxu0 %v3861
        %v3863 = vand.u32 %v3406, 4294901760
        %v3864 = vsub.f32 %v3406, %v3863
        %3865 = vmatpush1.msra.mxu0 %v3864
        %v3866 = vand.u32 %v3409, 4294901760
        %v3867 = vsub.f32 %v3409, %v3866
        %3868 = vmatprep.subr.mxu0 %v3867
        %v3869 = vand.u32 %v3408, 4294901760
        %v3870 = vsub.f32 %v3408, %v3869
        %3871 = vmatpush1.msra.mxu0 %v3870
        %v3872 = vand.u32 %v3411, 4294901760
        %v3873 = vsub.f32 %v3411, %v3872
        %3874 = vmatprep.subr.mxu0 %v3873
        %v3875 = vand.u32 %v3410, 4294901760
        %v3876 = vsub.f32 %v3410, %v3875
        %3877 = vmatpush1.msra.mxu0 %v3876
        %v3878 = vand.u32 %v3413, 4294901760
        %v3879 = vsub.f32 %v3413, %v3878
        %3880 = vmatprep.subr.mxu0 %v3879
        %v3881 = vand.u32 %v3412, 4294901760
        %v3882 = vsub.f32 %v3412, %v3881
        %3883 = vmatpush1.msra.mxu0 %v3882
        %v3884 = vand.u32 %v3415, 4294901760
        %v3885 = vsub.f32 %v3415, %v3884
        %3886 = vmatprep.subr.mxu0 %v3885
        %v3887 = vand.u32 %v3414, 4294901760
        %v3888 = vsub.f32 %v3414, %v3887
        %3889 = vmatpush1.msra.mxu0 %v3888
        %v3890 = vand.u32 %v3417, 4294901760
        %v3891 = vsub.f32 %v3417, %v3890
        %3892 = vmatprep.subr.mxu0 %v3891
        %v3893 = vand.u32 %v3416, 4294901760
        %v3894 = vsub.f32 %v3416, %v3893
        %3895 = vmatpush1.msra.mxu0 %v3894
        %v3896 = vand.u32 %v3419, 4294901760
        %v3897 = vsub.f32 %v3419, %v3896
        %3898 = vmatprep.subr.mxu0 %v3897
        %v3899 = vand.u32 %v3418, 4294901760
        %v3900 = vsub.f32 %v3418, %v3899
        %3901 = vmatpush1.msra.mxu0 %v3900
        %3902 = vmatprep.subr.mxu0 0.0
        %3903 = vmatpush1.msra.mxu0 0.0
        %3904 = vmatprep.subr.mxu0 0.0
        %3905 = vmatpush1.msra.mxu0 0.0
        %3906 = vmatprep.subr.mxu0 0.0
        %3907 = vmatpush1.msra.mxu0 0.0
        %3908 = vmatprep.subr.mxu0 0.0
        %3909 = vmatpush1.msra.mxu0 0.0
        %3910 = vmatprep.subr.mxu0 0.0
        %3911 = vmatpush1.msra.mxu0 0.0
        %3912 = vmatprep.subr.mxu0 0.0
        %3913 = vmatpush1.msra.mxu0 0.0
        %3914 = vmatprep.subr.mxu0 0.0
        %3915 = vmatpush1.msra.mxu0 0.0
        %3916 = vmatprep.subr.mxu0 0.0
        %3917 = vmatpush1.msra.mxu0 0.0
        %3918 = vmatprep.subr.mxu0 0.0
        %3919 = vmatpush1.msra.mxu0 0.0
        %3920 = vmatprep.subr.mxu0 0.0
        %3921 = vmatpush1.msra.mxu0 0.0
        %3922 = vmatprep.subr.mxu0 0.0
        %3923 = vmatpush1.msra.mxu0 0.0
        %3924 = vmatprep.subr.mxu0 0.0
        %3925 = vmatpush1.msra.mxu0 0.0
        %3926 = vmatprep.subr.mxu0 0.0
        %3927 = vmatpush1.msra.mxu0 0.0
        %3928 = vmatprep.subr.mxu0 0.0
        %3929 = vmatpush1.msra.mxu0 0.0
        %v3930 = vand.u32 %v3422, 4294901760
        %v3931 = vsub.f32 %v3422, %v3930
        %3932 = vmatprep.mubr.f32.mxu0 %v3931
        %v3933 = vand.u32 %v3344, 4294901760
        %v3934 = vsub.f32 %v3344, %v3933
        %3935 = vmatmul.mubr.f32.gmra.mrb[0].mxu0 %v3934
        %v3936 = vpop.f32.mrb[0].mxu0
        %v3937 = vadd.f32 %v3790, %v3936
        %v3938 = vpop.f32.mrb[0].mxu0
        %v3939 = vadd.f32 %v3792, %v3938
        %3940 = vdwg.mxu0
        %v3941 = vand.u32 %v3385, 4294901760
        %3942 = vmatprep.subr.mxu0 %v3941
        %v3943 = vand.u32 %v3384, 4294901760
        %3944 = vmatpush1.msra.mxu0 %v3943
        %v3945 = vand.u32 %v3387, 4294901760
        %3946 = vmatprep.subr.mxu0 %v3945
        %v3947 = vand.u32 %v3386, 4294901760
        %3948 = vmatpush1.msra.mxu0 %v3947
        %v3949 = vand.u32 %v3389, 4294901760
        %3950 = vmatprep.subr.mxu0 %v3949
        %v3951 = vand.u32 %v3388, 4294901760
        %3952 = vmatpush1.msra.mxu0 %v3951
        %v3953 = vand.u32 %v3391, 4294901760
        %3954 = vmatprep.subr.mxu0 %v3953
        %v3955 = vand.u32 %v3390, 4294901760
        %3956 = vmatpush1.msra.mxu0 %v3955
        %v3957 = vand.u32 %v3393, 4294901760
        %3958 = vmatprep.subr.mxu0 %v3957
        %v3959 = vand.u32 %v3392, 4294901760
        %3960 = vmatpush1.msra.mxu0 %v3959
        %v3961 = vand.u32 %v3395, 4294901760
        %3962 = vmatprep.subr.mxu0 %v3961
        %v3963 = vand.u32 %v3394, 4294901760
        %3964 = vmatpush1.msra.mxu0 %v3963
        %v3965 = vand.u32 %v3397, 4294901760
        %3966 = vmatprep.subr.mxu0 %v3965
        %v3967 = vand.u32 %v3396, 4294901760
        %3968 = vmatpush1.msra.mxu0 %v3967
        %v3969 = vand.u32 %v3399, 4294901760
        %3970 = vmatprep.subr.mxu0 %v3969
        %v3971 = vand.u32 %v3398, 4294901760
        %3972 = vmatpush1.msra.mxu0 %v3971
        %v3973 = vand.u32 %v3401, 4294901760
        %3974 = vmatprep.subr.mxu0 %v3973
        %v3975 = vand.u32 %v3400, 4294901760
        %3976 = vmatpush1.msra.mxu0 %v3975
        %v3977 = vand.u32 %v3403, 4294901760
        %3978 = vmatprep.subr.mxu0 %v3977
        %v3979 = vand.u32 %v3402, 4294901760
        %3980 = vmatpush1.msra.mxu0 %v3979
        %v3981 = vand.u32 %v3405, 4294901760
        %3982 = vmatprep.subr.mxu0 %v3981
        %v3983 = vand.u32 %v3404, 4294901760
        %3984 = vmatpush1.msra.mxu0 %v3983
        %v3985 = vand.u32 %v3407, 4294901760
        %3986 = vmatprep.subr.mxu0 %v3985
        %v3987 = vand.u32 %v3406, 4294901760
        %3988 = vmatpush1.msra.mxu0 %v3987
        %v3989 = vand.u32 %v3409, 4294901760
        %3990 = vmatprep.subr.mxu0 %v3989
        %v3991 = vand.u32 %v3408, 4294901760
        %3992 = vmatpush1.msra.mxu0 %v3991
        %v3993 = vand.u32 %v3411, 4294901760
        %3994 = vmatprep.subr.mxu0 %v3993
        %v3995 = vand.u32 %v3410, 4294901760
        %3996 = vmatpush1.msra.mxu0 %v3995
        %v3997 = vand.u32 %v3413, 4294901760
        %3998 = vmatprep.subr.mxu0 %v3997
        %v3999 = vand.u32 %v3412, 4294901760
        %4000 = vmatpush1.msra.mxu0 %v3999
        %v4001 = vand.u32 %v3415, 4294901760
        %4002 = vmatprep.subr.mxu0 %v4001
        %v4003 = vand.u32 %v3414, 4294901760
        %4004 = vmatpush1.msra.mxu0 %v4003
        %v4005 = vand.u32 %v3417, 4294901760
        %4006 = vmatprep.subr.mxu0 %v4005
        %v4007 = vand.u32 %v3416, 4294901760
        %4008 = vmatpush1.msra.mxu0 %v4007
        %v4009 = vand.u32 %v3419, 4294901760
        %4010 = vmatprep.subr.mxu0 %v4009
        %v4011 = vand.u32 %v3418, 4294901760
        %4012 = vmatpush1.msra.mxu0 %v4011
        %4013 = vmatprep.subr.mxu0 0.0
        %4014 = vmatpush1.msra.mxu0 0.0
        %4015 = vmatprep.subr.mxu0 0.0
        %4016 = vmatpush1.msra.mxu0 0.0
        %4017 = vmatprep.subr.mxu0 0.0
        %4018 = vmatpush1.msra.mxu0 0.0
        %4019 = vmatprep.subr.mxu0 0.0
        %4020 = vmatpush1.msra.mxu0 0.0
        %4021 = vmatprep.subr.mxu0 0.0
        %4022 = vmatpush1.msra.mxu0 0.0
        %4023 = vmatprep.subr.mxu0 0.0
        %4024 = vmatpush1.msra.mxu0 0.0
        %4025 = vmatprep.subr.mxu0 0.0
        %4026 = vmatpush1.msra.mxu0 0.0
        %4027 = vmatprep.subr.mxu0 0.0
        %4028 = vmatpush1.msra.mxu0 0.0
        %4029 = vmatprep.subr.mxu0 0.0
        %4030 = vmatpush1.msra.mxu0 0.0
        %4031 = vmatprep.subr.mxu0 0.0
        %4032 = vmatpush1.msra.mxu0 0.0
        %4033 = vmatprep.subr.mxu0 0.0
        %4034 = vmatpush1.msra.mxu0 0.0
        %4035 = vmatprep.subr.mxu0 0.0
        %4036 = vmatpush1.msra.mxu0 0.0
        %4037 = vmatprep.subr.mxu0 0.0
        %4038 = vmatpush1.msra.mxu0 0.0
        %4039 = vmatprep.subr.mxu0 0.0
        %4040 = vmatpush1.msra.mxu0 0.0
        %v4041 = vand.u32 %v3422, 4294901760
        %v4042 = vsub.f32 %v3422, %v4041
        %v4043 = vand.u32 %v4042, 4294901760
        %4044 = vmatprep.mubr.f32.mxu0 %v4043
        %v4045 = vand.u32 %v3344, 4294901760
        %v4046 = vsub.f32 %v3344, %v4045
        %v4047 = vand.u32 %v4046, 4294901760
        %4048 = vmatmul.mubr.f32.gmra.mrb[0].mxu0 %v4047
        %v4049 = vpop.f32.mrb[0].mxu0
        %v4050 = vadd.f32 %v3937, %v4049
        %v4051 = vpop.f32.mrb[0].mxu0
        %v4052 = vadd.f32 %v3939, %v4051
        %4053 = vdwg.mxu0
        %v4054 = vand.u32 %v3385, 4294901760
        %v4055 = vsub.f32 %v3385, %v4054
        %v4056 = vand.u32 %v4055, 4294901760
        %4057 = vmatprep.subr.mxu0 %v4056
        %v4058 = vand.u32 %v3384, 4294901760
        %v4059 = vsub.f32 %v3384, %v4058
        %v4060 = vand.u32 %v4059, 4294901760
        %4061 = vmatpush1.msra.mxu0 %v4060
        %v4062 = vand.u32 %v3387, 4294901760
        %v4063 = vsub.f32 %v3387, %v4062
        %v4064 = vand.u32 %v4063, 4294901760
        %4065 = vmatprep.subr.mxu0 %v4064
        %v4066 = vand.u32 %v3386, 4294901760
        %v4067 = vsub.f32 %v3386, %v4066
        %v4068 = vand.u32 %v4067, 4294901760
        %4069 = vmatpush1.msra.mxu0 %v4068
        %v4070 = vand.u32 %v3389, 4294901760
        %v4071 = vsub.f32 %v3389, %v4070
        %v4072 = vand.u32 %v4071, 4294901760
        %4073 = vmatprep.subr.mxu0 %v4072
        %v4074 = vand.u32 %v3388, 4294901760
        %v4075 = vsub.f32 %v3388, %v4074
        %v4076 = vand.u32 %v4075, 4294901760
        %4077 = vmatpush1.msra.mxu0 %v4076
        %v4078 = vand.u32 %v3391, 4294901760
        %v4079 = vsub.f32 %v3391, %v4078
        %v4080 = vand.u32 %v4079, 4294901760
        %4081 = vmatprep.subr.mxu0 %v4080
        %v4082 = vand.u32 %v3390, 4294901760
        %v4083 = vsub.f32 %v3390, %v4082
        %v4084 = vand.u32 %v4083, 4294901760
        %4085 = vmatpush1.msra.mxu0 %v4084
        %v4086 = vand.u32 %v3393, 4294901760
        %v4087 = vsub.f32 %v3393, %v4086
        %v4088 = vand.u32 %v4087, 4294901760
        %4089 = vmatprep.subr.mxu0 %v4088
        %v4090 = vand.u32 %v3392, 4294901760
        %v4091 = vsub.f32 %v3392, %v4090
        %v4092 = vand.u32 %v4091, 4294901760
        %4093 = vmatpush1.msra.mxu0 %v4092
        %v4094 = vand.u32 %v3395, 4294901760
        %v4095 = vsub.f32 %v3395, %v4094
        %v4096 = vand.u32 %v4095, 4294901760
        %4097 = vmatprep.subr.mxu0 %v4096
        %v4098 = vand.u32 %v3394, 4294901760
        %v4099 = vsub.f32 %v3394, %v4098
        %v4100 = vand.u32 %v4099, 4294901760
        %4101 = vmatpush1.msra.mxu0 %v4100
        %v4102 = vand.u32 %v3397, 4294901760
        %v4103 = vsub.f32 %v3397, %v4102
        %v4104 = vand.u32 %v4103, 4294901760
        %4105 = vmatprep.subr.mxu0 %v4104
        %v4106 = vand.u32 %v3396, 4294901760
        %v4107 = vsub.f32 %v3396, %v4106
        %v4108 = vand.u32 %v4107, 4294901760
        %4109 = vmatpush1.msra.mxu0 %v4108
        %v4110 = vand.u32 %v3399, 4294901760
        %v4111 = vsub.f32 %v3399, %v4110
        %v4112 = vand.u32 %v4111, 4294901760
        %4113 = vmatprep.subr.mxu0 %v4112
        %v4114 = vand.u32 %v3398, 4294901760
        %v4115 = vsub.f32 %v3398, %v4114
        %v4116 = vand.u32 %v4115, 4294901760
        %4117 = vmatpush1.msra.mxu0 %v4116
        %v4118 = vand.u32 %v3401, 4294901760
        %v4119 = vsub.f32 %v3401, %v4118
        %v4120 = vand.u32 %v4119, 4294901760
        %4121 = vmatprep.subr.mxu0 %v4120
        %v4122 = vand.u32 %v3400, 4294901760
        %v4123 = vsub.f32 %v3400, %v4122
        %v4124 = vand.u32 %v4123, 4294901760
        %4125 = vmatpush1.msra.mxu0 %v4124
        %v4126 = vand.u32 %v3403, 4294901760
        %v4127 = vsub.f32 %v3403, %v4126
        %v4128 = vand.u32 %v4127, 4294901760
        %4129 = vmatprep.subr.mxu0 %v4128
        %v4130 = vand.u32 %v3402, 4294901760
        %v4131 = vsub.f32 %v3402, %v4130
        %v4132 = vand.u32 %v4131, 4294901760
        %4133 = vmatpush1.msra.mxu0 %v4132
        %v4134 = vand.u32 %v3405, 4294901760
        %v4135 = vsub.f32 %v3405, %v4134
        %v4136 = vand.u32 %v4135, 4294901760
        %4137 = vmatprep.subr.mxu0 %v4136
        %v4138 = vand.u32 %v3404, 4294901760
        %v4139 = vsub.f32 %v3404, %v4138
        %v4140 = vand.u32 %v4139, 4294901760
        %4141 = vmatpush1.msra.mxu0 %v4140
        %v4142 = vand.u32 %v3407, 4294901760
        %v4143 = vsub.f32 %v3407, %v4142
        %v4144 = vand.u32 %v4143, 4294901760
        %4145 = vmatprep.subr.mxu0 %v4144
        %v4146 = vand.u32 %v3406, 4294901760
        %v4147 = vsub.f32 %v3406, %v4146
        %v4148 = vand.u32 %v4147, 4294901760
        %4149 = vmatpush1.msra.mxu0 %v4148
        %v4150 = vand.u32 %v3409, 4294901760
        %v4151 = vsub.f32 %v3409, %v4150
        %v4152 = vand.u32 %v4151, 4294901760
        %4153 = vmatprep.subr.mxu0 %v4152
        %v4154 = vand.u32 %v3408, 4294901760
        %v4155 = vsub.f32 %v3408, %v4154
        %v4156 = vand.u32 %v4155, 4294901760
        %4157 = vmatpush1.msra.mxu0 %v4156
        %v4158 = vand.u32 %v3411, 4294901760
        %v4159 = vsub.f32 %v3411, %v4158
        %v4160 = vand.u32 %v4159, 4294901760
        %4161 = vmatprep.subr.mxu0 %v4160
        %v4162 = vand.u32 %v3410, 4294901760
        %v4163 = vsub.f32 %v3410, %v4162
        %v4164 = vand.u32 %v4163, 4294901760
        %4165 = vmatpush1.msra.mxu0 %v4164
        %v4166 = vand.u32 %v3413, 4294901760
        %v4167 = vsub.f32 %v3413, %v4166
        %v4168 = vand.u32 %v4167, 4294901760
        %4169 = vmatprep.subr.mxu0 %v4168
        %v4170 = vand.u32 %v3412, 4294901760
        %v4171 = vsub.f32 %v3412, %v4170
        %v4172 = vand.u32 %v4171, 4294901760
        %4173 = vmatpush1.msra.mxu0 %v4172
        %v4174 = vand.u32 %v3415, 4294901760
        %v4175 = vsub.f32 %v3415, %v4174
        %v4176 = vand.u32 %v4175, 4294901760
        %4177 = vmatprep.subr.mxu0 %v4176
        %v4178 = vand.u32 %v3414, 4294901760
        %v4179 = vsub.f32 %v3414, %v4178
        %v4180 = vand.u32 %v4179, 4294901760
        %4181 = vmatpush1.msra.mxu0 %v4180
        %v4182 = vand.u32 %v3417, 4294901760
        %v4183 = vsub.f32 %v3417, %v4182
        %v4184 = vand.u32 %v4183, 4294901760
        %4185 = vmatprep.subr.mxu0 %v4184
        %v4186 = vand.u32 %v3416, 4294901760
        %v4187 = vsub.f32 %v3416, %v4186
        %v4188 = vand.u32 %v4187, 4294901760
        %4189 = vmatpush1.msra.mxu0 %v4188
        %v4190 = vand.u32 %v3419, 4294901760
        %v4191 = vsub.f32 %v3419, %v4190
        %v4192 = vand.u32 %v4191, 4294901760
        %4193 = vmatprep.subr.mxu0 %v4192
        %v4194 = vand.u32 %v3418, 4294901760
        %v4195 = vsub.f32 %v3418, %v4194
        %v4196 = vand.u32 %v4195, 4294901760
        %4197 = vmatpush1.msra.mxu0 %v4196
        %4198 = vmatprep.subr.mxu0 0.0
        %4199 = vmatpush1.msra.mxu0 0.0
        %4200 = vmatprep.subr.mxu0 0.0
        %4201 = vmatpush1.msra.mxu0 0.0
        %4202 = vmatprep.subr.mxu0 0.0
        %4203 = vmatpush1.msra.mxu0 0.0
        %4204 = vmatprep.subr.mxu0 0.0
        %4205 = vmatpush1.msra.mxu0 0.0
        %4206 = vmatprep.subr.mxu0 0.0
        %4207 = vmatpush1.msra.mxu0 0.0
        %4208 = vmatprep.subr.mxu0 0.0
        %4209 = vmatpush1.msra.mxu0 0.0
        %4210 = vmatprep.subr.mxu0 0.0
        %4211 = vmatpush1.msra.mxu0 0.0
        %4212 = vmatprep.subr.mxu0 0.0
        %4213 = vmatpush1.msra.mxu0 0.0
        %4214 = vmatprep.subr.mxu0 0.0
        %4215 = vmatpush1.msra.mxu0 0.0
        %4216 = vmatprep.subr.mxu0 0.0
        %4217 = vmatpush1.msra.mxu0 0.0
        %4218 = vmatprep.subr.mxu0 0.0
        %4219 = vmatpush1.msra.mxu0 0.0
        %4220 = vmatprep.subr.mxu0 0.0
        %4221 = vmatpush1.msra.mxu0 0.0
        %4222 = vmatprep.subr.mxu0 0.0
        %4223 = vmatpush1.msra.mxu0 0.0
        %4224 = vmatprep.subr.mxu0 0.0
        %4225 = vmatpush1.msra.mxu0 0.0
        %v4226 = vand.u32 %v3422, 4294901760
        %4227 = vmatprep.mubr.f32.mxu0 %v4226
        %v4228 = vand.u32 %v3344, 4294901760
        %4229 = vmatmul.mubr.f32.gmra.mrb[0].mxu0 %v4228
        %v4230 = vpop.f32.mrb[0].mxu0
        %v4231 = vadd.f32 %v4050, %v4230
        %v4232 = vpop.f32.mrb[0].mxu0
        %v4233 = vadd.f32 %v4052, %v4232
        %4234 = vdwg.mxu0
        %v4235 = vand.u32 %v3385, 4294901760
        %4236 = vmatprep.subr.mxu0 %v4235
        %v4237 = vand.u32 %v3384, 4294901760
        %4238 = vmatpush1.msra.mxu0 %v4237
        %v4239 = vand.u32 %v3387, 4294901760
        %4240 = vmatprep.subr.mxu0 %v4239
        %v4241 = vand.u32 %v3386, 4294901760
        %4242 = vmatpush1.msra.mxu0 %v4241
        %v4243 = vand.u32 %v3389, 4294901760
        %4244 = vmatprep.subr.mxu0 %v4243
        %v4245 = vand.u32 %v3388, 4294901760
        %4246 = vmatpush1.msra.mxu0 %v4245
        %v4247 = vand.u32 %v3391, 4294901760
        %4248 = vmatprep.subr.mxu0 %v4247
        %v4249 = vand.u32 %v3390, 4294901760
        %4250 = vmatpush1.msra.mxu0 %v4249
        %v4251 = vand.u32 %v3393, 4294901760
        %4252 = vmatprep.subr.mxu0 %v4251
        %v4253 = vand.u32 %v3392, 4294901760
        %4254 = vmatpush1.msra.mxu0 %v4253
        %v4255 = vand.u32 %v3395, 4294901760
        %4256 = vmatprep.subr.mxu0 %v4255
        %v4257 = vand.u32 %v3394, 4294901760
        %4258 = vmatpush1.msra.mxu0 %v4257
        %v4259 = vand.u32 %v3397, 4294901760
        %4260 = vmatprep.subr.mxu0 %v4259
        %v4261 = vand.u32 %v3396, 4294901760
        %4262 = vmatpush1.msra.mxu0 %v4261
        %v4263 = vand.u32 %v3399, 4294901760
        %4264 = vmatprep.subr.mxu0 %v4263
        %v4265 = vand.u32 %v3398, 4294901760
        %4266 = vmatpush1.msra.mxu0 %v4265
        %v4267 = vand.u32 %v3401, 4294901760
        %4268 = vmatprep.subr.mxu0 %v4267
        %v4269 = vand.u32 %v3400, 4294901760
        %4270 = vmatpush1.msra.mxu0 %v4269
        %v4271 = vand.u32 %v3403, 4294901760
        %4272 = vmatprep.subr.mxu0 %v4271
        %v4273 = vand.u32 %v3402, 4294901760
        %4274 = vmatpush1.msra.mxu0 %v4273
        %v4275 = vand.u32 %v3405, 4294901760
        %4276 = vmatprep.subr.mxu0 %v4275
        %v4277 = vand.u32 %v3404, 4294901760
        %4278 = vmatpush1.msra.mxu0 %v4277
        %v4279 = vand.u32 %v3407, 4294901760
        %4280 = vmatprep.subr.mxu0 %v4279
        %v4281 = vand.u32 %v3406, 4294901760
        %4282 = vmatpush1.msra.mxu0 %v4281
        %v4283 = vand.u32 %v3409, 4294901760
        %4284 = vmatprep.subr.mxu0 %v4283
        %v4285 = vand.u32 %v3408, 4294901760
        %4286 = vmatpush1.msra.mxu0 %v4285
        %v4287 = vand.u32 %v3411, 4294901760
        %4288 = vmatprep.subr.mxu0 %v4287
        %v4289 = vand.u32 %v3410, 4294901760
        %4290 = vmatpush1.msra.mxu0 %v4289
        %v4291 = vand.u32 %v3413, 4294901760
        %4292 = vmatprep.subr.mxu0 %v4291
        %v4293 = vand.u32 %v3412, 4294901760
        %4294 = vmatpush1.msra.mxu0 %v4293
        %v4295 = vand.u32 %v3415, 4294901760
        %4296 = vmatprep.subr.mxu0 %v4295
        %v4297 = vand.u32 %v3414, 4294901760
        %4298 = vmatpush1.msra.mxu0 %v4297
        %v4299 = vand.u32 %v3417, 4294901760
        %4300 = vmatprep.subr.mxu0 %v4299
        %v4301 = vand.u32 %v3416, 4294901760
        %4302 = vmatpush1.msra.mxu0 %v4301
        %v4303 = vand.u32 %v3419, 4294901760
        %4304 = vmatprep.subr.mxu0 %v4303
        %v4305 = vand.u32 %v3418, 4294901760
        %4306 = vmatpush1.msra.mxu0 %v4305
        %4307 = vmatprep.subr.mxu0 0.0
        %4308 = vmatpush1.msra.mxu0 0.0
        %4309 = vmatprep.subr.mxu0 0.0
        %4310 = vmatpush1.msra.mxu0 0.0
        %4311 = vmatprep.subr.mxu0 0.0
        %4312 = vmatpush1.msra.mxu0 0.0
        %4313 = vmatprep.subr.mxu0 0.0
        %4314 = vmatpush1.msra.mxu0 0.0
        %4315 = vmatprep.subr.mxu0 0.0
        %4316 = vmatpush1.msra.mxu0 0.0
        %4317 = vmatprep.subr.mxu0 0.0
        %4318 = vmatpush1.msra.mxu0 0.0
        %4319 = vmatprep.subr.mxu0 0.0
        %4320 = vmatpush1.msra.mxu0 0.0
        %4321 = vmatprep.subr.mxu0 0.0
        %4322 = vmatpush1.msra.mxu0 0.0
        %4323 = vmatprep.subr.mxu0 0.0
        %4324 = vmatpush1.msra.mxu0 0.0
        %4325 = vmatprep.subr.mxu0 0.0
        %4326 = vmatpush1.msra.mxu0 0.0
        %4327 = vmatprep.subr.mxu0 0.0
        %4328 = vmatpush1.msra.mxu0 0.0
        %4329 = vmatprep.subr.mxu0 0.0
        %4330 = vmatpush1.msra.mxu0 0.0
        %4331 = vmatprep.subr.mxu0 0.0
        %4332 = vmatpush1.msra.mxu0 0.0
        %4333 = vmatprep.subr.mxu0 0.0
        %4334 = vmatpush1.msra.mxu0 0.0
        %v4335 = vand.u32 %v3422, 4294901760
        %4336 = vmatprep.mubr.f32.mxu0 %v4335
        %v4337 = vand.u32 %v3344, 4294901760
        %4338 = vmatmul.mubr.f32.gmra.mrb[0].mxu0 %v4337
        %v4339 = vpop.f32.mrb[0].mxu0
        %v4340 = vadd.f32 %v4231, %v4339
        %v4341 = vpop.f32.mrb[0].mxu0
        %v4342 = vadd.f32 %v4233, %v4341
        %4343 = vdwg.mxu0
        %v4345 = vsel %vm3420, %v3271, 0
        %v4347 = vand.u32 %v3349, 4294901760
        %4348 = vmatprep.subr.mxu0 %v4347
        %v4349 = vand.u32 %v3348, 4294901760
        %4350 = vmatpush1.msra.mxu0 %v4349
        %v4351 = vand.u32 %v3351, 4294901760
        %4352 = vmatprep.subr.mxu0 %v4351
        %v4353 = vand.u32 %v3350, 4294901760
        %4354 = vmatpush1.msra.mxu0 %v4353
        %v4355 = vand.u32 %v3353, 4294901760
        %4356 = vmatprep.subr.mxu0 %v4355
        %v4357 = vand.u32 %v3352, 4294901760
        %4358 = vmatpush1.msra.mxu0 %v4357
        %v4359 = vand.u32 %v3355, 4294901760
        %4360 = vmatprep.subr.mxu0 %v4359
        %v4361 = vand.u32 %v3354, 4294901760
        %4362 = vmatpush1.msra.mxu0 %v4361
        %v4363 = vand.u32 %v3357, 4294901760
        %4364 = vmatprep.subr.mxu0 %v4363
        %v4365 = vand.u32 %v3356, 4294901760
        %4366 = vmatpush1.msra.mxu0 %v4365
        %v4367 = vand.u32 %v3359, 4294901760
        %4368 = vmatprep.subr.mxu0 %v4367
        %v4369 = vand.u32 %v3358, 4294901760
        %4370 = vmatpush1.msra.mxu0 %v4369
        %v4371 = vand.u32 %v3361, 4294901760
        %4372 = vmatprep.subr.mxu0 %v4371
        %v4373 = vand.u32 %v3360, 4294901760
        %4374 = vmatpush1.msra.mxu0 %v4373
        %v4375 = vand.u32 %v3363, 4294901760
        %4376 = vmatprep.subr.mxu0 %v4375
        %v4377 = vand.u32 %v3362, 4294901760
        %4378 = vmatpush1.msra.mxu0 %v4377
        %v4379 = vand.u32 %v3365, 4294901760
        %4380 = vmatprep.subr.mxu0 %v4379
        %v4381 = vand.u32 %v3364, 4294901760
        %4382 = vmatpush1.msra.mxu0 %v4381
        %v4383 = vand.u32 %v3367, 4294901760
        %4384 = vmatprep.subr.mxu0 %v4383
        %v4385 = vand.u32 %v3366, 4294901760
        %4386 = vmatpush1.msra.mxu0 %v4385
        %v4387 = vand.u32 %v3369, 4294901760
        %4388 = vmatprep.subr.mxu0 %v4387
        %v4389 = vand.u32 %v3368, 4294901760
        %4390 = vmatpush1.msra.mxu0 %v4389
        %v4391 = vand.u32 %v3371, 4294901760
        %4392 = vmatprep.subr.mxu0 %v4391
        %v4393 = vand.u32 %v3370, 4294901760
        %4394 = vmatpush1.msra.mxu0 %v4393
        %v4395 = vand.u32 %v3373, 4294901760
        %4396 = vmatprep.subr.mxu0 %v4395
        %v4397 = vand.u32 %v3372, 4294901760
        %4398 = vmatpush1.msra.mxu0 %v4397
        %v4399 = vand.u32 %v3375, 4294901760
        %4400 = vmatprep.subr.mxu0 %v4399
        %v4401 = vand.u32 %v3374, 4294901760
        %4402 = vmatpush1.msra.mxu0 %v4401
        %v4403 = vand.u32 %v3377, 4294901760
        %4404 = vmatprep.subr.mxu0 %v4403
        %v4405 = vand.u32 %v3376, 4294901760
        %4406 = vmatpush1.msra.mxu0 %v4405
        %v4407 = vand.u32 %v3379, 4294901760
        %4408 = vmatprep.subr.mxu0 %v4407
        %v4409 = vand.u32 %v3378, 4294901760
        %4410 = vmatpush1.msra.mxu0 %v4409
        %v4411 = vand.u32 %v3381, 4294901760
        %4412 = vmatprep.subr.mxu0 %v4411
        %v4413 = vand.u32 %v3380, 4294901760
        %4414 = vmatpush1.msra.mxu0 %v4413
        %v4415 = vand.u32 %v3383, 4294901760
        %4416 = vmatprep.subr.mxu0 %v4415
        %v4417 = vand.u32 %v3382, 4294901760
        %4418 = vmatpush1.msra.mxu0 %v4417
        %4419 = vmatprep.subr.mxu0 0.0
        %4420 = vmatpush1.msra.mxu0 0.0
        %4421 = vmatprep.subr.mxu0 0.0
        %4422 = vmatpush1.msra.mxu0 0.0
        %4423 = vmatprep.subr.mxu0 0.0
        %4424 = vmatpush1.msra.mxu0 0.0
        %4425 = vmatprep.subr.mxu0 0.0
        %4426 = vmatpush1.msra.mxu0 0.0
        %4427 = vmatprep.subr.mxu0 0.0
        %4428 = vmatpush1.msra.mxu0 0.0
        %4429 = vmatprep.subr.mxu0 0.0
        %4430 = vmatpush1.msra.mxu0 0.0
        %4431 = vmatprep.subr.mxu0 0.0
        %4432 = vmatpush1.msra.mxu0 0.0
        %4433 = vmatprep.subr.mxu0 0.0
        %4434 = vmatpush1.msra.mxu0 0.0
        %4435 = vmatprep.subr.mxu0 0.0
        %4436 = vmatpush1.msra.mxu0 0.0
        %4437 = vmatprep.subr.mxu0 0.0
        %4438 = vmatpush1.msra.mxu0 0.0
        %4439 = vmatprep.subr.mxu0 0.0
        %4440 = vmatpush1.msra.mxu0 0.0
        %4441 = vmatprep.subr.mxu0 0.0
        %4442 = vmatpush1.msra.mxu0 0.0
        %4443 = vmatprep.subr.mxu0 0.0
        %4444 = vmatpush1.msra.mxu0 0.0
        %4445 = vmatprep.subr.mxu0 0.0
        %4446 = vmatpush1.msra.mxu0 0.0
        %v4447 = vand.u32 %v4345, 4294901760
        %v4448 = vsub.f32 %v4345, %v4447
        %v4449 = vand.u32 %v4448, 4294901760
        %v4450 = vsub.f32 %v4448, %v4449
        %v4451 = vand.u32 %v4450, 4294901760
        %4452 = vmatprep.mubr.f32.mxu0 %v4451
        %v4453 = vand.u32 %v3269, 4294901760
        %v4454 = vsub.f32 %v3269, %v4453
        %v4455 = vand.u32 %v4454, 4294901760
        %v4456 = vsub.f32 %v4454, %v4455
        %v4457 = vand.u32 %v4456, 4294901760
        %4458 = vmatmul.mubr.f32.gmra.mrb[0].mxu0 %v4457
        %v4459 = vpop.f32.mrb[0].mxu0
        %v4460 = vadd.f32 %v4340, %v4459
        %v4461 = vpop.f32.mrb[0].mxu0
        %v4462 = vadd.f32 %v4342, %v4461
        %4463 = vdwg.mxu0
        %v4464 = vand.u32 %v3349, 4294901760
        %v4465 = vsub.f32 %v3349, %v4464
        %v4466 = vand.u32 %v4465, 4294901760
        %v4467 = vsub.f32 %v4465, %v4466
        %v4468 = vand.u32 %v4467, 4294901760
        %4469 = vmatprep.subr.mxu0 %v4468
        %v4470 = vand.u32 %v3348, 4294901760
        %v4471 = vsub.f32 %v3348, %v4470
        %v4472 = vand.u32 %v4471, 4294901760
        %v4473 = vsub.f32 %v4471, %v4472
        %v4474 = vand.u32 %v4473, 4294901760
        %4475 = vmatpush1.msra.mxu0 %v4474
        %v4476 = vand.u32 %v3351, 4294901760
        %v4477 = vsub.f32 %v3351, %v4476
        %v4478 = vand.u32 %v4477, 4294901760
        %v4479 = vsub.f32 %v4477, %v4478
        %v4480 = vand.u32 %v4479, 4294901760
        %4481 = vmatprep.subr.mxu0 %v4480
        %v4482 = vand.u32 %v3350, 4294901760
        %v4483 = vsub.f32 %v3350, %v4482
        %v4484 = vand.u32 %v4483, 4294901760
        %v4485 = vsub.f32 %v4483, %v4484
        %v4486 = vand.u32 %v4485, 4294901760
        %4487 = vmatpush1.msra.mxu0 %v4486
        %v4488 = vand.u32 %v3353, 4294901760
        %v4489 = vsub.f32 %v3353, %v4488
        %v4490 = vand.u32 %v4489, 4294901760
        %v4491 = vsub.f32 %v4489, %v4490
        %v4492 = vand.u32 %v4491, 4294901760
        %4493 = vmatprep.subr.mxu0 %v4492
        %v4494 = vand.u32 %v3352, 4294901760
        %v4495 = vsub.f32 %v3352, %v4494
        %v4496 = vand.u32 %v4495, 4294901760
        %v4497 = vsub.f32 %v4495, %v4496
        %v4498 = vand.u32 %v4497, 4294901760
        %4499 = vmatpush1.msra.mxu0 %v4498
        %v4500 = vand.u32 %v3355, 4294901760
        %v4501 = vsub.f32 %v3355, %v4500
        %v4502 = vand.u32 %v4501, 4294901760
        %v4503 = vsub.f32 %v4501, %v4502
        %v4504 = vand.u32 %v4503, 4294901760
        %4505 = vmatprep.subr.mxu0 %v4504
        %v4506 = vand.u32 %v3354, 4294901760
        %v4507 = vsub.f32 %v3354, %v4506
        %v4508 = vand.u32 %v4507, 4294901760
        %v4509 = vsub.f32 %v4507, %v4508
        %v4510 = vand.u32 %v4509, 4294901760
        %4511 = vmatpush1.msra.mxu0 %v4510
        %v4512 = vand.u32 %v3357, 4294901760
        %v4513 = vsub.f32 %v3357, %v4512
        %v4514 = vand.u32 %v4513, 4294901760
        %v4515 = vsub.f32 %v4513, %v4514
        %v4516 = vand.u32 %v4515, 4294901760
        %4517 = vmatprep.subr.mxu0 %v4516
        %v4518 = vand.u32 %v3356, 4294901760
        %v4519 = vsub.f32 %v3356, %v4518
        %v4520 = vand.u32 %v4519, 4294901760
        %v4521 = vsub.f32 %v4519, %v4520
        %v4522 = vand.u32 %v4521, 4294901760
        %4523 = vmatpush1.msra.mxu0 %v4522
        %v4524 = vand.u32 %v3359, 4294901760
        %v4525 = vsub.f32 %v3359, %v4524
        %v4526 = vand.u32 %v4525, 4294901760
        %v4527 = vsub.f32 %v4525, %v4526
        %v4528 = vand.u32 %v4527, 4294901760
        %4529 = vmatprep.subr.mxu0 %v4528
        %v4530 = vand.u32 %v3358, 4294901760
        %v4531 = vsub.f32 %v3358, %v4530
        %v4532 = vand.u32 %v4531, 4294901760
        %v4533 = vsub.f32 %v4531, %v4532
        %v4534 = vand.u32 %v4533, 4294901760
        %4535 = vmatpush1.msra.mxu0 %v4534
        %v4536 = vand.u32 %v3361, 4294901760
        %v4537 = vsub.f32 %v3361, %v4536
        %v4538 = vand.u32 %v4537, 4294901760
        %v4539 = vsub.f32 %v4537, %v4538
        %v4540 = vand.u32 %v4539, 4294901760
        %4541 = vmatprep.subr.mxu0 %v4540
        %v4542 = vand.u32 %v3360, 4294901760
        %v4543 = vsub.f32 %v3360, %v4542
        %v4544 = vand.u32 %v4543, 4294901760
        %v4545 = vsub.f32 %v4543, %v4544
        %v4546 = vand.u32 %v4545, 4294901760
        %4547 = vmatpush1.msra.mxu0 %v4546
        %v4548 = vand.u32 %v3363, 4294901760
        %v4549 = vsub.f32 %v3363, %v4548
        %v4550 = vand.u32 %v4549, 4294901760
        %v4551 = vsub.f32 %v4549, %v4550
        %v4552 = vand.u32 %v4551, 4294901760
        %4553 = vmatprep.subr.mxu0 %v4552
        %v4554 = vand.u32 %v3362, 4294901760
        %v4555 = vsub.f32 %v3362, %v4554
        %v4556 = vand.u32 %v4555, 4294901760
        %v4557 = vsub.f32 %v4555, %v4556
        %v4558 = vand.u32 %v4557, 4294901760
        %4559 = vmatpush1.msra.mxu0 %v4558
        %v4560 = vand.u32 %v3365, 4294901760
        %v4561 = vsub.f32 %v3365, %v4560
        %v4562 = vand.u32 %v4561, 4294901760
        %v4563 = vsub.f32 %v4561, %v4562
        %v4564 = vand.u32 %v4563, 4294901760
        %4565 = vmatprep.subr.mxu0 %v4564
        %v4566 = vand.u32 %v3364, 4294901760
        %v4567 = vsub.f32 %v3364, %v4566
        %v4568 = vand.u32 %v4567, 4294901760
        %v4569 = vsub.f32 %v4567, %v4568
        %v4570 = vand.u32 %v4569, 4294901760
        %4571 = vmatpush1.msra.mxu0 %v4570
        %v4572 = vand.u32 %v3367, 4294901760
        %v4573 = vsub.f32 %v3367, %v4572
        %v4574 = vand.u32 %v4573, 4294901760
        %v4575 = vsub.f32 %v4573, %v4574
        %v4576 = vand.u32 %v4575, 4294901760
        %4577 = vmatprep.subr.mxu0 %v4576
        %v4578 = vand.u32 %v3366, 4294901760
        %v4579 = vsub.f32 %v3366, %v4578
        %v4580 = vand.u32 %v4579, 4294901760
        %v4581 = vsub.f32 %v4579, %v4580
        %v4582 = vand.u32 %v4581, 4294901760
        %4583 = vmatpush1.msra.mxu0 %v4582
        %v4584 = vand.u32 %v3369, 4294901760
        %v4585 = vsub.f32 %v3369, %v4584
        %v4586 = vand.u32 %v4585, 4294901760
        %v4587 = vsub.f32 %v4585, %v4586
        %v4588 = vand.u32 %v4587, 4294901760
        %4589 = vmatprep.subr.mxu0 %v4588
        %v4590 = vand.u32 %v3368, 4294901760
        %v4591 = vsub.f32 %v3368, %v4590
        %v4592 = vand.u32 %v4591, 4294901760
        %v4593 = vsub.f32 %v4591, %v4592
        %v4594 = vand.u32 %v4593, 4294901760
        %4595 = vmatpush1.msra.mxu0 %v4594
        %v4596 = vand.u32 %v3371, 4294901760
        %v4597 = vsub.f32 %v3371, %v4596
        %v4598 = vand.u32 %v4597, 4294901760
        %v4599 = vsub.f32 %v4597, %v4598
        %v4600 = vand.u32 %v4599, 4294901760
        %4601 = vmatprep.subr.mxu0 %v4600
        %v4602 = vand.u32 %v3370, 4294901760
        %v4603 = vsub.f32 %v3370, %v4602
        %v4604 = vand.u32 %v4603, 4294901760
        %v4605 = vsub.f32 %v4603, %v4604
        %v4606 = vand.u32 %v4605, 4294901760
        %4607 = vmatpush1.msra.mxu0 %v4606
        %v4608 = vand.u32 %v3373, 4294901760
        %v4609 = vsub.f32 %v3373, %v4608
        %v4610 = vand.u32 %v4609, 4294901760
        %v4611 = vsub.f32 %v4609, %v4610
        %v4612 = vand.u32 %v4611, 4294901760
        %4613 = vmatprep.subr.mxu0 %v4612
        %v4614 = vand.u32 %v3372, 4294901760
        %v4615 = vsub.f32 %v3372, %v4614
        %v4616 = vand.u32 %v4615, 4294901760
        %v4617 = vsub.f32 %v4615, %v4616
        %v4618 = vand.u32 %v4617, 4294901760
        %4619 = vmatpush1.msra.mxu0 %v4618
        %v4620 = vand.u32 %v3375, 4294901760
        %v4621 = vsub.f32 %v3375, %v4620
        %v4622 = vand.u32 %v4621, 4294901760
        %v4623 = vsub.f32 %v4621, %v4622
        %v4624 = vand.u32 %v4623, 4294901760
        %4625 = vmatprep.subr.mxu0 %v4624
        %v4626 = vand.u32 %v3374, 4294901760
        %v4627 = vsub.f32 %v3374, %v4626
        %v4628 = vand.u32 %v4627, 4294901760
        %v4629 = vsub.f32 %v4627, %v4628
        %v4630 = vand.u32 %v4629, 4294901760
        %4631 = vmatpush1.msra.mxu0 %v4630
        %v4632 = vand.u32 %v3377, 4294901760
        %v4633 = vsub.f32 %v3377, %v4632
        %v4634 = vand.u32 %v4633, 4294901760
        %v4635 = vsub.f32 %v4633, %v4634
        %v4636 = vand.u32 %v4635, 4294901760
        %4637 = vmatprep.subr.mxu0 %v4636
        %v4638 = vand.u32 %v3376, 4294901760
        %v4639 = vsub.f32 %v3376, %v4638
        %v4640 = vand.u32 %v4639, 4294901760
        %v4641 = vsub.f32 %v4639, %v4640
        %v4642 = vand.u32 %v4641, 4294901760
        %4643 = vmatpush1.msra.mxu0 %v4642
        %v4644 = vand.u32 %v3379, 4294901760
        %v4645 = vsub.f32 %v3379, %v4644
        %v4646 = vand.u32 %v4645, 4294901760
        %v4647 = vsub.f32 %v4645, %v4646
        %v4648 = vand.u32 %v4647, 4294901760
        %4649 = vmatprep.subr.mxu0 %v4648
        %v4650 = vand.u32 %v3378, 4294901760
        %v4651 = vsub.f32 %v3378, %v4650
        %v4652 = vand.u32 %v4651, 4294901760
        %v4653 = vsub.f32 %v4651, %v4652
        %v4654 = vand.u32 %v4653, 4294901760
        %4655 = vmatpush1.msra.mxu0 %v4654
        %v4656 = vand.u32 %v3381, 4294901760
        %v4657 = vsub.f32 %v3381, %v4656
        %v4658 = vand.u32 %v4657, 4294901760
        %v4659 = vsub.f32 %v4657, %v4658
        %v4660 = vand.u32 %v4659, 4294901760
        %4661 = vmatprep.subr.mxu0 %v4660
        %v4662 = vand.u32 %v3380, 4294901760
        %v4663 = vsub.f32 %v3380, %v4662
        %v4664 = vand.u32 %v4663, 4294901760
        %v4665 = vsub.f32 %v4663, %v4664
        %v4666 = vand.u32 %v4665, 4294901760
        %4667 = vmatpush1.msra.mxu0 %v4666
        %v4668 = vand.u32 %v3383, 4294901760
        %v4669 = vsub.f32 %v3383, %v4668
        %v4670 = vand.u32 %v4669, 4294901760
        %v4671 = vsub.f32 %v4669, %v4670
        %v4672 = vand.u32 %v4671, 4294901760
        %4673 = vmatprep.subr.mxu0 %v4672
        %v4674 = vand.u32 %v3382, 4294901760
        %v4675 = vsub.f32 %v3382, %v4674
        %v4676 = vand.u32 %v4675, 4294901760
        %v4677 = vsub.f32 %v4675, %v4676
        %v4678 = vand.u32 %v4677, 4294901760
        %4679 = vmatpush1.msra.mxu0 %v4678
        %4680 = vmatprep.subr.mxu0 0.0
        %4681 = vmatpush1.msra.mxu0 0.0
        %4682 = vmatprep.subr.mxu0 0.0
        %4683 = vmatpush1.msra.mxu0 0.0
        %4684 = vmatprep.subr.mxu0 0.0
        %4685 = vmatpush1.msra.mxu0 0.0
        %4686 = vmatprep.subr.mxu0 0.0
        %4687 = vmatpush1.msra.mxu0 0.0
        %4688 = vmatprep.subr.mxu0 0.0
        %4689 = vmatpush1.msra.mxu0 0.0
        %4690 = vmatprep.subr.mxu0 0.0
        %4691 = vmatpush1.msra.mxu0 0.0
        %4692 = vmatprep.subr.mxu0 0.0
        %4693 = vmatpush1.msra.mxu0 0.0
        %4694 = vmatprep.subr.mxu0 0.0
        %4695 = vmatpush1.msra.mxu0 0.0
        %4696 = vmatprep.subr.mxu0 0.0
        %4697 = vmatpush1.msra.mxu0 0.0
        %4698 = vmatprep.subr.mxu0 0.0
        %4699 = vmatpush1.msra.mxu0 0.0
        %4700 = vmatprep.subr.mxu0 0.0
        %4701 = vmatpush1.msra.mxu0 0.0
        %4702 = vmatprep.subr.mxu0 0.0
        %4703 = vmatpush1.msra.mxu0 0.0
        %4704 = vmatprep.subr.mxu0 0.0
        %4705 = vmatpush1.msra.mxu0 0.0
        %4706 = vmatprep.subr.mxu0 0.0
        %4707 = vmatpush1.msra.mxu0 0.0
        %v4708 = vand.u32 %v4345, 4294901760
        %4709 = vmatprep.mubr.f32.mxu0 %v4708
        %v4710 = vand.u32 %v3269, 4294901760
        %4711 = vmatmul.mubr.f32.gmra.mrb[0].mxu0 %v4710
        %v4712 = vpop.f32.mrb[0].mxu0
        %v4713 = vadd.f32 %v4460, %v4712
        %v4714 = vpop.f32.mrb[0].mxu0
        %v4715 = vadd.f32 %v4462, %v4714
        %4716 = vdwg.mxu0
        %v4717 = vand.u32 %v3349, 4294901760
        %v4718 = vsub.f32 %v3349, %v4717
        %4719 = vmatprep.subr.mxu0 %v4718
        %v4720 = vand.u32 %v3348, 4294901760
        %v4721 = vsub.f32 %v3348, %v4720
        %4722 = vmatpush1.msra.mxu0 %v4721
        %v4723 = vand.u32 %v3351, 4294901760
        %v4724 = vsub.f32 %v3351, %v4723
        %4725 = vmatprep.subr.mxu0 %v4724
        %v4726 = vand.u32 %v3350, 4294901760
        %v4727 = vsub.f32 %v3350, %v4726
        %4728 = vmatpush1.msra.mxu0 %v4727
        %v4729 = vand.u32 %v3353, 4294901760
        %v4730 = vsub.f32 %v3353, %v4729
        %4731 = vmatprep.subr.mxu0 %v4730
        %v4732 = vand.u32 %v3352, 4294901760
        %v4733 = vsub.f32 %v3352, %v4732
        %4734 = vmatpush1.msra.mxu0 %v4733
        %v4735 = vand.u32 %v3355, 4294901760
        %v4736 = vsub.f32 %v3355, %v4735
        %4737 = vmatprep.subr.mxu0 %v4736
        %v4738 = vand.u32 %v3354, 4294901760
        %v4739 = vsub.f32 %v3354, %v4738
        %4740 = vmatpush1.msra.mxu0 %v4739
        %v4741 = vand.u32 %v3357, 4294901760
        %v4742 = vsub.f32 %v3357, %v4741
        %4743 = vmatprep.subr.mxu0 %v4742
        %v4744 = vand.u32 %v3356, 4294901760
        %v4745 = vsub.f32 %v3356, %v4744
        %4746 = vmatpush1.msra.mxu0 %v4745
        %v4747 = vand.u32 %v3359, 4294901760
        %v4748 = vsub.f32 %v3359, %v4747
        %4749 = vmatprep.subr.mxu0 %v4748
        %v4750 = vand.u32 %v3358, 4294901760
        %v4751 = vsub.f32 %v3358, %v4750
        %4752 = vmatpush1.msra.mxu0 %v4751
        %v4753 = vand.u32 %v3361, 4294901760
        %v4754 = vsub.f32 %v3361, %v4753
        %4755 = vmatprep.subr.mxu0 %v4754
        %v4756 = vand.u32 %v3360, 4294901760
        %v4757 = vsub.f32 %v3360, %v4756
        %4758 = vmatpush1.msra.mxu0 %v4757
        %v4759 = vand.u32 %v3363, 4294901760
        %v4760 = vsub.f32 %v3363, %v4759
        %4761 = vmatprep.subr.mxu0 %v4760
        %v4762 = vand.u32 %v3362, 4294901760
        %v4763 = vsub.f32 %v3362, %v4762
        %4764 = vmatpush1.msra.mxu0 %v4763
        %v4765 = vand.u32 %v3365, 4294901760
        %v4766 = vsub.f32 %v3365, %v4765
        %4767 = vmatprep.subr.mxu0 %v4766
        %v4768 = vand.u32 %v3364, 4294901760
        %v4769 = vsub.f32 %v3364, %v4768
        %4770 = vmatpush1.msra.mxu0 %v4769
        %v4771 = vand.u32 %v3367, 4294901760
        %v4772 = vsub.f32 %v3367, %v4771
        %4773 = vmatprep.subr.mxu0 %v4772
        %v4774 = vand.u32 %v3366, 4294901760
        %v4775 = vsub.f32 %v3366, %v4774
        %4776 = vmatpush1.msra.mxu0 %v4775
        %v4777 = vand.u32 %v3369, 4294901760
        %v4778 = vsub.f32 %v3369, %v4777
        %4779 = vmatprep.subr.mxu0 %v4778
        %v4780 = vand.u32 %v3368, 4294901760
        %v4781 = vsub.f32 %v3368, %v4780
        %4782 = vmatpush1.msra.mxu0 %v4781
        %v4783 = vand.u32 %v3371, 4294901760
        %v4784 = vsub.f32 %v3371, %v4783
        %4785 = vmatprep.subr.mxu0 %v4784
        %v4786 = vand.u32 %v3370, 4294901760
        %v4787 = vsub.f32 %v3370, %v4786
        %4788 = vmatpush1.msra.mxu0 %v4787
        %v4789 = vand.u32 %v3373, 4294901760
        %v4790 = vsub.f32 %v3373, %v4789
        %4791 = vmatprep.subr.mxu0 %v4790
        %v4792 = vand.u32 %v3372, 4294901760
        %v4793 = vsub.f32 %v3372, %v4792
        %4794 = vmatpush1.msra.mxu0 %v4793
        %v4795 = vand.u32 %v3375, 4294901760
        %v4796 = vsub.f32 %v3375, %v4795
        %4797 = vmatprep.subr.mxu0 %v4796
        %v4798 = vand.u32 %v3374, 4294901760
        %v4799 = vsub.f32 %v3374, %v4798
        %4800 = vmatpush1.msra.mxu0 %v4799
        %v4801 = vand.u32 %v3377, 4294901760
        %v4802 = vsub.f32 %v3377, %v4801
        %4803 = vmatprep.subr.mxu0 %v4802
        %v4804 = vand.u32 %v3376, 4294901760
        %v4805 = vsub.f32 %v3376, %v4804
        %4806 = vmatpush1.msra.mxu0 %v4805
        %v4807 = vand.u32 %v3379, 4294901760
        %v4808 = vsub.f32 %v3379, %v4807
        %4809 = vmatprep.subr.mxu0 %v4808
        %v4810 = vand.u32 %v3378, 4294901760
        %v4811 = vsub.f32 %v3378, %v4810
        %4812 = vmatpush1.msra.mxu0 %v4811
        %v4813 = vand.u32 %v3381, 4294901760
        %v4814 = vsub.f32 %v3381, %v4813
        %4815 = vmatprep.subr.mxu0 %v4814
        %v4816 = vand.u32 %v3380, 4294901760
        %v4817 = vsub.f32 %v3380, %v4816
        %4818 = vmatpush1.msra.mxu0 %v4817
        %v4819 = vand.u32 %v3383, 4294901760
        %v4820 = vsub.f32 %v3383, %v4819
        %4821 = vmatprep.subr.mxu0 %v4820
        %v4822 = vand.u32 %v3382, 4294901760
        %v4823 = vsub.f32 %v3382, %v4822
        %4824 = vmatpush1.msra.mxu0 %v4823
        %4825 = vmatprep.subr.mxu0 0.0
        %4826 = vmatpush1.msra.mxu0 0.0
        %4827 = vmatprep.subr.mxu0 0.0
        %4828 = vmatpush1.msra.mxu0 0.0
        %4829 = vmatprep.subr.mxu0 0.0
        %4830 = vmatpush1.msra.mxu0 0.0
        %4831 = vmatprep.subr.mxu0 0.0
        %4832 = vmatpush1.msra.mxu0 0.0
        %4833 = vmatprep.subr.mxu0 0.0
        %4834 = vmatpush1.msra.mxu0 0.0
        %4835 = vmatprep.subr.mxu0 0.0
        %4836 = vmatpush1.msra.mxu0 0.0
        %4837 = vmatprep.subr.mxu0 0.0
        %4838 = vmatpush1.msra.mxu0 0.0
        %4839 = vmatprep.subr.mxu0 0.0
        %4840 = vmatpush1.msra.mxu0 0.0
        %4841 = vmatprep.subr.mxu0 0.0
        %4842 = vmatpush1.msra.mxu0 0.0
        %4843 = vmatprep.subr.mxu0 0.0
        %4844 = vmatpush1.msra.mxu0 0.0
        %4845 = vmatprep.subr.mxu0 0.0
        %4846 = vmatpush1.msra.mxu0 0.0
        %4847 = vmatprep.subr.mxu0 0.0
        %4848 = vmatpush1.msra.mxu0 0.0
        %4849 = vmatprep.subr.mxu0 0.0
        %4850 = vmatpush1.msra.mxu0 0.0
        %4851 = vmatprep.subr.mxu0 0.0
        %4852 = vmatpush1.msra.mxu0 0.0
        %v4853 = vand.u32 %v4345, 4294901760
        %v4854 = vsub.f32 %v4345, %v4853
        %4855 = vmatprep.mubr.f32.mxu0 %v4854
        %v4856 = vand.u32 %v3269, 4294901760
        %v4857 = vsub.f32 %v3269, %v4856
        %4858 = vmatmul.mubr.f32.gmra.mrb[0].mxu0 %v4857
        %v4859 = vpop.f32.mrb[0].mxu0
        %v4860 = vadd.f32 %v4713, %v4859
        %v4861 = vpop.f32.mrb[0].mxu0
        %v4862 = vadd.f32 %v4715, %v4861
        %4863 = vdwg.mxu0
        %v4864 = vand.u32 %v3349, 4294901760
        %4865 = vmatprep.subr.mxu0 %v4864
        %v4866 = vand.u32 %v3348, 4294901760
        %4867 = vmatpush1.msra.mxu0 %v4866
        %v4868 = vand.u32 %v3351, 4294901760
        %4869 = vmatprep.subr.mxu0 %v4868
        %v4870 = vand.u32 %v3350, 4294901760
        %4871 = vmatpush1.msra.mxu0 %v4870
        %v4872 = vand.u32 %v3353, 4294901760
        %4873 = vmatprep.subr.mxu0 %v4872
        %v4874 = vand.u32 %v3352, 4294901760
        %4875 = vmatpush1.msra.mxu0 %v4874
        %v4876 = vand.u32 %v3355, 4294901760
        %4877 = vmatprep.subr.mxu0 %v4876
        %v4878 = vand.u32 %v3354, 4294901760
        %4879 = vmatpush1.msra.mxu0 %v4878
        %v4880 = vand.u32 %v3357, 4294901760
        %4881 = vmatprep.subr.mxu0 %v4880
        %v4882 = vand.u32 %v3356, 4294901760
        %4883 = vmatpush1.msra.mxu0 %v4882
        %v4884 = vand.u32 %v3359, 4294901760
        %4885 = vmatprep.subr.mxu0 %v4884
        %v4886 = vand.u32 %v3358, 4294901760
        %4887 = vmatpush1.msra.mxu0 %v4886
        %v4888 = vand.u32 %v3361, 4294901760
        %4889 = vmatprep.subr.mxu0 %v4888
        %v4890 = vand.u32 %v3360, 4294901760
        %4891 = vmatpush1.msra.mxu0 %v4890
        %v4892 = vand.u32 %v3363, 4294901760
        %4893 = vmatprep.subr.mxu0 %v4892
        %v4894 = vand.u32 %v3362, 4294901760
        %4895 = vmatpush1.msra.mxu0 %v4894
        %v4896 = vand.u32 %v3365, 4294901760
        %4897 = vmatprep.subr.mxu0 %v4896
        %v4898 = vand.u32 %v3364, 4294901760
        %4899 = vmatpush1.msra.mxu0 %v4898
        %v4900 = vand.u32 %v3367, 4294901760
        %4901 = vmatprep.subr.mxu0 %v4900
        %v4902 = vand.u32 %v3366, 4294901760
        %4903 = vmatpush1.msra.mxu0 %v4902
        %v4904 = vand.u32 %v3369, 4294901760
        %4905 = vmatprep.subr.mxu0 %v4904
        %v4906 = vand.u32 %v3368, 4294901760
        %4907 = vmatpush1.msra.mxu0 %v4906
        %v4908 = vand.u32 %v3371, 4294901760
        %4909 = vmatprep.subr.mxu0 %v4908
        %v4910 = vand.u32 %v3370, 4294901760
        %4911 = vmatpush1.msra.mxu0 %v4910
        %v4912 = vand.u32 %v3373, 4294901760
        %4913 = vmatprep.subr.mxu0 %v4912
        %v4914 = vand.u32 %v3372, 4294901760
        %4915 = vmatpush1.msra.mxu0 %v4914
        %v4916 = vand.u32 %v3375, 4294901760
        %4917 = vmatprep.subr.mxu0 %v4916
        %v4918 = vand.u32 %v3374, 4294901760
        %4919 = vmatpush1.msra.mxu0 %v4918
        %v4920 = vand.u32 %v3377, 4294901760
        %4921 = vmatprep.subr.mxu0 %v4920
        %v4922 = vand.u32 %v3376, 4294901760
        %4923 = vmatpush1.msra.mxu0 %v4922
        %v4924 = vand.u32 %v3379, 4294901760
        %4925 = vmatprep.subr.mxu0 %v4924
        %v4926 = vand.u32 %v3378, 4294901760
        %4927 = vmatpush1.msra.mxu0 %v4926
        %v4928 = vand.u32 %v3381, 4294901760
        %4929 = vmatprep.subr.mxu0 %v4928
        %v4930 = vand.u32 %v3380, 4294901760
        %4931 = vmatpush1.msra.mxu0 %v4930
        %v4932 = vand.u32 %v3383, 4294901760
        %4933 = vmatprep.subr.mxu0 %v4932
        %v4934 = vand.u32 %v3382, 4294901760
        %4935 = vmatpush1.msra.mxu0 %v4934
        %4936 = vmatprep.subr.mxu0 0.0
        %4937 = vmatpush1.msra.mxu0 0.0
        %4938 = vmatprep.subr.mxu0 0.0
        %4939 = vmatpush1.msra.mxu0 0.0
        %4940 = vmatprep.subr.mxu0 0.0
        %4941 = vmatpush1.msra.mxu0 0.0
        %4942 = vmatprep.subr.mxu0 0.0
        %4943 = vmatpush1.msra.mxu0 0.0
        %4944 = vmatprep.subr.mxu0 0.0
        %4945 = vmatpush1.msra.mxu0 0.0
        %4946 = vmatprep.subr.mxu0 0.0
        %4947 = vmatpush1.msra.mxu0 0.0
        %4948 = vmatprep.subr.mxu0 0.0
        %4949 = vmatpush1.msra.mxu0 0.0
        %4950 = vmatprep.subr.mxu0 0.0
        %4951 = vmatpush1.msra.mxu0 0.0
        %4952 = vmatprep.subr.mxu0 0.0
        %4953 = vmatpush1.msra.mxu0 0.0
        %4954 = vmatprep.subr.mxu0 0.0
        %4955 = vmatpush1.msra.mxu0 0.0
        %4956 = vmatprep.subr.mxu0 0.0
        %4957 = vmatpush1.msra.mxu0 0.0
        %4958 = vmatprep.subr.mxu0 0.0
        %4959 = vmatpush1.msra.mxu0 0.0
        %4960 = vmatprep.subr.mxu0 0.0
        %4961 = vmatpush1.msra.mxu0 0.0
        %4962 = vmatprep.subr.mxu0 0.0
        %4963 = vmatpush1.msra.mxu0 0.0
        %v4964 = vand.u32 %v4345, 4294901760
        %v4965 = vsub.f32 %v4345, %v4964
        %v4966 = vand.u32 %v4965, 4294901760
        %4967 = vmatprep.mubr.f32.mxu0 %v4966
        %v4968 = vand.u32 %v3269, 4294901760
        %v4969 = vsub.f32 %v3269, %v4968
        %v4970 = vand.u32 %v4969, 4294901760
        %4971 = vmatmul.mubr.f32.gmra.mrb[0].mxu0 %v4970
        %v4972 = vpop.f32.mrb[0].mxu0
        %v4973 = vadd.f32 %v4860, %v4972
        %v4974 = vpop.f32.mrb[0].mxu0
        %v4975 = vadd.f32 %v4862, %v4974
        %4976 = vdwg.mxu0
        %v4977 = vand.u32 %v3349, 4294901760
        %v4978 = vsub.f32 %v3349, %v4977
        %v4979 = vand.u32 %v4978, 4294901760
        %4980 = vmatprep.subr.mxu0 %v4979
        %v4981 = vand.u32 %v3348, 4294901760
        %v4982 = vsub.f32 %v3348, %v4981
        %v4983 = vand.u32 %v4982, 4294901760
        %4984 = vmatpush1.msra.mxu0 %v4983
        %v4985 = vand.u32 %v3351, 4294901760
        %v4986 = vsub.f32 %v3351, %v4985
        %v4987 = vand.u32 %v4986, 4294901760
        %4988 = vmatprep.subr.mxu0 %v4987
        %v4989 = vand.u32 %v3350, 4294901760
        %v4990 = vsub.f32 %v3350, %v4989
        %v4991 = vand.u32 %v4990, 4294901760
        %4992 = vmatpush1.msra.mxu0 %v4991
        %v4993 = vand.u32 %v3353, 4294901760
        %v4994 = vsub.f32 %v3353, %v4993
        %v4995 = vand.u32 %v4994, 4294901760
        %4996 = vmatprep.subr.mxu0 %v4995
        %v4997 = vand.u32 %v3352, 4294901760
        %v4998 = vsub.f32 %v3352, %v4997
        %v4999 = vand.u32 %v4998, 4294901760
        %5000 = vmatpush1.msra.mxu0 %v4999
        %v5001 = vand.u32 %v3355, 4294901760
        %v5002 = vsub.f32 %v3355, %v5001
        %v5003 = vand.u32 %v5002, 4294901760
        %5004 = vmatprep.subr.mxu0 %v5003
        %v5005 = vand.u32 %v3354, 4294901760
        %v5006 = vsub.f32 %v3354, %v5005
        %v5007 = vand.u32 %v5006, 4294901760
        %5008 = vmatpush1.msra.mxu0 %v5007
        %v5009 = vand.u32 %v3357, 4294901760
        %v5010 = vsub.f32 %v3357, %v5009
        %v5011 = vand.u32 %v5010, 4294901760
        %5012 = vmatprep.subr.mxu0 %v5011
        %v5013 = vand.u32 %v3356, 4294901760
        %v5014 = vsub.f32 %v3356, %v5013
        %v5015 = vand.u32 %v5014, 4294901760
        %5016 = vmatpush1.msra.mxu0 %v5015
        %v5017 = vand.u32 %v3359, 4294901760
        %v5018 = vsub.f32 %v3359, %v5017
        %v5019 = vand.u32 %v5018, 4294901760
        %5020 = vmatprep.subr.mxu0 %v5019
        %v5021 = vand.u32 %v3358, 4294901760
        %v5022 = vsub.f32 %v3358, %v5021
        %v5023 = vand.u32 %v5022, 4294901760
        %5024 = vmatpush1.msra.mxu0 %v5023
        %v5025 = vand.u32 %v3361, 4294901760
        %v5026 = vsub.f32 %v3361, %v5025
        %v5027 = vand.u32 %v5026, 4294901760
        %5028 = vmatprep.subr.mxu0 %v5027
        %v5029 = vand.u32 %v3360, 4294901760
        %v5030 = vsub.f32 %v3360, %v5029
        %v5031 = vand.u32 %v5030, 4294901760
        %5032 = vmatpush1.msra.mxu0 %v5031
        %v5033 = vand.u32 %v3363, 4294901760
        %v5034 = vsub.f32 %v3363, %v5033
        %v5035 = vand.u32 %v5034, 4294901760
        %5036 = vmatprep.subr.mxu0 %v5035
        %v5037 = vand.u32 %v3362, 4294901760
        %v5038 = vsub.f32 %v3362, %v5037
        %v5039 = vand.u32 %v5038, 4294901760
        %5040 = vmatpush1.msra.mxu0 %v5039
        %v5041 = vand.u32 %v3365, 4294901760
        %v5042 = vsub.f32 %v3365, %v5041
        %v5043 = vand.u32 %v5042, 4294901760
        %5044 = vmatprep.subr.mxu0 %v5043
        %v5045 = vand.u32 %v3364, 4294901760
        %v5046 = vsub.f32 %v3364, %v5045
        %v5047 = vand.u32 %v5046, 4294901760
        %5048 = vmatpush1.msra.mxu0 %v5047
        %v5049 = vand.u32 %v3367, 4294901760
        %v5050 = vsub.f32 %v3367, %v5049
        %v5051 = vand.u32 %v5050, 4294901760
        %5052 = vmatprep.subr.mxu0 %v5051
        %v5053 = vand.u32 %v3366, 4294901760
        %v5054 = vsub.f32 %v3366, %v5053
        %v5055 = vand.u32 %v5054, 4294901760
        %5056 = vmatpush1.msra.mxu0 %v5055
        %v5057 = vand.u32 %v3369, 4294901760
        %v5058 = vsub.f32 %v3369, %v5057
        %v5059 = vand.u32 %v5058, 4294901760
        %5060 = vmatprep.subr.mxu0 %v5059
        %v5061 = vand.u32 %v3368, 4294901760
        %v5062 = vsub.f32 %v3368, %v5061
        %v5063 = vand.u32 %v5062, 4294901760
        %5064 = vmatpush1.msra.mxu0 %v5063
        %v5065 = vand.u32 %v3371, 4294901760
        %v5066 = vsub.f32 %v3371, %v5065
        %v5067 = vand.u32 %v5066, 4294901760
        %5068 = vmatprep.subr.mxu0 %v5067
        %v5069 = vand.u32 %v3370, 4294901760
        %v5070 = vsub.f32 %v3370, %v5069
        %v5071 = vand.u32 %v5070, 4294901760
        %5072 = vmatpush1.msra.mxu0 %v5071
        %v5073 = vand.u32 %v3373, 4294901760
        %v5074 = vsub.f32 %v3373, %v5073
        %v5075 = vand.u32 %v5074, 4294901760
        %5076 = vmatprep.subr.mxu0 %v5075
        %v5077 = vand.u32 %v3372, 4294901760
        %v5078 = vsub.f32 %v3372, %v5077
        %v5079 = vand.u32 %v5078, 4294901760
        %5080 = vmatpush1.msra.mxu0 %v5079
        %v5081 = vand.u32 %v3375, 4294901760
        %v5082 = vsub.f32 %v3375, %v5081
        %v5083 = vand.u32 %v5082, 4294901760
        %5084 = vmatprep.subr.mxu0 %v5083
        %v5085 = vand.u32 %v3374, 4294901760
        %v5086 = vsub.f32 %v3374, %v5085
        %v5087 = vand.u32 %v5086, 4294901760
        %5088 = vmatpush1.msra.mxu0 %v5087
        %v5089 = vand.u32 %v3377, 4294901760
        %v5090 = vsub.f32 %v3377, %v5089
        %v5091 = vand.u32 %v5090, 4294901760
        %5092 = vmatprep.subr.mxu0 %v5091
        %v5093 = vand.u32 %v3376, 4294901760
        %v5094 = vsub.f32 %v3376, %v5093
        %v5095 = vand.u32 %v5094, 4294901760
        %5096 = vmatpush1.msra.mxu0 %v5095
        %v5097 = vand.u32 %v3379, 4294901760
        %v5098 = vsub.f32 %v3379, %v5097
        %v5099 = vand.u32 %v5098, 4294901760
        %5100 = vmatprep.subr.mxu0 %v5099
        %v5101 = vand.u32 %v3378, 4294901760
        %v5102 = vsub.f32 %v3378, %v5101
        %v5103 = vand.u32 %v5102, 4294901760
        %5104 = vmatpush1.msra.mxu0 %v5103
        %v5105 = vand.u32 %v3381, 4294901760
        %v5106 = vsub.f32 %v3381, %v5105
        %v5107 = vand.u32 %v5106, 4294901760
        %5108 = vmatprep.subr.mxu0 %v5107
        %v5109 = vand.u32 %v3380, 4294901760
        %v5110 = vsub.f32 %v3380, %v5109
        %v5111 = vand.u32 %v5110, 4294901760
        %5112 = vmatpush1.msra.mxu0 %v5111
        %v5113 = vand.u32 %v3383, 4294901760
        %v5114 = vsub.f32 %v3383, %v5113
        %v5115 = vand.u32 %v5114, 4294901760
        %5116 = vmatprep.subr.mxu0 %v5115
        %v5117 = vand.u32 %v3382, 4294901760
        %v5118 = vsub.f32 %v3382, %v5117
        %v5119 = vand.u32 %v5118, 4294901760
        %5120 = vmatpush1.msra.mxu0 %v5119
        %5121 = vmatprep.subr.mxu0 0.0
        %5122 = vmatpush1.msra.mxu0 0.0
        %5123 = vmatprep.subr.mxu0 0.0
        %5124 = vmatpush1.msra.mxu0 0.0
        %5125 = vmatprep.subr.mxu0 0.0
        %5126 = vmatpush1.msra.mxu0 0.0
        %5127 = vmatprep.subr.mxu0 0.0
        %5128 = vmatpush1.msra.mxu0 0.0
        %5129 = vmatprep.subr.mxu0 0.0
        %5130 = vmatpush1.msra.mxu0 0.0
        %5131 = vmatprep.subr.mxu0 0.0
        %5132 = vmatpush1.msra.mxu0 0.0
        %5133 = vmatprep.subr.mxu0 0.0
        %5134 = vmatpush1.msra.mxu0 0.0
        %5135 = vmatprep.subr.mxu0 0.0
        %5136 = vmatpush1.msra.mxu0 0.0
        %5137 = vmatprep.subr.mxu0 0.0
        %5138 = vmatpush1.msra.mxu0 0.0
        %5139 = vmatprep.subr.mxu0 0.0
        %5140 = vmatpush1.msra.mxu0 0.0
        %5141 = vmatprep.subr.mxu0 0.0
        %5142 = vmatpush1.msra.mxu0 0.0
        %5143 = vmatprep.subr.mxu0 0.0
        %5144 = vmatpush1.msra.mxu0 0.0
        %5145 = vmatprep.subr.mxu0 0.0
        %5146 = vmatpush1.msra.mxu0 0.0
        %5147 = vmatprep.subr.mxu0 0.0
        %5148 = vmatpush1.msra.mxu0 0.0
        %v5149 = vand.u32 %v4345, 4294901760
        %5150 = vmatprep.mubr.f32.mxu0 %v5149
        %v5151 = vand.u32 %v3269, 4294901760
        %5152 = vmatmul.mubr.f32.gmra.mrb[0].mxu0 %v5151
        %v5153 = vpop.f32.mrb[0].mxu0
        %v5154 = vadd.f32 %v4973, %v5153
        %v5155 = vpop.f32.mrb[0].mxu0
        %v5156 = vadd.f32 %v4975, %v5155
        %5157 = vdwg.mxu0
        %v5158 = vand.u32 %v3349, 4294901760
        %5159 = vmatprep.subr.mxu0 %v5158
        %v5160 = vand.u32 %v3348, 4294901760
        %5161 = vmatpush1.msra.mxu0 %v5160
        %v5162 = vand.u32 %v3351, 4294901760
        %5163 = vmatprep.subr.mxu0 %v5162
        %v5164 = vand.u32 %v3350, 4294901760
        %5165 = vmatpush1.msra.mxu0 %v5164
        %v5166 = vand.u32 %v3353, 4294901760
        %5167 = vmatprep.subr.mxu0 %v5166
        %v5168 = vand.u32 %v3352, 4294901760
        %5169 = vmatpush1.msra.mxu0 %v5168
        %v5170 = vand.u32 %v3355, 4294901760
        %5171 = vmatprep.subr.mxu0 %v5170
        %v5172 = vand.u32 %v3354, 4294901760
        %5173 = vmatpush1.msra.mxu0 %v5172
        %v5174 = vand.u32 %v3357, 4294901760
        %5175 = vmatprep.subr.mxu0 %v5174
        %v5176 = vand.u32 %v3356, 4294901760
        %5177 = vmatpush1.msra.mxu0 %v5176
        %v5178 = vand.u32 %v3359, 4294901760
        %5179 = vmatprep.subr.mxu0 %v5178
        %v5180 = vand.u32 %v3358, 4294901760
        %5181 = vmatpush1.msra.mxu0 %v5180
        %v5182 = vand.u32 %v3361, 4294901760
        %5183 = vmatprep.subr.mxu0 %v5182
        %v5184 = vand.u32 %v3360, 4294901760
        %5185 = vmatpush1.msra.mxu0 %v5184
        %v5186 = vand.u32 %v3363, 4294901760
        %5187 = vmatprep.subr.mxu0 %v5186
        %v5188 = vand.u32 %v3362, 4294901760
        %5189 = vmatpush1.msra.mxu0 %v5188
        %v5190 = vand.u32 %v3365, 4294901760
        %5191 = vmatprep.subr.mxu0 %v5190
        %v5192 = vand.u32 %v3364, 4294901760
        %5193 = vmatpush1.msra.mxu0 %v5192
        %v5194 = vand.u32 %v3367, 4294901760
        %5195 = vmatprep.subr.mxu0 %v5194
        %v5196 = vand.u32 %v3366, 4294901760
        %5197 = vmatpush1.msra.mxu0 %v5196
        %v5198 = vand.u32 %v3369, 4294901760
        %5199 = vmatprep.subr.mxu0 %v5198
        %v5200 = vand.u32 %v3368, 4294901760
        %5201 = vmatpush1.msra.mxu0 %v5200
        %v5202 = vand.u32 %v3371, 4294901760
        %5203 = vmatprep.subr.mxu0 %v5202
        %v5204 = vand.u32 %v3370, 4294901760
        %5205 = vmatpush1.msra.mxu0 %v5204
        %v5206 = vand.u32 %v3373, 4294901760
        %5207 = vmatprep.subr.mxu0 %v5206
        %v5208 = vand.u32 %v3372, 4294901760
        %5209 = vmatpush1.msra.mxu0 %v5208
        %v5210 = vand.u32 %v3375, 4294901760
        %5211 = vmatprep.subr.mxu0 %v5210
        %v5212 = vand.u32 %v3374, 4294901760
        %5213 = vmatpush1.msra.mxu0 %v5212
        %v5214 = vand.u32 %v3377, 4294901760
        %5215 = vmatprep.subr.mxu0 %v5214
        %v5216 = vand.u32 %v3376, 4294901760
        %5217 = vmatpush1.msra.mxu0 %v5216
        %v5218 = vand.u32 %v3379, 4294901760
        %5219 = vmatprep.subr.mxu0 %v5218
        %v5220 = vand.u32 %v3378, 4294901760
        %5221 = vmatpush1.msra.mxu0 %v5220
        %v5222 = vand.u32 %v3381, 4294901760
        %5223 = vmatprep.subr.mxu0 %v5222
        %v5224 = vand.u32 %v3380, 4294901760
        %5225 = vmatpush1.msra.mxu0 %v5224
        %v5226 = vand.u32 %v3383, 4294901760
        %5227 = vmatprep.subr.mxu0 %v5226
        %v5228 = vand.u32 %v3382, 4294901760
        %5229 = vmatpush1.msra.mxu0 %v5228
        %5230 = vmatprep.subr.mxu0 0.0
        %5231 = vmatpush1.msra.mxu0 0.0
        %5232 = vmatprep.subr.mxu0 0.0
        %5233 = vmatpush1.msra.mxu0 0.0
        %5234 = vmatprep.subr.mxu0 0.0
        %5235 = vmatpush1.msra.mxu0 0.0
        %5236 = vmatprep.subr.mxu0 0.0
        %5237 = vmatpush1.msra.mxu0 0.0
        %5238 = vmatprep.subr.mxu0 0.0
        %5239 = vmatpush1.msra.mxu0 0.0
        %5240 = vmatprep.subr.mxu0 0.0
        %5241 = vmatpush1.msra.mxu0 0.0
        %5242 = vmatprep.subr.mxu0 0.0
        %5243 = vmatpush1.msra.mxu0 0.0
        %5244 = vmatprep.subr.mxu0 0.0
        %5245 = vmatpush1.msra.mxu0 0.0
        %5246 = vmatprep.subr.mxu0 0.0
        %5247 = vmatpush1.msra.mxu0 0.0
        %5248 = vmatprep.subr.mxu0 0.0
        %5249 = vmatpush1.msra.mxu0 0.0
        %5250 = vmatprep.subr.mxu0 0.0
        %5251 = vmatpush1.msra.mxu0 0.0
        %5252 = vmatprep.subr.mxu0 0.0
        %5253 = vmatpush1.msra.mxu0 0.0
        %5254 = vmatprep.subr.mxu0 0.0
        %5255 = vmatpush1.msra.mxu0 0.0
        %5256 = vmatprep.subr.mxu0 0.0
        %5257 = vmatpush1.msra.mxu0 0.0
        %v5258 = vand.u32 %v4345, 4294901760
        %5259 = vmatprep.mubr.f32.mxu0 %v5258
        %v5260 = vand.u32 %v3269, 4294901760
        %5261 = vmatmul.mubr.f32.gmra.mrb[0].mxu0 %v5260
        %v5262 = vpop.f32.mrb[0].mxu0
        %v5263 = vadd.f32 %v5154, %v5262
        %v5264 = vpop.f32.mrb[0].mxu0
        %v5265 = vadd.f32 %v5156, %v5264
        %5266 = vdwg.mxu0
        %v5269 = vcombine.low %v5263, %v5265
        %5271 = vst [vmem:[%s325] sm:$0xff] %v5269
        %s5272 = sand.u32 %s225, 1
        %s5273 = scalar_lea.sflag [#allocation3], %s5272
        %s5274 = sand.u32 %s225, 1
        %s5275 = smul.addr %s5274, 8
        %s5276 = scalar_lea.vmem [#allocation2], %s5275
        // Predicated region
        $region57: #{tpu_custom_call.1} parent=55 // pred_check
          %p5277 = pneg %p235
        $region58: #{tpu_custom_call.1} parent=55 // pred_check_branch
          %5279 = sbr.rel (%p5277) target = $region60
        $region59: #{tpu_custom_call.1} parent=55 // pred_region
          %s5281 = ssub.s32 128, 128
          %5282 = vsyncadd %s5273, %s5281
          %s5283 = smul.addr %s23, 2
          %s5284 = smul.addr %s5283, 64
          %s5285 = scalar_lea.hbm %s9, %s5284
          %s5287 = sshll.u32 %s5276, 4
          %s5288 = int_to_ptr.vmem [resolvable:$true] %s5287
          %5290 = dma.vmem_to_hbm [thread:$0]  %s5288, 128, %s5285, %s5273
        $region60: #{tpu_custom_call.1} parent=55 // pred_fallthru
          _
      $region56: #{tpu_custom_call.1} parent=5 // pred_fallthru
        _
      %p5291 = scmp.le.s32.totalorder 2, %s18
      // Predicated region
      $region61: #{tpu_custom_call.1} parent=5 // pred_check
        %p5292 = pneg %p5291
      $region62: #{tpu_custom_call.1} parent=5 // pred_check_branch
        %5294 = sbr.rel (%p5292) target = $region64
      $region63: #{tpu_custom_call.1} parent=5 // pred_region
        %s5295 = ssub.s32 %s18, 2
        // Predicated region
        $region65: #{tpu_custom_call.1} parent=63 // pred_check
          %p5296 = pneg %p241
        $region66: #{tpu_custom_call.1} parent=63 // pred_check_branch
          %5298 = sbr.rel (%p5296) target = $region68
        $region67: #{tpu_custom_call.1} parent=63 // pred_region
          %s5299 = sand.u32 %s226, 1
          %s5300 = scalar_lea.sflag [#allocation3], %s5299
          %s5301 = sand.u32 %s226, 1
          %s5302 = smul.addr %s5301, 8
          %s5303 = scalar_lea.vmem [#allocation2], %s5302
          %5304 = dma.done %s5300, 128
        $region68: #{tpu_custom_call.1} parent=63 // pred_fallthru
          _
      $region64: #{tpu_custom_call.1} parent=5 // pred_fallthru
        _
    $region6: #{tpu_custom_call.1} parent=1 // loop_footer
      %s22 = sadd.s32 1, %s18
    $region7: #{tpu_custom_call.1} parent=1 // loop_footer_branch
      %17 = sbr.rel target = $region3
    $region8: #{tpu_custom_call.1} parent=1 // loop_exit
      _
    %5305 = vsyncpa [#allocation3], 1
    %s5306 = scalar_lea.sflag [#allocation3], 1
    %5307 = vsyncpa %s5306, 1

</llo_original>
